<compile_context>
chip_gen: v5e
topology: v5e:2x2
jax: 0.10.0
libtpu: 0.0.40
codegen_flags: <defaults>
</compile_context>

<pallas_src>
import numpy as np
import jax
import jax.numpy as jnp
from jax.experimental import pallas as pl
from jax.experimental.pallas import tpu as pltpu


LANE = 128  # TPU lane width; all channel counts are padded to this.

# ----------------------------------------------------------------------------
# Spec (matrix + ops): a standard 5-vertex NAS-Bench cell.
# ----------------------------------------------------------------------------
MATRIX = np.array(
    [[0, 1, 1, 0, 1],
     [0, 0, 0, 1, 0],
     [0, 0, 0, 1, 0],
     [0, 0, 0, 0, 1],
     [0, 0, 0, 0, 0]], dtype=np.int64)
OPS = ['input', 'conv3x3-bn-relu', 'conv1x1-bn-relu', 'maxpool3x3', 'output']


def compute_vertex_channels(input_channels, output_channels, matrix):
    num_vertices = np.shape(matrix)[0]
    vertex_channels = [0] * num_vertices
    vertex_channels[0] = input_channels
    vertex_channels[num_vertices - 1] = output_channels
    if num_vertices == 2:
        return vertex_channels
    in_degree = np.sum(matrix[1:], axis=0)
    interior_channels = output_channels // in_degree[num_vertices - 1]
    correction = output_channels % in_degree[num_vertices - 1]
    for v in range(1, num_vertices - 1):
        if matrix[v, num_vertices - 1]:
            vertex_channels[v] = interior_channels
            if correction:
                vertex_channels[v] += 1
                correction -= 1
    for v in range(num_vertices - 3, 0, -1):
        if not matrix[v, num_vertices - 1]:
            for dst in range(v + 1, num_vertices - 1):
                if matrix[v, dst]:
                    vertex_channels[v] = max(vertex_channels[v], vertex_channels[dst])
        assert vertex_channels[v] > 0
    final_fan_in = 0
    for v in range(1, num_vertices - 1):
        if matrix[v, num_vertices - 1]:
            final_fan_in += vertex_channels[v]
        for dst in range(v + 1, num_vertices - 1):
            if matrix[v, dst]:
                assert vertex_channels[v] >= vertex_channels[dst]
    assert final_fan_in == output_channels or num_vertices == 2
    return vertex_channels


def truncate(x_nhwc, channels):
    input_channels = x_nhwc.shape[-1]
    if input_channels < channels:
        raise ValueError('input channel < output channels for truncate')
    elif input_channels == channels:
        return x_nhwc
    else:
        return x_nhwc[..., :channels]


# ----------------------------------------------------------------------------
# Parameters (deterministic init, BN folded into the conv weights)
# ----------------------------------------------------------------------------
def _make_bn_scale_bias(key, c):
    k1, k2, k3, k4 = jax.random.split(key, 4)
    gamma = jax.random.uniform(k1, (c,), jnp.float32, 0.5, 1.5)
    beta = jax.random.normal(k2, (c,), jnp.float32) * 0.1
    mean = jax.random.normal(k3, (c,), jnp.float32) * 0.1
    var = jax.random.uniform(k4, (c,), jnp.float32, 0.5, 1.5)
    eps = 1e-5
    s = gamma / jnp.sqrt(var + eps)
    b = beta - mean * s
    return s, b


def init_params(key, matrix, ops, in_channels, vertex_channels):
    """Conv-type ops stored as (w_folded[bf16], bias[f32]); w_folded = w * bn_scale."""
    nv = matrix.shape[0]
    params = {'vertex_op': {}, 'input_op': {}}
    for t in range(1, nv - 1):
        c = vertex_channels[t]
        key, k1, k2 = jax.random.split(key, 3)
        if ops[t] == 'conv3x3-bn-relu':
            w = jax.random.normal(k1, (9, c, c), jnp.float32) * 0.1
            s, b = _make_bn_scale_bias(k2, c)
            params['vertex_op'][t] = ((w * s[None, None, :]).astype(jnp.bfloat16), b)
        elif ops[t] == 'conv1x1-bn-relu':
            w = jax.random.normal(k1, (c, c), jnp.float32) * 0.1
            s, b = _make_bn_scale_bias(k2, c)
            params['vertex_op'][t] = ((w * s[None, :]).astype(jnp.bfloat16), b)
        elif ops[t] == 'maxpool3x3':
            params['vertex_op'][t] = ()
        else:
            raise ValueError(ops[t])
    for t in range(1, nv):
        if matrix[0, t]:
            key, k1, k2 = jax.random.split(key, 3)
            w = jax.random.normal(
                k1, (in_channels, vertex_channels[t]), jnp.float32) * 0.1
            s, b = _make_bn_scale_bias(k2, vertex_channels[t])
            params['input_op'][t] = ((w * s[None, :]).astype(jnp.bfloat16), b)
    return params


# ----------------------------------------------------------------------------
# Fused Pallas cell forward (single pallas_call over the whole DAG)
# ----------------------------------------------------------------------------
def cell_forward_pallas(x_nhwc, params, matrix, ops, vertex_channels, cp=LANE):
    N, H, W, Cin = x_nhwc.shape
    nv = matrix.shape[0]
    out_channels = vertex_channels[nv - 1]
    assert Cin <= cp and max(vertex_channels) <= cp and out_channels <= cp

    # Lane-pad the input once; padded lanes stay exactly zero throughout.
    xp = jnp.pad(x_nhwc, ((0, 0), (0, 0), (0, 0), (0, cp - Cin)))

    # ---- flatten all (BN-folded) weights into one lane-padded list ----------
    w_list = []

    def _add(a):
        w_list.append(a)
        return len(w_list) - 1

    def _pad_w(w):    # (ci, co) -> (cp, cp)
        return jnp.pad(w, ((0, cp - w.shape[0]), (0, cp - w.shape[1])))

    def _pad_w9(w9):  # (9, ci, co) -> (9, cp, cp)
        return jnp.pad(w9, ((0, 0), (0, cp - w9.shape[1]), (0, cp - w9.shape[2])))

    def _pad_b(b):    # (c,) -> (1, cp)
        return jnp.pad(b.reshape(1, -1), ((0, 0), (0, cp - b.shape[0])))

    vidx, pidx = {}, {}
    for t in range(1, nv - 1):
        if ops[t] == 'conv3x3-bn-relu':
            w, b = params['vertex_op'][t]
            vidx[t] = (_add(_pad_w9(w)), _add(_pad_b(b)))
        elif ops[t] == 'conv1x1-bn-relu':
            w, b = params['vertex_op'][t]
            vidx[t] = (_add(_pad_w(w)), _add(_pad_b(b)))
    for t in range(1, nv):
        if matrix[0, t]:
            w, b = params['input_op'][t]
            pidx[t] = (_add(_pad_w(w)), _add(_pad_b(b)))
    n_w = len(w_list)

    has_c3 = any(ops[t] == 'conv3x3-bn-relu' for t in range(1, nv - 1))
    has_mp = any(ops[t] == 'maxpool3x3' for t in range(1, nv - 1))
    scratch_shapes = []
    z_i = m_i = None
    if has_c3:   # zero-bordered spatial pad buffer, shared by all conv3x3
        z_i = len(scratch_shapes)
        scratch_shapes.append(pltpu.VMEM((1, H + 2, W + 2, cp), jnp.float32))
    if has_mp:   # (-inf)-bordered spatial pad buffer, shared by all maxpools
        m_i = len(scratch_shapes)
        scratch_shapes.append(pltpu.VMEM((1, H + 2, W + 2, cp), jnp.float32))

    def kernel(*refs):
        x_ref = refs[0]
        w_refs = refs[1:1 + n_w]
        out_ref = refs[1 + n_w]
        scratch = refs[2 + n_w:]
        zbuf = scratch[z_i] if has_c3 else None
        mbuf = scratch[m_i] if has_mp else None

        # (Re)initialize the padded borders each grid step (cheap, tiny buffers).
        if has_c3:
            zbuf[...] = jnp.zeros(zbuf.shape, jnp.float32)
        if has_mp:
            mbuf[...] = jnp.full(mbuf.shape, -3.0e38, jnp.float32)

        x_bf = x_ref[...].reshape(H * W, cp).astype(jnp.bfloat16)

        def dense(lhs_bf16, wi, bi):  # conv1x1 + folded BN + ReLU
            y = jnp.dot(lhs_bf16, w_refs[wi][...],
                        preferred_element_type=jnp.float32)
            return jnp.maximum(y + w_refs[bi][...], 0.0)

        def proj(t):                  # Conv1x1BnRelu projection of the input
            return dense(x_bf, *pidx[t])

        def conv1x1(vin, t):
            return dense(vin.astype(jnp.bfloat16), *vidx[t])

        def conv3x3(vin, t):
            wi, bi = vidx[t]
            zbuf[0, pl.ds(1, H), pl.ds(1, W), :] = vin.reshape(H, W, cp)
            acc = jnp.zeros((H * W, cp), jnp.float32)
            for k in range(9):
                ky, kx = k // 3, k % 3
                tap = zbuf[0, pl.ds(ky, H), pl.ds(kx, W), :].reshape(H * W, cp)
                acc = acc + jnp.dot(tap.astype(jnp.bfloat16), w_refs[wi][k],
                                    preferred_element_type=jnp.float32)
            return jnp.maximum(acc + w_refs[bi][...], 0.0)

        def maxpool(vin):             # MaxPool2d(3, stride=1, padding=1)
            mbuf[0, pl.ds(1, H), pl.ds(1, W), :] = vin.reshape(H, W, cp)
            out = None
            for k in range(9):
                ky, kx = k // 3, k % 3
                tap = mbuf[0, pl.ds(ky, H), pl.ds(kx, W), :]
                out = tap if out is None else jnp.maximum(out, tap)
            return out.reshape(H * W, cp)

        def truncate_lanes(v, src_c, dst_c):
            if src_c <= dst_c:
                return v              # lanes >= real channel count are already 0
            lane = jax.lax.broadcasted_iota(jnp.int32, v.shape, 1)
            return jnp.where(lane < dst_c, v, 0.0)

        vals = {}
        final_pieces = []
        for t in range(1, nv - 1):
            add_in = [truncate_lanes(vals[s], vertex_channels[s],
                                     vertex_channels[t])
                      for s in range(1, t) if matrix[s, t]]
            if matrix[0, t]:
                add_in.append(proj(t))
            vin = add_in[0]
            for extra in add_in[1:]:
                vin = vin + extra
            if ops[t] == 'conv3x3-bn-relu':
                v = conv3x3(vin, t)
            elif ops[t] == 'conv1x1-bn-relu':
                v = conv1x1(vin, t)
            elif ops[t] == 'maxpool3x3':
                v = maxpool(vin)
            else:
                raise ValueError(ops[t])
            vals[t] = v
            if matrix[t, nv - 1]:
                final_pieces.append((v, vertex_channels[t]))

        if not final_pieces:
            out = proj(nv - 1)
        else:
            # Channel-concat in the lane-padded domain: each piece has zeros in
            # lanes >= its real channel count, so rotating it to its channel
            # offset and summing reproduces jnp.concatenate(..., axis=-1).
            out, off = None, 0
            for v, c in final_pieces:
                piece = v if off == 0 else pltpu.roll(v, shift=off, axis=1)
                out = piece if out is None else out + piece
                off += c
            if matrix[0, nv - 1]:
                out = out + proj(nv - 1)

        out_ref[...] = out.reshape(1, H, W, cp)

    in_specs = [pl.BlockSpec((1, H, W, cp), lambda n: (n, 0, 0, 0))]
    for a in w_list:
        in_specs.append(pl.BlockSpec(a.shape, lambda n, nd=a.ndim: (0,) * nd))

    out = pl.pallas_call(
        kernel,
        out_shape=jax.ShapeDtypeStruct((N, H, W, cp), jnp.float32),
        grid=(N,),
        in_specs=in_specs,
        out_specs=pl.BlockSpec((1, H, W, cp), lambda n: (n, 0, 0, 0)),
        scratch_shapes=scratch_shapes,
        compiler_params=pltpu.CompilerParams(
            dimension_semantics=("parallel",),
            vmem_limit_bytes=32 * 1024 * 1024),
    )(xp, *w_list)
    return out[..., :out_channels]   # single channel truncation at the very end


# ----------------------------------------------------------------------------
# Pure-JAX reference (same math: folded BN, bf16 matmul inputs, f32 accum)
# ----------------------------------------------------------------------------
def _ref_conv1x1(x, w, b):
    y = jnp.einsum('nhwc,cd->nhwd', x.astype(jnp.bfloat16), w,
                   preferred_element_type=jnp.float32)
    return jnp.maximum(y + b, 0.0)


def _ref_conv3x3(x, w9, b):
    n, h, w_, _ = x.shape
    xb = jnp.pad(x, ((0, 0), (1, 1), (1, 1), (0, 0))).astype(jnp.bfloat16)
    acc = jnp.zeros((n, h, w_, w9.shape[-1]), jnp.float32)
    for k in range(9):
        ky, kx = k // 3, k % 3
        acc = acc + jnp.einsum('nhwc,cd->nhwd',
                               xb[:, ky:ky + h, kx:kx + w_, :], w9[k],
                               preferred_element_type=jnp.float32)
    return jnp.maximum(acc + b, 0.0)


def _ref_maxpool(x):
    n, h, w_, _ = x.shape
    xp = jnp.pad(x, ((0, 0), (1, 1), (1, 1), (0, 0)),
                 constant_values=-jnp.inf)
    out = jnp.full_like(x, -jnp.inf)
    for ky in range(3):
        for kx in range(3):
            out = jnp.maximum(out, xp[:, ky:ky + h, kx:kx + w_, :])
    return out


def cell_forward_ref(x_nhwc, params, matrix, ops, vertex_channels):
    nv = matrix.shape[0]
    tensors = [x_nhwc]
    final_concat_in = []
    for t in range(1, nv - 1):
        add_in = [truncate(tensors[src], vertex_channels[t])
                  for src in range(1, t) if matrix[src, t]]
        if matrix[0, t]:
            add_in.append(_ref_conv1x1(tensors[0], *params['input_op'][t]))
        vertex_input = add_in[0]
        for extra in add_in[1:]:
            vertex_input = vertex_input + extra
        if ops[t] == 'conv3x3-bn-relu':
            v = _ref_conv3x3(vertex_input, *params['vertex_op'][t])
        elif ops[t] == 'conv1x1-bn-relu':
            v = _ref_conv1x1(vertex_input, *params['vertex_op'][t])
        elif ops[t] == 'maxpool3x3':
            v = _ref_maxpool(vertex_input)
        else:
            raise ValueError(ops[t])
        tensors.append(v)
        if matrix[t, nv - 1]:
            final_concat_in.append(v)
    if not final_concat_in:
        outputs = _ref_conv1x1(tensors[0], *params['input_op'][nv - 1])
    else:
        if len(final_concat_in) == 1:
            outputs = final_concat_in[0]
        else:
            outputs = jnp.concatenate(final_concat_in, axis=-1)
        if matrix[0, nv - 1]:
            outputs = outputs + _ref_conv1x1(tensors[0], *params['input_op'][nv - 1])
    return outputs


# ----------------------------------------------------------------------------
if __name__ == "__main__":
    key = jax.random.PRNGKey(0)
    N, Cin, H, W = 2, 8, 16, 16
    Cout = 16

    kx_, kp_ = jax.random.split(key)
    x_nchw = jax.random.normal(kx_, (N, Cin, H, W), jnp.float32)   # PyTorch layout
    x_nhwc = jnp.transpose(x_nchw, (0, 2, 3, 1))                   # kernel layout

    vc = compute_vertex_channels(Cin, Cout, MATRIX)
    params = init_params(kp_, MATRIX, OPS, Cin, vc)

    out_nhwc = jax.block_until_ready(
        cell_forward_pallas(x_nhwc, params, MATRIX, OPS, vc))
    ref_nhwc = jax.block_until_ready(
        cell_forward_ref(x_nhwc, params, MATRIX, OPS, vc))

    out_nchw = jnp.transpose(out_nhwc, (0, 3, 1, 2))               # back to NCHW
    assert out_nchw.shape == (N, Cout, H, W)
    # Both paths quantize matmul inputs to bf16 (with f32 accumulation), so
    # remaining differences are accumulation order + rare bf16 rounding flips
    # of intermediate activations; 1e-2 is tight enough to catch any missing
    # tap/term (which would shift outputs by O(0.1)).
    np.testing.assert_allclose(np.asarray(out_nhwc), np.asarray(ref_nhwc),
                               rtol=1e-2, atol=1e-2)
    print("KERNEL_OK")
</pallas_src>

<mosaic_0001>
module attributes {stable_mosaic.version = 11 : i64} {
  func.func @kernel(%arg0: i32, %arg1: memref<1x16x16x128xf32, #tpu.memory_space<vmem>>, %arg2: memref<9x128x128xbf16, #tpu.memory_space<vmem>>, %arg3: memref<1x128xf32, #tpu.memory_space<vmem>>, %arg4: memref<128x128xbf16, #tpu.memory_space<vmem>>, %arg5: memref<1x128xf32, #tpu.memory_space<vmem>>, %arg6: memref<128x128xbf16, #tpu.memory_space<vmem>>, %arg7: memref<1x128xf32, #tpu.memory_space<vmem>>, %arg8: memref<128x128xbf16, #tpu.memory_space<vmem>>, %arg9: memref<1x128xf32, #tpu.memory_space<vmem>>, %arg10: memref<128x128xbf16, #tpu.memory_space<vmem>>, %arg11: memref<1x128xf32, #tpu.memory_space<vmem>>, %arg12: memref<1x16x16x128xf32, #tpu.memory_space<vmem>>, %arg13: memref<1x18x18x128xf32, #tpu.memory_space<vmem>>, %arg14: memref<1x18x18x128xf32, #tpu.memory_space<vmem>>) attributes {dimension_semantics = [#tpu.dimension_semantics<parallel>], iteration_bounds = array<i64: 2>, scalar_prefetch = 0 : i64, scratch_operands = 2 : i64, tpu.core_type = #tpu.core_type<tc>, window_params = [{transform_indices = @transform_0, window_bounds = array<i64: 1, 16, 16, 128>}, {pipeline_mode = #tpu.pipeline_mode<synchronous>, transform_indices = @transform_1, window_bounds = array<i64: 9, 128, 128>}, {pipeline_mode = #tpu.pipeline_mode<synchronous>, transform_indices = @transform_2, window_bounds = array<i64: 1, 128>}, {pipeline_mode = #tpu.pipeline_mode<synchronous>, transform_indices = @transform_3, window_bounds = array<i64: 128, 128>}, {pipeline_mode = #tpu.pipeline_mode<synchronous>, transform_indices = @transform_4, window_bounds = array<i64: 1, 128>}, {pipeline_mode = #tpu.pipeline_mode<synchronous>, transform_indices = @transform_5, window_bounds = array<i64: 128, 128>}, {pipeline_mode = #tpu.pipeline_mode<synchronous>, transform_indices = @transform_6, window_bounds = array<i64: 1, 128>}, {pipeline_mode = #tpu.pipeline_mode<synchronous>, transform_indices = @transform_7, window_bounds = array<i64: 128, 128>}, {pipeline_mode = #tpu.pipeline_mode<synchronous>, transform_indices = @transform_8, window_bounds = array<i64: 1, 128>}, {pipeline_mode = #tpu.pipeline_mode<synchronous>, transform_indices = @transform_9, window_bounds = array<i64: 128, 128>}, {pipeline_mode = #tpu.pipeline_mode<synchronous>, transform_indices = @transform_10, window_bounds = array<i64: 1, 128>}, {transform_indices = @transform_11, window_bounds = array<i64: 1, 16, 16, 128>}]} {
    %cst = arith.constant 0.000000e+00 : f32
    %0 = vector.broadcast %cst : f32 to vector<1x18x18x128xf32>
    %c0 = arith.constant 0 : index
    %c0_0 = arith.constant 0 : index
    %c0_1 = arith.constant 0 : index
    %c0_2 = arith.constant 0 : index
    %1 = vector.load %arg13[%c0, %c0_0, %c0_1, %c0_2] : memref<1x18x18x128xf32, #tpu.memory_space<vmem>>, vector<1x18x18x128xf32>
    tpu.vector_store %arg13[%c0, %c0_0, %c0_1, %c0_2], %0 {strides = array<i32>} : memref<1x18x18x128xf32, #tpu.memory_space<vmem>>, vector<1x18x18x128xf32>,
    %cst_3 = arith.constant -3.000000e+38 : f32
    %2 = vector.broadcast %cst_3 : f32 to vector<1x18x18x128xf32>
    %c0_4 = arith.constant 0 : index
    %c0_5 = arith.constant 0 : index
    %c0_6 = arith.constant 0 : index
    %c0_7 = arith.constant 0 : index
    %3 = vector.load %arg14[%c0_4, %c0_5, %c0_6, %c0_7] : memref<1x18x18x128xf32, #tpu.memory_space<vmem>>, vector<1x18x18x128xf32>
    tpu.vector_store %arg14[%c0_4, %c0_5, %c0_6, %c0_7], %2 {strides = array<i32>} : memref<1x18x18x128xf32, #tpu.memory_space<vmem>>, vector<1x18x18x128xf32>,
    %c0_8 = arith.constant 0 : index
    %c0_9 = arith.constant 0 : index
    %c0_10 = arith.constant 0 : index
    %c0_11 = arith.constant 0 : index
    %4 = vector.load %arg1[%c0_8, %c0_9, %c0_10, %c0_11] : memref<1x16x16x128xf32, #tpu.memory_space<vmem>>, vector<1x16x16x128xf32>
    %5 = vector.shape_cast %4 : vector<1x16x16x128xf32> to vector<256x128xf32>
    %6 = arith.truncf %5 : vector<256x128xf32> to vector<256x128xbf16>
    %c0_12 = arith.constant 0 : index
    %c0_13 = arith.constant 0 : index
    %7 = vector.load %arg6[%c0_12, %c0_13] : memref<128x128xbf16, #tpu.memory_space<vmem>>, vector<128x128xbf16>
    %cst_14 = arith.constant dense<0.000000e+00> : vector<256x128xf32>
    %8 = tpu.matmul %6, %7, %cst_14 {dimension_numbers = #tpu.dot_dimension_numbers<[1], [0], [0], [1], [0, 0, 1, 1], [], []>} : vector<256x128xbf16>, vector<128x128xbf16>, vector<256x128xf32> -> vector<256x128xf32>
    %c0_15 = arith.constant 0 : index
    %c0_16 = arith.constant 0 : index
    %9 = vector.load %arg7[%c0_15, %c0_16] : memref<1x128xf32, #tpu.memory_space<vmem>>, vector<1x128xf32>
    %10 = vector.broadcast %9 : vector<1x128xf32> to vector<256x128xf32>
    %11 = arith.addf %8, %10 : vector<256x128xf32>
    %cst_17 = arith.constant 0.000000e+00 : f32
    %12 = vector.broadcast %cst_17 : f32 to vector<256x128xf32>
    %13 = arith.maximumf %11, %12 : vector<256x128xf32>
    %14 = vector.shape_cast %13 : vector<256x128xf32> to vector<16x16x128xf32>
    %c0_18 = arith.constant 0 : index
    %c1 = arith.constant 1 : index
    %c1_19 = arith.constant 1 : index
    %c0_20 = arith.constant 0 : index
    %15 = vector.load %arg13[%c0_18, %c1, %c1_19, %c0_20] : memref<1x18x18x128xf32, #tpu.memory_space<vmem>>, vector<1x16x16x128xf32>
    %16 = vector.shape_cast %15 : vector<1x16x16x128xf32> to vector<16x16x128xf32>
    %17 = vector.shape_cast %14 : vector<16x16x128xf32> to vector<1x16x16x128xf32>
    tpu.vector_store %arg13[%c0_18, %c1, %c1_19, %c0_20], %17 {strides = array<i32>} : memref<1x18x18x128xf32, #tpu.memory_space<vmem>>, vector<1x16x16x128xf32>,
    %cst_21 = arith.constant 0.000000e+00 : f32
    %18 = vector.broadcast %cst_21 : f32 to vector<256x128xf32>
    %c0_22 = arith.constant 0 : index
    %c0_23 = arith.constant 0 : index
    %c0_24 = arith.constant 0 : index
    %c0_25 = arith.constant 0 : index
    %19 = vector.load %arg13[%c0_22, %c0_23, %c0_24, %c0_25] : memref<1x18x18x128xf32, #tpu.memory_space<vmem>>, vector<1x16x16x128xf32>
    %20 = vector.shape_cast %19 : vector<1x16x16x128xf32> to vector<16x16x128xf32>
    %21 = vector.shape_cast %20 : vector<16x16x128xf32> to vector<256x128xf32>
    %22 = arith.truncf %21 : vector<256x128xf32> to vector<256x128xbf16>
    %c0_26 = arith.constant 0 : index
    %c0_27 = arith.constant 0 : index
    %c0_28 = arith.constant 0 : index
    %23 = vector.load %arg2[%c0_26, %c0_27, %c0_28] : memref<9x128x128xbf16, #tpu.memory_space<vmem>>, vector<1x128x128xbf16>
    %24 = vector.shape_cast %23 : vector<1x128x128xbf16> to vector<128x128xbf16>
    %cst_29 = arith.constant dense<0.000000e+00> : vector<256x128xf32>
    %25 = tpu.matmul %22, %24, %cst_29 {dimension_numbers = #tpu.dot_dimension_numbers<[1], [0], [0], [1], [0, 0, 1, 1], [], []>} : vector<256x128xbf16>, vector<128x128xbf16>, vector<256x128xf32> -> vector<256x128xf32>
    %26 = arith.addf %18, %25 : vector<256x128xf32>
    %c0_30 = arith.constant 0 : index
    %c0_31 = arith.constant 0 : index
    %c1_32 = arith.constant 1 : index
    %c0_33 = arith.constant 0 : index
    %27 = vector.load %arg13[%c0_30, %c0_31, %c1_32, %c0_33] : memref<1x18x18x128xf32, #tpu.memory_space<vmem>>, vector<1x16x16x128xf32>
    %28 = vector.shape_cast %27 : vector<1x16x16x128xf32> to vector<16x16x128xf32>
    %29 = vector.shape_cast %28 : vector<16x16x128xf32> to vector<256x128xf32>
    %30 = arith.truncf %29 : vector<256x128xf32> to vector<256x128xbf16>
    %c1_34 = arith.constant 1 : index
    %c0_35 = arith.constant 0 : index
    %c0_36 = arith.constant 0 : index
    %31 = vector.load %arg2[%c1_34, %c0_35, %c0_36] : memref<9x128x128xbf16, #tpu.memory_space<vmem>>, vector<1x128x128xbf16>
    %32 = vector.shape_cast %31 : vector<1x128x128xbf16> to vector<128x128xbf16>
    %cst_37 = arith.constant dense<0.000000e+00> : vector<256x128xf32>
    %33 = tpu.matmul %30, %32, %cst_37 {dimension_numbers = #tpu.dot_dimension_numbers<[1], [0], [0], [1], [0, 0, 1, 1], [], []>} : vector<256x128xbf16>, vector<128x128xbf16>, vector<256x128xf32> -> vector<256x128xf32>
    %34 = arith.addf %26, %33 : vector<256x128xf32>
    %c0_38 = arith.constant 0 : index
    %c0_39 = arith.constant 0 : index
    %c2 = arith.constant 2 : index
    %c0_40 = arith.constant 0 : index
    %35 = vector.load %arg13[%c0_38, %c0_39, %c2, %c0_40] : memref<1x18x18x128xf32, #tpu.memory_space<vmem>>, vector<1x16x16x128xf32>
    %36 = vector.shape_cast %35 : vector<1x16x16x128xf32> to vector<16x16x128xf32>
    %37 = vector.shape_cast %36 : vector<16x16x128xf32> to vector<256x128xf32>
    %38 = arith.truncf %37 : vector<256x128xf32> to vector<256x128xbf16>
    %c2_41 = arith.constant 2 : index
    %c0_42 = arith.constant 0 : index
    %c0_43 = arith.constant 0 : index
    %39 = vector.load %arg2[%c2_41, %c0_42, %c0_43] : memref<9x128x128xbf16, #tpu.memory_space<vmem>>, vector<1x128x128xbf16>
    %40 = vector.shape_cast %39 : vector<1x128x128xbf16> to vector<128x128xbf16>
    %cst_44 = arith.constant dense<0.000000e+00> : vector<256x128xf32>
    %41 = tpu.matmul %38, %40, %cst_44 {dimension_numbers = #tpu.dot_dimension_numbers<[1], [0], [0], [1], [0, 0, 1, 1], [], []>} : vector<256x128xbf16>, vector<128x128xbf16>, vector<256x128xf32> -> vector<256x128xf32>
    %42 = arith.addf %34, %41 : vector<256x128xf32>
    %c0_45 = arith.constant 0 : index
    %c1_46 = arith.constant 1 : index
    %c0_47 = arith.constant 0 : index
    %c0_48 = arith.constant 0 : index
    %43 = vector.load %arg13[%c0_45, %c1_46, %c0_47, %c0_48] : memref<1x18x18x128xf32, #tpu.memory_space<vmem>>, vector<1x16x16x128xf32>
    %44 = vector.shape_cast %43 : vector<1x16x16x128xf32> to vector<16x16x128xf32>
    %45 = vector.shape_cast %44 : vector<16x16x128xf32> to vector<256x128xf32>
    %46 = arith.truncf %45 : vector<256x128xf32> to vector<256x128xbf16>
    %c3 = arith.constant 3 : index
    %c0_49 = arith.constant 0 : index
    %c0_50 = arith.constant 0 : index
    %47 = vector.load %arg2[%c3, %c0_49, %c0_50] : memref<9x128x128xbf16, #tpu.memory_space<vmem>>, vector<1x128x128xbf16>
    %48 = vector.shape_cast %47 : vector<1x128x128xbf16> to vector<128x128xbf16>
    %cst_51 = arith.constant dense<0.000000e+00> : vector<256x128xf32>
    %49 = tpu.matmul %46, %48, %cst_51 {dimension_numbers = #tpu.dot_dimension_numbers<[1], [0], [0], [1], [0, 0, 1, 1], [], []>} : vector<256x128xbf16>, vector<128x128xbf16>, vector<256x128xf32> -> vector<256x128xf32>
    %50 = arith.addf %42, %49 : vector<256x128xf32>
    %c0_52 = arith.constant 0 : index
    %c1_53 = arith.constant 1 : index
    %c1_54 = arith.constant 1 : index
    %c0_55 = arith.constant 0 : index
    %51 = vector.load %arg13[%c0_52, %c1_53, %c1_54, %c0_55] : memref<1x18x18x128xf32, #tpu.memory_space<vmem>>, vector<1x16x16x128xf32>
    %52 = vector.shape_cast %51 : vector<1x16x16x128xf32> to vector<16x16x128xf32>
    %53 = vector.shape_cast %52 : vector<16x16x128xf32> to vector<256x128xf32>
    %54 = arith.truncf %53 : vector<256x128xf32> to vector<256x128xbf16>
    %c4 = arith.constant 4 : index
    %c0_56 = arith.constant 0 : index
    %c0_57 = arith.constant 0 : index
    %55 = vector.load %arg2[%c4, %c0_56, %c0_57] : memref<9x128x128xbf16, #tpu.memory_space<vmem>>, vector<1x128x128xbf16>
    %56 = vector.shape_cast %55 : vector<1x128x128xbf16> to vector<128x128xbf16>
    %cst_58 = arith.constant dense<0.000000e+00> : vector<256x128xf32>
    %57 = tpu.matmul %54, %56, %cst_58 {dimension_numbers = #tpu.dot_dimension_numbers<[1], [0], [0], [1], [0, 0, 1, 1], [], []>} : vector<256x128xbf16>, vector<128x128xbf16>, vector<256x128xf32> -> vector<256x128xf32>
    %58 = arith.addf %50, %57 : vector<256x128xf32>
    %c0_59 = arith.constant 0 : index
    %c1_60 = arith.constant 1 : index
    %c2_61 = arith.constant 2 : index
    %c0_62 = arith.constant 0 : index
    %59 = vector.load %arg13[%c0_59, %c1_60, %c2_61, %c0_62] : memref<1x18x18x128xf32, #tpu.memory_space<vmem>>, vector<1x16x16x128xf32>
    %60 = vector.shape_cast %59 : vector<1x16x16x128xf32> to vector<16x16x128xf32>
    %61 = vector.shape_cast %60 : vector<16x16x128xf32> to vector<256x128xf32>
    %62 = arith.truncf %61 : vector<256x128xf32> to vector<256x128xbf16>
    %c5 = arith.constant 5 : index
    %c0_63 = arith.constant 0 : index
    %c0_64 = arith.constant 0 : index
    %63 = vector.load %arg2[%c5, %c0_63, %c0_64] : memref<9x128x128xbf16, #tpu.memory_space<vmem>>, vector<1x128x128xbf16>
    %64 = vector.shape_cast %63 : vector<1x128x128xbf16> to vector<128x128xbf16>
    %cst_65 = arith.constant dense<0.000000e+00> : vector<256x128xf32>
    %65 = tpu.matmul %62, %64, %cst_65 {dimension_numbers = #tpu.dot_dimension_numbers<[1], [0], [0], [1], [0, 0, 1, 1], [], []>} : vector<256x128xbf16>, vector<128x128xbf16>, vector<256x128xf32> -> vector<256x128xf32>
    %66 = arith.addf %58, %65 : vector<256x128xf32>
    %c0_66 = arith.constant 0 : index
    %c2_67 = arith.constant 2 : index
    %c0_68 = arith.constant 0 : index
    %c0_69 = arith.constant 0 : index
    %67 = vector.load %arg13[%c0_66, %c2_67, %c0_68, %c0_69] : memref<1x18x18x128xf32, #tpu.memory_space<vmem>>, vector<1x16x16x128xf32>
    %68 = vector.shape_cast %67 : vector<1x16x16x128xf32> to vector<16x16x128xf32>
    %69 = vector.shape_cast %68 : vector<16x16x128xf32> to vector<256x128xf32>
    %70 = arith.truncf %69 : vector<256x128xf32> to vector<256x128xbf16>
    %c6 = arith.constant 6 : index
    %c0_70 = arith.constant 0 : index
    %c0_71 = arith.constant 0 : index
    %71 = vector.load %arg2[%c6, %c0_70, %c0_71] : memref<9x128x128xbf16, #tpu.memory_space<vmem>>, vector<1x128x128xbf16>
    %72 = vector.shape_cast %71 : vector<1x128x128xbf16> to vector<128x128xbf16>
    %cst_72 = arith.constant dense<0.000000e+00> : vector<256x128xf32>
    %73 = tpu.matmul %70, %72, %cst_72 {dimension_numbers = #tpu.dot_dimension_numbers<[1], [0], [0], [1], [0, 0, 1, 1], [], []>} : vector<256x128xbf16>, vector<128x128xbf16>, vector<256x128xf32> -> vector<256x128xf32>
    %74 = arith.addf %66, %73 : vector<256x128xf32>
    %c0_73 = arith.constant 0 : index
    %c2_74 = arith.constant 2 : index
    %c1_75 = arith.constant 1 : index
    %c0_76 = arith.constant 0 : index
    %75 = vector.load %arg13[%c0_73, %c2_74, %c1_75, %c0_76] : memref<1x18x18x128xf32, #tpu.memory_space<vmem>>, vector<1x16x16x128xf32>
    %76 = vector.shape_cast %75 : vector<1x16x16x128xf32> to vector<16x16x128xf32>
    %77 = vector.shape_cast %76 : vector<16x16x128xf32> to vector<256x128xf32>
    %78 = arith.truncf %77 : vector<256x128xf32> to vector<256x128xbf16>
    %c7 = arith.constant 7 : index
    %c0_77 = arith.constant 0 : index
    %c0_78 = arith.constant 0 : index
    %79 = vector.load %arg2[%c7, %c0_77, %c0_78] : memref<9x128x128xbf16, #tpu.memory_space<vmem>>, vector<1x128x128xbf16>
    %80 = vector.shape_cast %79 : vector<1x128x128xbf16> to vector<128x128xbf16>
    %cst_79 = arith.constant dense<0.000000e+00> : vector<256x128xf32>
    %81 = tpu.matmul %78, %80, %cst_79 {dimension_numbers = #tpu.dot_dimension_numbers<[1], [0], [0], [1], [0, 0, 1, 1], [], []>} : vector<256x128xbf16>, vector<128x128xbf16>, vector<256x128xf32> -> vector<256x128xf32>
    %82 = arith.addf %74, %81 : vector<256x128xf32>
    %c0_80 = arith.constant 0 : index
    %c2_81 = arith.constant 2 : index
    %c2_82 = arith.constant 2 : index
    %c0_83 = arith.constant 0 : index
    %83 = vector.load %arg13[%c0_80, %c2_81, %c2_82, %c0_83] : memref<1x18x18x128xf32, #tpu.memory_space<vmem>>, vector<1x16x16x128xf32>
    %84 = vector.shape_cast %83 : vector<1x16x16x128xf32> to vector<16x16x128xf32>
    %85 = vector.shape_cast %84 : vector<16x16x128xf32> to vector<256x128xf32>
    %86 = arith.truncf %85 : vector<256x128xf32> to vector<256x128xbf16>
    %c8 = arith.constant 8 : index
    %c0_84 = arith.constant 0 : index
    %c0_85 = arith.constant 0 : index
    %87 = vector.load %arg2[%c8, %c0_84, %c0_85] : memref<9x128x128xbf16, #tpu.memory_space<vmem>>, vector<1x128x128xbf16>
    %88 = vector.shape_cast %87 : vector<1x128x128xbf16> to vector<128x128xbf16>
    %cst_86 = arith.constant dense<0.000000e+00> : vector<256x128xf32>
    %89 = tpu.matmul %86, %88, %cst_86 {dimension_numbers = #tpu.dot_dimension_numbers<[1], [0], [0], [1], [0, 0, 1, 1], [], []>} : vector<256x128xbf16>, vector<128x128xbf16>, vector<256x128xf32> -> vector<256x128xf32>
    %90 = arith.addf %82, %89 : vector<256x128xf32>
    %c0_87 = arith.constant 0 : index
    %c0_88 = arith.constant 0 : index
    %91 = vector.load %arg3[%c0_87, %c0_88] : memref<1x128xf32, #tpu.memory_space<vmem>>, vector<1x128xf32>
    %92 = vector.broadcast %91 : vector<1x128xf32> to vector<256x128xf32>
    %93 = arith.addf %90, %92 : vector<256x128xf32>
    %cst_89 = arith.constant 0.000000e+00 : f32
    %94 = vector.broadcast %cst_89 : f32 to vector<256x128xf32>
    %95 = arith.maximumf %93, %94 : vector<256x128xf32>
    %c0_90 = arith.constant 0 : index
    %c0_91 = arith.constant 0 : index
    %96 = vector.load %arg8[%c0_90, %c0_91] : memref<128x128xbf16, #tpu.memory_space<vmem>>, vector<128x128xbf16>
    %cst_92 = arith.constant dense<0.000000e+00> : vector<256x128xf32>
    %97 = tpu.matmul %6, %96, %cst_92 {dimension_numbers = #tpu.dot_dimension_numbers<[1], [0], [0], [1], [0, 0, 1, 1], [], []>} : vector<256x128xbf16>, vector<128x128xbf16>, vector<256x128xf32> -> vector<256x128xf32>
    %c0_93 = arith.constant 0 : index
    %c0_94 = arith.constant 0 : index
    %98 = vector.load %arg9[%c0_93, %c0_94] : memref<1x128xf32, #tpu.memory_space<vmem>>, vector<1x128xf32>
    %99 = vector.broadcast %98 : vector<1x128xf32> to vector<256x128xf32>
    %100 = arith.addf %97, %99 : vector<256x128xf32>
    %cst_95 = arith.constant 0.000000e+00 : f32
    %101 = vector.broadcast %cst_95 : f32 to vector<256x128xf32>
    %102 = arith.maximumf %100, %101 : vector<256x128xf32>
    %103 = arith.truncf %102 : vector<256x128xf32> to vector<256x128xbf16>
    %c0_96 = arith.constant 0 : index
    %c0_97 = arith.constant 0 : index
    %104 = vector.load %arg4[%c0_96, %c0_97] : memref<128x128xbf16, #tpu.memory_space<vmem>>, vector<128x128xbf16>
    %cst_98 = arith.constant dense<0.000000e+00> : vector<256x128xf32>
    %105 = tpu.matmul %103, %104, %cst_98 {dimension_numbers = #tpu.dot_dimension_numbers<[1], [0], [0], [1], [0, 0, 1, 1], [], []>} : vector<256x128xbf16>, vector<128x128xbf16>, vector<256x128xf32> -> vector<256x128xf32>
    %c0_99 = arith.constant 0 : index
    %c0_100 = arith.constant 0 : index
    %106 = vector.load %arg5[%c0_99, %c0_100] : memref<1x128xf32, #tpu.memory_space<vmem>>, vector<1x128xf32>
    %107 = vector.broadcast %106 : vector<1x128xf32> to vector<256x128xf32>
    %108 = arith.addf %105, %107 : vector<256x128xf32>
    %cst_101 = arith.constant 0.000000e+00 : f32
    %109 = vector.broadcast %cst_101 : f32 to vector<256x128xf32>
    %110 = arith.maximumf %108, %109 : vector<256x128xf32>
    %111 = arith.addf %95, %110 : vector<256x128xf32>
    %112 = vector.shape_cast %111 : vector<256x128xf32> to vector<16x16x128xf32>
    %c0_102 = arith.constant 0 : index
    %c1_103 = arith.constant 1 : index
    %c1_104 = arith.constant 1 : index
    %c0_105 = arith.constant 0 : index
    %113 = vector.load %arg14[%c0_102, %c1_103, %c1_104, %c0_105] : memref<1x18x18x128xf32, #tpu.memory_space<vmem>>, vector<1x16x16x128xf32>
    %114 = vector.shape_cast %113 : vector<1x16x16x128xf32> to vector<16x16x128xf32>
    %115 = vector.shape_cast %112 : vector<16x16x128xf32> to vector<1x16x16x128xf32>
    tpu.vector_store %arg14[%c0_102, %c1_103, %c1_104, %c0_105], %115 {strides = array<i32>} : memref<1x18x18x128xf32, #tpu.memory_space<vmem>>, vector<1x16x16x128xf32>,
    %c0_106 = arith.constant 0 : index
    %c0_107 = arith.constant 0 : index
    %c0_108 = arith.constant 0 : index
    %c0_109 = arith.constant 0 : index
    %116 = vector.load %arg14[%c0_106, %c0_107, %c0_108, %c0_109] : memref<1x18x18x128xf32, #tpu.memory_space<vmem>>, vector<1x16x16x128xf32>
    %117 = vector.shape_cast %116 : vector<1x16x16x128xf32> to vector<16x16x128xf32>
    %c0_110 = arith.constant 0 : index
    %c0_111 = arith.constant 0 : index
    %c1_112 = arith.constant 1 : index
    %c0_113 = arith.constant 0 : index
    %118 = vector.load %arg14[%c0_110, %c0_111, %c1_112, %c0_113] : memref<1x18x18x128xf32, #tpu.memory_space<vmem>>, vector<1x16x16x128xf32>
    %119 = vector.shape_cast %118 : vector<1x16x16x128xf32> to vector<16x16x128xf32>
    %120 = arith.maximumf %117, %119 : vector<16x16x128xf32>
    %c0_114 = arith.constant 0 : index
    %c0_115 = arith.constant 0 : index
    %c2_116 = arith.constant 2 : index
    %c0_117 = arith.constant 0 : index
    %121 = vector.load %arg14[%c0_114, %c0_115, %c2_116, %c0_117] : memref<1x18x18x128xf32, #tpu.memory_space<vmem>>, vector<1x16x16x128xf32>
    %122 = vector.shape_cast %121 : vector<1x16x16x128xf32> to vector<16x16x128xf32>
    %123 = arith.maximumf %120, %122 : vector<16x16x128xf32>
    %c0_118 = arith.constant 0 : index
    %c1_119 = arith.constant 1 : index
    %c0_120 = arith.constant 0 : index
    %c0_121 = arith.constant 0 : index
    %124 = vector.load %arg14[%c0_118, %c1_119, %c0_120, %c0_121] : memref<1x18x18x128xf32, #tpu.memory_space<vmem>>, vector<1x16x16x128xf32>
    %125 = vector.shape_cast %124 : vector<1x16x16x128xf32> to vector<16x16x128xf32>
    %126 = arith.maximumf %123, %125 : vector<16x16x128xf32>
    %c0_122 = arith.constant 0 : index
    %c1_123 = arith.constant 1 : index
    %c1_124 = arith.constant 1 : index
    %c0_125 = arith.constant 0 : index
    %127 = vector.load %arg14[%c0_122, %c1_123, %c1_124, %c0_125] : memref<1x18x18x128xf32, #tpu.memory_space<vmem>>, vector<1x16x16x128xf32>
    %128 = vector.shape_cast %127 : vector<1x16x16x128xf32> to vector<16x16x128xf32>
    %129 = arith.maximumf %126, %128 : vector<16x16x128xf32>
    %c0_126 = arith.constant 0 : index
    %c1_127 = arith.constant 1 : index
    %c2_128 = arith.constant 2 : index
    %c0_129 = arith.constant 0 : index
    %130 = vector.load %arg14[%c0_126, %c1_127, %c2_128, %c0_129] : memref<1x18x18x128xf32, #tpu.memory_space<vmem>>, vector<1x16x16x128xf32>
    %131 = vector.shape_cast %130 : vector<1x16x16x128xf32> to vector<16x16x128xf32>
    %132 = arith.maximumf %129, %131 : vector<16x16x128xf32>
    %c0_130 = arith.constant 0 : index
    %c2_131 = arith.constant 2 : index
    %c0_132 = arith.constant 0 : index
    %c0_133 = arith.constant 0 : index
    %133 = vector.load %arg14[%c0_130, %c2_131, %c0_132, %c0_133] : memref<1x18x18x128xf32, #tpu.memory_space<vmem>>, vector<1x16x16x128xf32>
    %134 = vector.shape_cast %133 : vector<1x16x16x128xf32> to vector<16x16x128xf32>
    %135 = arith.maximumf %132, %134 : vector<16x16x128xf32>
    %c0_134 = arith.constant 0 : index
    %c2_135 = arith.constant 2 : index
    %c1_136 = arith.constant 1 : index
    %c0_137 = arith.constant 0 : index
    %136 = vector.load %arg14[%c0_134, %c2_135, %c1_136, %c0_137] : memref<1x18x18x128xf32, #tpu.memory_space<vmem>>, vector<1x16x16x128xf32>
    %137 = vector.shape_cast %136 : vector<1x16x16x128xf32> to vector<16x16x128xf32>
    %138 = arith.maximumf %135, %137 : vector<16x16x128xf32>
    %c0_138 = arith.constant 0 : index
    %c2_139 = arith.constant 2 : index
    %c2_140 = arith.constant 2 : index
    %c0_141 = arith.constant 0 : index
    %139 = vector.load %arg14[%c0_138, %c2_139, %c2_140, %c0_141] : memref<1x18x18x128xf32, #tpu.memory_space<vmem>>, vector<1x16x16x128xf32>
    %140 = vector.shape_cast %139 : vector<1x16x16x128xf32> to vector<16x16x128xf32>
    %141 = arith.maximumf %138, %140 : vector<16x16x128xf32>
    %142 = vector.shape_cast %141 : vector<16x16x128xf32> to vector<256x128xf32>
    %c0_142 = arith.constant 0 : index
    %c0_143 = arith.constant 0 : index
    %143 = vector.load %arg10[%c0_142, %c0_143] : memref<128x128xbf16, #tpu.memory_space<vmem>>, vector<128x128xbf16>
    %cst_144 = arith.constant dense<0.000000e+00> : vector<256x128xf32>
    %144 = tpu.matmul %6, %143, %cst_144 {dimension_numbers = #tpu.dot_dimension_numbers<[1], [0], [0], [1], [0, 0, 1, 1], [], []>} : vector<256x128xbf16>, vector<128x128xbf16>, vector<256x128xf32> -> vector<256x128xf32>
    %c0_145 = arith.constant 0 : index
    %c0_146 = arith.constant 0 : index
    %145 = vector.load %arg11[%c0_145, %c0_146] : memref<1x128xf32, #tpu.memory_space<vmem>>, vector<1x128xf32>
    %146 = vector.broadcast %145 : vector<1x128xf32> to vector<256x128xf32>
    %147 = arith.addf %144, %146 : vector<256x128xf32>
    %cst_147 = arith.constant 0.000000e+00 : f32
    %148 = vector.broadcast %cst_147 : f32 to vector<256x128xf32>
    %149 = arith.maximumf %147, %148 : vector<256x128xf32>
    %150 = arith.addf %142, %149 : vector<256x128xf32>
    %151 = vector.shape_cast %150 : vector<256x128xf32> to vector<1x16x16x128xf32>
    %c0_148 = arith.constant 0 : index
    %c0_149 = arith.constant 0 : index
    %c0_150 = arith.constant 0 : index
    %c0_151 = arith.constant 0 : index
    %152 = vector.load %arg12[%c0_148, %c0_149, %c0_150, %c0_151] : memref<1x16x16x128xf32, #tpu.memory_space<vmem>>, vector<1x16x16x128xf32>
    tpu.vector_store %arg12[%c0_148, %c0_149, %c0_150, %c0_151], %151 {strides = array<i32>} : memref<1x16x16x128xf32, #tpu.memory_space<vmem>>, vector<1x16x16x128xf32>,
    return
  }
  func.func @transform_0(%arg0: i32) -> (i32, i32, i32, i32) {
    %c0_i32 = arith.constant 0 : i32
    %c0_i32_0 = arith.constant 0 : i32
    %c0_i32_1 = arith.constant 0 : i32
    %c0_i32_2 = arith.constant 0 : i32
    return %arg0, %c0_i32, %c0_i32_0, %c0_i32_1 : i32, i32, i32, i32
  }
  func.func @transform_1(%arg0: i32) -> (i32, i32, i32) {
    %c0_i32 = arith.constant 0 : i32
    %c0_i32_0 = arith.constant 0 : i32
    %c0_i32_1 = arith.constant 0 : i32
    %c0_i32_2 = arith.constant 0 : i32
    return %c0_i32, %c0_i32_0, %c0_i32_1 : i32, i32, i32
  }
  func.func @transform_2(%arg0: i32) -> (i32, i32) {
    %c0_i32 = arith.constant 0 : i32
    %c0_i32_0 = arith.constant 0 : i32
    %c0_i32_1 = arith.constant 0 : i32
    return %c0_i32, %c0_i32_0 : i32, i32
  }
  func.func @transform_3(%arg0: i32) -> (i32, i32) {
    %c0_i32 = arith.constant 0 : i32
    %c0_i32_0 = arith.constant 0 : i32
    %c0_i32_1 = arith.constant 0 : i32
    return %c0_i32, %c0_i32_0 : i32, i32
  }
  func.func @transform_4(%arg0: i32) -> (i32, i32) {
    %c0_i32 = arith.constant 0 : i32
    %c0_i32_0 = arith.constant 0 : i32
    %c0_i32_1 = arith.constant 0 : i32
    return %c0_i32, %c0_i32_0 : i32, i32
  }
  func.func @transform_5(%arg0: i32) -> (i32, i32) {
    %c0_i32 = arith.constant 0 : i32
    %c0_i32_0 = arith.constant 0 : i32
    %c0_i32_1 = arith.constant 0 : i32
    return %c0_i32, %c0_i32_0 : i32, i32
  }
  func.func @transform_6(%arg0: i32) -> (i32, i32) {
    %c0_i32 = arith.constant 0 : i32
    %c0_i32_0 = arith.constant 0 : i32
    %c0_i32_1 = arith.constant 0 : i32
    return %c0_i32, %c0_i32_0 : i32, i32
  }
  func.func @transform_7(%arg0: i32) -> (i32, i32) {
    %c0_i32 = arith.constant 0 : i32
    %c0_i32_0 = arith.constant 0 : i32
    %c0_i32_1 = arith.constant 0 : i32
    return %c0_i32, %c0_i32_0 : i32, i32
  }
  func.func @transform_8(%arg0: i32) -> (i32, i32) {
    %c0_i32 = arith.constant 0 : i32
    %c0_i32_0 = arith.constant 0 : i32
    %c0_i32_1 = arith.constant 0 : i32
    return %c0_i32, %c0_i32_0 : i32, i32
  }
  func.func @transform_9(%arg0: i32) -> (i32, i32) {
    %c0_i32 = arith.constant 0 : i32
    %c0_i32_0 = arith.constant 0 : i32
    %c0_i32_1 = arith.constant 0 : i32
    return %c0_i32, %c0_i32_0 : i32, i32
  }
  func.func @transform_10(%arg0: i32) -> (i32, i32) {
    %c0_i32 = arith.constant 0 : i32
    %c0_i32_0 = arith.constant 0 : i32
    %c0_i32_1 = arith.constant 0 : i32
    return %c0_i32, %c0_i32_0 : i32, i32
  }
  func.func @transform_11(%arg0: i32) -> (i32, i32, i32, i32) {
    %c0_i32 = arith.constant 0 : i32
    %c0_i32_0 = arith.constant 0 : i32
    %c0_i32_1 = arith.constant 0 : i32
    %c0_i32_2 = arith.constant 0 : i32
    return %arg0, %c0_i32, %c0_i32_0, %c0_i32_1 : i32, i32, i32, i32
  }
}

</mosaic_0001>

<llo_original>
// kernel: tpu_custom_call.1
$region0: #{tpu_custom_call.1}
  #allocation0 [shape = 'u32[]', space=smem, size = 0x4, offset = 0x4, fixed_abs, tag = 'smem constant byte address 0x4 - core index']
  #allocation1 [shape = 'u32[72,128]{1,0:T(1,128)}', space=vmem, size = 0x9000, scoped, tag = 'internal scratch']
  #allocation2 [shape = 'f32[1,18,18,128]{3,2,1,0:T(8,128)}', space=vmem, size = 0x36000, scoped, tag = 'scratch operand']
  #allocation3 [shape = 'f32[1,18,18,128]{3,2,1,0:T(8,128)}', space=vmem, size = 0x36000, scoped, tag = 'scratch operand']
  %s0 = inlined_call_operand.hbm [shape: f32[2,16,16,128], index: 0, kind: input, shape index: {}]
  %s1 = inlined_call_operand.hbm [shape: bf16[9,128,128], index: 1, kind: input, shape index: {}]
  %s2 = inlined_call_operand.vmem [shape: f32[1,128], index: 2, kind: input, shape index: {}]
  %s3 = inlined_call_operand.hbm [shape: bf16[128,128], index: 3, kind: input, shape index: {}]
  %s4 = inlined_call_operand.vmem [shape: f32[1,128], index: 4, kind: input, shape index: {}]
  %s5 = inlined_call_operand.hbm [shape: bf16[128,128], index: 5, kind: input, shape index: {}]
  %s6 = inlined_call_operand.vmem [shape: f32[1,128], index: 6, kind: input, shape index: {}]
  %s7 = inlined_call_operand.hbm [shape: bf16[128,128], index: 7, kind: input, shape index: {}]
  %s8 = inlined_call_operand.vmem [shape: f32[1,128], index: 8, kind: input, shape index: {}]
  %s9 = inlined_call_operand.hbm [shape: bf16[128,128], index: 9, kind: input, shape index: {}]
  %s10 = inlined_call_operand.vmem [shape: f32[1,128], index: 10, kind: input, shape index: {}]
  %s11 = inlined_call_operand.hbm [shape: f32[2,16,16,128], index: 11, kind: output, shape index: {}]
  %s12 = sld [smem:[#allocation0]]
  $region101: #{tpu_custom_call.1} parent=0
    _
  %s14 = ssub.s32 1, %s12
  %s15 = scalar_select 0, %s14, %s12
  $region1: #{tpu_custom_call.1} parent=0
    #allocation4 [shape = 'u8[262144]{0}', space=vmem, size = 0x40000, scoped, tag = 'input window, operand 0']
    #allocation5 [shape = 's32[2]{0}', space=sflag, size = 0x8, scoped, tag = 'scoped memory for tpu_custom_call.1']
    #allocation6 [shape = 's32[2]{0}', space=sflag, size = 0x8, scoped, tag = 'scoped memory for tpu_custom_call.1']
    #allocation7 [shape = 'u8[294912]{0}', space=vmem, size = 0x48000, scoped, tag = 'input window, operand 1, single buffered']
    #allocation8 [shape = 's32[1]{0}', space=sflag, size = 0x4, scoped, tag = 'scoped memory for tpu_custom_call.1']
    #allocation9 [shape = 'u8[32768]{0}', space=vmem, size = 0x8000, scoped, tag = 'input window, operand 3, single buffered']
    #allocation10 [shape = 'u8[32768]{0}', space=vmem, size = 0x8000, scoped, tag = 'input window, operand 5, single buffered']
    #allocation11 [shape = 's32[1]{0}', space=sflag, size = 0x4, scoped, tag = 'scoped memory for tpu_custom_call.1']
    #allocation12 [shape = 'u8[32768]{0}', space=vmem, size = 0x8000, scoped, tag = 'input window, operand 7, single buffered']
    #allocation13 [shape = 'u8[32768]{0}', space=vmem, size = 0x8000, scoped, tag = 'input window, operand 9, single buffered']
    #allocation14 [shape = 's32[1]{0}', space=sflag, size = 0x4, scoped, tag = 'scoped memory for tpu_custom_call.1']
    #allocation15 [shape = 'u8[262144]{0}', space=vmem, size = 0x40000, scoped, tag = 'output window, operand 0']
    %16 = vsyncpa [#allocation5], 0
    %s17 = scalar_lea.sflag [#allocation5], 1
    %18 = vsyncpa %s17, 0
    %19 = vsyncpa [#allocation8], 0
    %20 = vsyncpa [#allocation11], 0
    %21 = vsyncpa [#allocation14], 0
    %22 = vsyncpa [#allocation6], 0
    %s23 = scalar_lea.sflag [#allocation6], 1
    %24 = vsyncpa %s23, 0
    loop: start=0, step=1, limit=4
    $region2: #{tpu_custom_call.1} parent=1 // loop_pre_header
      _
    $region3: #{tpu_custom_call.1} parent=1 // loop_header
      %s26 = sphi 0, %s30
      %p27 = scmp.ge.s32.totalorder %s26, 4
      %s36 = sphi 0, %s38
      %s39 = sphi 0, %s36
      %s40 = sphi 0, %s39
      %s56 = sphi 0, %s40
      %s60 = sphi 0, %s60
      %s62 = sphi 0, %s60
      %s63 = sphi 0, %s62
      %s77 = sphi 0, %s63
      %s81 = sphi 0, %s81
      %s83 = sphi 0, %s81
      %s84 = sphi 0, %s83
      %s98 = sphi 0, %s84
      %s102 = sphi 0, %s102
      %s104 = sphi 0, %s102
      %s105 = sphi 0, %s104
      %s119 = sphi 0, %s105
      %s123 = sphi 0, %s123
      %s125 = sphi 0, %s123
      %s126 = sphi 0, %s125
      %s140 = sphi 0, %s126
      %s144 = sphi 0, %s144
      %s146 = sphi 0, %s144
      %s147 = sphi 0, %s146
      %s161 = sphi 0, %s147
      %s165 = sphi 0, %s165
      %s167 = sphi 0, %s165
      %s168 = sphi 0, %s167
      %s182 = sphi 0, %s168
      %s186 = sphi 0, %s186
      %s188 = sphi 0, %s186
      %s189 = sphi 0, %s188
      %s203 = sphi 0, %s189
      %s207 = sphi 0, %s207
      %s209 = sphi 0, %s207
      %s210 = sphi 0, %s209
      %s224 = sphi 0, %s210
      %s228 = sphi 0, %s228
      %s230 = sphi 0, %s228
      %s231 = sphi 0, %s230
      %s245 = sphi 0, %s231
      %s249 = sphi 0, %s249
      %s251 = sphi 0, %s249
      %s252 = sphi 0, %s251
      %s266 = sphi 0, %s252
      %s272 = sphi 0, %s274
      %s275 = sphi 0, %s272
      %s276 = sphi 0, %s275
      %s292 = sphi 0, %s276
    $region4: #{tpu_custom_call.1} parent=1 // loop_header_branch
      %29 = sbr.rel (%p27) target = $region8
    $region5: #{tpu_custom_call.1} parent=1 // loop_body
      %s31 = ssub.s32 %s26, 1
      %s32 = ssub.s32 %s26, 2
      %s33 = sadd.s32 %s26, 1
      %s34 = ssub.s32 %s26, %s33
      %p35 = scmp.eq.s32.totalorder %s34, 0
      %s37 = sadd.s32 %s36, 1
      %s38 = scalar_select %p35, %s36, %s37
      %p41 = pneg %p35
      %p42 = scmp.eq.s32.totalorder %s26, 1
      %p43 = por %p41, %p42
      %p44 = scmp.ne.s32.totalorder %s36, %s39
      %p45 = scmp.eq.s32.totalorder %s26, 0
      %p46 = por %p44, %p45
      %p47 = scmp.ne.s32.totalorder %s36, %s39
      %p48 = scmp.eq.s32.totalorder %s31, 1
      %p49 = por %p47, %p48
      %p50 = scmp.ne.s32.totalorder %s39, %s40
      %p51 = scmp.eq.s32.totalorder %s31, 0
      %p52 = por %p50, %p51
      %p53 = scmp.ne.s32.totalorder %s39, %s40
      %p54 = scmp.eq.s32.totalorder %s32, 1
      %p55 = por %p53, %p54
      %p57 = scmp.ne.s32.totalorder %s40, %s56
      %p58 = scmp.eq.s32.totalorder %s32, 0
      %p59 = por %p57, %p58
      %s61 = sadd.s32 %s60, 1
      %p64 = scmp.eq.s32.totalorder %s26, 1
      %p65 = scmp.ne.s32.totalorder %s60, %s62
      %p66 = scmp.eq.s32.totalorder %s26, 0
      %p67 = por %p65, %p66
      %p68 = scmp.ne.s32.totalorder %s60, %s62
      %p69 = scmp.eq.s32.totalorder %s31, 1
      %p70 = por %p68, %p69
      %p71 = scmp.ne.s32.totalorder %s62, %s63
      %p72 = scmp.eq.s32.totalorder %s31, 0
      %p73 = por %p71, %p72
      %p74 = scmp.ne.s32.totalorder %s62, %s63
      %p75 = scmp.eq.s32.totalorder %s32, 1
      %p76 = por %p74, %p75
      %p78 = scmp.ne.s32.totalorder %s63, %s77
      %p79 = scmp.eq.s32.totalorder %s32, 0
      %p80 = por %p78, %p79
      %s82 = sadd.s32 %s81, 1
      %p85 = scmp.eq.s32.totalorder %s26, 1
      %p86 = scmp.ne.s32.totalorder %s81, %s83
      %p87 = scmp.eq.s32.totalorder %s26, 0
      %p88 = por %p86, %p87
      %p89 = scmp.ne.s32.totalorder %s81, %s83
      %p90 = scmp.eq.s32.totalorder %s31, 1
      %p91 = por %p89, %p90
      %p92 = scmp.ne.s32.totalorder %s83, %s84
      %p93 = scmp.eq.s32.totalorder %s31, 0
      %p94 = por %p92, %p93
      %p95 = scmp.ne.s32.totalorder %s83, %s84
      %p96 = scmp.eq.s32.totalorder %s32, 1
      %p97 = por %p95, %p96
      %p99 = scmp.ne.s32.totalorder %s84, %s98
      %p100 = scmp.eq.s32.totalorder %s32, 0
      %p101 = por %p99, %p100
      %s103 = sadd.s32 %s102, 1
      %p106 = scmp.eq.s32.totalorder %s26, 1
      %p107 = scmp.ne.s32.totalorder %s102, %s104
      %p108 = scmp.eq.s32.totalorder %s26, 0
      %p109 = por %p107, %p108
      %p110 = scmp.ne.s32.totalorder %s102, %s104
      %p111 = scmp.eq.s32.totalorder %s31, 1
      %p112 = por %p110, %p111
      %p113 = scmp.ne.s32.totalorder %s104, %s105
      %p114 = scmp.eq.s32.totalorder %s31, 0
      %p115 = por %p113, %p114
      %p116 = scmp.ne.s32.totalorder %s104, %s105
      %p117 = scmp.eq.s32.totalorder %s32, 1
      %p118 = por %p116, %p117
      %p120 = scmp.ne.s32.totalorder %s105, %s119
      %p121 = scmp.eq.s32.totalorder %s32, 0
      %p122 = por %p120, %p121
      %s124 = sadd.s32 %s123, 1
      %p127 = scmp.eq.s32.totalorder %s26, 1
      %p128 = scmp.ne.s32.totalorder %s123, %s125
      %p129 = scmp.eq.s32.totalorder %s26, 0
      %p130 = por %p128, %p129
      %p131 = scmp.ne.s32.totalorder %s123, %s125
      %p132 = scmp.eq.s32.totalorder %s31, 1
      %p133 = por %p131, %p132
      %p134 = scmp.ne.s32.totalorder %s125, %s126
      %p135 = scmp.eq.s32.totalorder %s31, 0
      %p136 = por %p134, %p135
      %p137 = scmp.ne.s32.totalorder %s125, %s126
      %p138 = scmp.eq.s32.totalorder %s32, 1
      %p139 = por %p137, %p138
      %p141 = scmp.ne.s32.totalorder %s126, %s140
      %p142 = scmp.eq.s32.totalorder %s32, 0
      %p143 = por %p141, %p142
      %s145 = sadd.s32 %s144, 1
      %p148 = scmp.eq.s32.totalorder %s26, 1
      %p149 = scmp.ne.s32.totalorder %s144, %s146
      %p150 = scmp.eq.s32.totalorder %s26, 0
      %p151 = por %p149, %p150
      %p152 = scmp.ne.s32.totalorder %s144, %s146
      %p153 = scmp.eq.s32.totalorder %s31, 1
      %p154 = por %p152, %p153
      %p155 = scmp.ne.s32.totalorder %s146, %s147
      %p156 = scmp.eq.s32.totalorder %s31, 0
      %p157 = por %p155, %p156
      %p158 = scmp.ne.s32.totalorder %s146, %s147
      %p159 = scmp.eq.s32.totalorder %s32, 1
      %p160 = por %p158, %p159
      %p162 = scmp.ne.s32.totalorder %s147, %s161
      %p163 = scmp.eq.s32.totalorder %s32, 0
      %p164 = por %p162, %p163
      %s166 = sadd.s32 %s165, 1
      %p169 = scmp.eq.s32.totalorder %s26, 1
      %p170 = scmp.ne.s32.totalorder %s165, %s167
      %p171 = scmp.eq.s32.totalorder %s26, 0
      %p172 = por %p170, %p171
      %p173 = scmp.ne.s32.totalorder %s165, %s167
      %p174 = scmp.eq.s32.totalorder %s31, 1
      %p175 = por %p173, %p174
      %p176 = scmp.ne.s32.totalorder %s167, %s168
      %p177 = scmp.eq.s32.totalorder %s31, 0
      %p178 = por %p176, %p177
      %p179 = scmp.ne.s32.totalorder %s167, %s168
      %p180 = scmp.eq.s32.totalorder %s32, 1
      %p181 = por %p179, %p180
      %p183 = scmp.ne.s32.totalorder %s168, %s182
      %p184 = scmp.eq.s32.totalorder %s32, 0
      %p185 = por %p183, %p184
      %s187 = sadd.s32 %s186, 1
      %p190 = scmp.eq.s32.totalorder %s26, 1
      %p191 = scmp.ne.s32.totalorder %s186, %s188
      %p192 = scmp.eq.s32.totalorder %s26, 0
      %p193 = por %p191, %p192
      %p194 = scmp.ne.s32.totalorder %s186, %s188
      %p195 = scmp.eq.s32.totalorder %s31, 1
      %p196 = por %p194, %p195
      %p197 = scmp.ne.s32.totalorder %s188, %s189
      %p198 = scmp.eq.s32.totalorder %s31, 0
      %p199 = por %p197, %p198
      %p200 = scmp.ne.s32.totalorder %s188, %s189
      %p201 = scmp.eq.s32.totalorder %s32, 1
      %p202 = por %p200, %p201
      %p204 = scmp.ne.s32.totalorder %s189, %s203
      %p205 = scmp.eq.s32.totalorder %s32, 0
      %p206 = por %p204, %p205
      %s208 = sadd.s32 %s207, 1
      %p211 = scmp.eq.s32.totalorder %s26, 1
      %p212 = scmp.ne.s32.totalorder %s207, %s209
      %p213 = scmp.eq.s32.totalorder %s26, 0
      %p214 = por %p212, %p213
      %p215 = scmp.ne.s32.totalorder %s207, %s209
      %p216 = scmp.eq.s32.totalorder %s31, 1
      %p217 = por %p215, %p216
      %p218 = scmp.ne.s32.totalorder %s209, %s210
      %p219 = scmp.eq.s32.totalorder %s31, 0
      %p220 = por %p218, %p219
      %p221 = scmp.ne.s32.totalorder %s209, %s210
      %p222 = scmp.eq.s32.totalorder %s32, 1
      %p223 = por %p221, %p222
      %p225 = scmp.ne.s32.totalorder %s210, %s224
      %p226 = scmp.eq.s32.totalorder %s32, 0
      %p227 = por %p225, %p226
      %s229 = sadd.s32 %s228, 1
      %p232 = scmp.eq.s32.totalorder %s26, 1
      %p233 = scmp.ne.s32.totalorder %s228, %s230
      %p234 = scmp.eq.s32.totalorder %s26, 0
      %p235 = por %p233, %p234
      %p236 = scmp.ne.s32.totalorder %s228, %s230
      %p237 = scmp.eq.s32.totalorder %s31, 1
      %p238 = por %p236, %p237
      %p239 = scmp.ne.s32.totalorder %s230, %s231
      %p240 = scmp.eq.s32.totalorder %s31, 0
      %p241 = por %p239, %p240
      %p242 = scmp.ne.s32.totalorder %s230, %s231
      %p243 = scmp.eq.s32.totalorder %s32, 1
      %p244 = por %p242, %p243
      %p246 = scmp.ne.s32.totalorder %s231, %s245
      %p247 = scmp.eq.s32.totalorder %s32, 0
      %p248 = por %p246, %p247
      %s250 = sadd.s32 %s249, 1
      %p253 = scmp.eq.s32.totalorder %s26, 1
      %p254 = scmp.ne.s32.totalorder %s249, %s251
      %p255 = scmp.eq.s32.totalorder %s26, 0
      %p256 = por %p254, %p255
      %p257 = scmp.ne.s32.totalorder %s249, %s251
      %p258 = scmp.eq.s32.totalorder %s31, 1
      %p259 = por %p257, %p258
      %p260 = scmp.ne.s32.totalorder %s251, %s252
      %p261 = scmp.eq.s32.totalorder %s31, 0
      %p262 = por %p260, %p261
      %p263 = scmp.ne.s32.totalorder %s251, %s252
      %p264 = scmp.eq.s32.totalorder %s32, 1
      %p265 = por %p263, %p264
      %p267 = scmp.ne.s32.totalorder %s252, %s266
      %p268 = scmp.eq.s32.totalorder %s32, 0
      %p269 = por %p267, %p268
      %s270 = ssub.s32 %s26, %s33
      %p271 = scmp.eq.s32.totalorder %s270, 0
      %s273 = sadd.s32 %s272, 1
      %s274 = scalar_select %p271, %s272, %s273
      %p277 = pneg %p271
      %p278 = scmp.eq.s32.totalorder %s26, 1
      %p279 = por %p277, %p278
      %p280 = scmp.ne.s32.totalorder %s272, %s275
      %p281 = scmp.eq.s32.totalorder %s26, 0
      %p282 = por %p280, %p281
      %p283 = scmp.ne.s32.totalorder %s272, %s275
      %p284 = scmp.eq.s32.totalorder %s31, 1
      %p285 = por %p283, %p284
      %p286 = scmp.ne.s32.totalorder %s275, %s276
      %p287 = scmp.eq.s32.totalorder %s31, 0
      %p288 = por %p286, %p287
      %p289 = scmp.ne.s32.totalorder %s275, %s276
      %p290 = scmp.eq.s32.totalorder %s32, 1
      %p291 = por %p289, %p290
      %p293 = scmp.ne.s32.totalorder %s276, %s292
      %p294 = scmp.eq.s32.totalorder %s32, 0
      %p295 = por %p293, %p294
      %p296 = scmp.le.s32.totalorder 1, %s26
      %p297 = scmp.lt.s32.totalorder %s26, 3
      %p298 = pnand %p296, %p297
      %p299 = pneg %p298
      // Predicated region
      $region9: #{tpu_custom_call.1} parent=5 // pred_check
        _
      $region10: #{tpu_custom_call.1} parent=5 // pred_check_branch
        %301 = sbr.rel (%p298) target = $region12
      $region11: #{tpu_custom_call.1} parent=5 // pred_region
        %s302 = ssub.s32 %s26, 1
        // Predicated region
        $region13: #{tpu_custom_call.1} parent=11 // pred_check
          %p303 = pneg %p73
        $region14: #{tpu_custom_call.1} parent=11 // pred_check_branch
          %305 = sbr.rel (%p303) target = $region16
        $region15: #{tpu_custom_call.1} parent=11 // pred_region
          %307 = vsyncadd [#allocation8], 0
          %s308 = sshll.u32 %s1, 4
          %s309 = int_to_ptr.hbm [resolvable:$true] %s308
          %s310 = sshll.u32 [#allocation7], 4
          %s311 = int_to_ptr.vmem [resolvable:$true] %s310
          %316 = dma.hbm_to_vmem [thread:$0]  %s309, 9216, %s311, [#allocation8], 64, 64, 4
        $region16: #{tpu_custom_call.1} parent=11 // pred_fallthru
          _
        // Predicated region
        $region17: #{tpu_custom_call.1} parent=11 // pred_check
          %p317 = pneg %p94
        $region18: #{tpu_custom_call.1} parent=11 // pred_check_branch
          %319 = sbr.rel (%p317) target = $region20
        $region19: #{tpu_custom_call.1} parent=11 // pred_region
          _
        $region20: #{tpu_custom_call.1} parent=11 // pred_fallthru
          _
        // Predicated region
        $region21: #{tpu_custom_call.1} parent=11 // pred_check
          %p320 = pneg %p115
        $region22: #{tpu_custom_call.1} parent=11 // pred_check_branch
          %322 = sbr.rel (%p320) target = $region24
        $region23: #{tpu_custom_call.1} parent=11 // pred_region
          %324 = vsyncadd [#allocation8], 0
          %s325 = sshll.u32 %s3, 4
          %s326 = int_to_ptr.hbm [resolvable:$true] %s325
          %s327 = sshll.u32 [#allocation9], 4
          %s328 = int_to_ptr.vmem [resolvable:$true] %s327
          %333 = dma.hbm_to_vmem [thread:$0]  %s326, 1024, %s328, [#allocation8], 64, 64, 4
        $region24: #{tpu_custom_call.1} parent=11 // pred_fallthru
          _
        // Predicated region
        $region25: #{tpu_custom_call.1} parent=11 // pred_check
          %p334 = pneg %p136
        $region26: #{tpu_custom_call.1} parent=11 // pred_check_branch
          %336 = sbr.rel (%p334) target = $region28
        $region27: #{tpu_custom_call.1} parent=11 // pred_region
          _
        $region28: #{tpu_custom_call.1} parent=11 // pred_fallthru
          _
        // Predicated region
        $region29: #{tpu_custom_call.1} parent=11 // pred_check
          %p337 = pneg %p157
        $region30: #{tpu_custom_call.1} parent=11 // pred_check_branch
          %339 = sbr.rel (%p337) target = $region32
        $region31: #{tpu_custom_call.1} parent=11 // pred_region
          %341 = vsyncadd [#allocation11], 0
          %s342 = sshll.u32 %s5, 4
          %s343 = int_to_ptr.hbm [resolvable:$true] %s342
          %s344 = sshll.u32 [#allocation10], 4
          %s345 = int_to_ptr.vmem [resolvable:$true] %s344
          %350 = dma.hbm_to_vmem [thread:$0]  %s343, 1024, %s345, [#allocation11], 64, 64, 4
        $region32: #{tpu_custom_call.1} parent=11 // pred_fallthru
          _
        // Predicated region
        $region33: #{tpu_custom_call.1} parent=11 // pred_check
          %p351 = pneg %p178
        $region34: #{tpu_custom_call.1} parent=11 // pred_check_branch
          %353 = sbr.rel (%p351) target = $region36
        $region35: #{tpu_custom_call.1} parent=11 // pred_region
          _
        $region36: #{tpu_custom_call.1} parent=11 // pred_fallthru
          _
        // Predicated region
        $region37: #{tpu_custom_call.1} parent=11 // pred_check
          %p354 = pneg %p199
        $region38: #{tpu_custom_call.1} parent=11 // pred_check_branch
          %356 = sbr.rel (%p354) target = $region40
        $region39: #{tpu_custom_call.1} parent=11 // pred_region
          %358 = vsyncadd [#allocation11], 0
          %s359 = sshll.u32 %s7, 4
          %s360 = int_to_ptr.hbm [resolvable:$true] %s359
          %s361 = sshll.u32 [#allocation12], 4
          %s362 = int_to_ptr.vmem [resolvable:$true] %s361
          %367 = dma.hbm_to_vmem [thread:$0]  %s360, 1024, %s362, [#allocation11], 64, 64, 4
        $region40: #{tpu_custom_call.1} parent=11 // pred_fallthru
          _
        // Predicated region
        $region41: #{tpu_custom_call.1} parent=11 // pred_check
          %p368 = pneg %p220
        $region42: #{tpu_custom_call.1} parent=11 // pred_check_branch
          %370 = sbr.rel (%p368) target = $region44
        $region43: #{tpu_custom_call.1} parent=11 // pred_region
          _
        $region44: #{tpu_custom_call.1} parent=11 // pred_fallthru
          _
        // Predicated region
        $region45: #{tpu_custom_call.1} parent=11 // pred_check
          %p371 = pneg %p241
        $region46: #{tpu_custom_call.1} parent=11 // pred_check_branch
          %373 = sbr.rel (%p371) target = $region48
        $region47: #{tpu_custom_call.1} parent=11 // pred_region
          %375 = vsyncadd [#allocation14], 0
          %s376 = sshll.u32 %s9, 4
          %s377 = int_to_ptr.hbm [resolvable:$true] %s376
          %s378 = sshll.u32 [#allocation13], 4
          %s379 = int_to_ptr.vmem [resolvable:$true] %s378
          %384 = dma.hbm_to_vmem [thread:$0]  %s377, 1024, %s379, [#allocation14], 64, 64, 4
        $region48: #{tpu_custom_call.1} parent=11 // pred_fallthru
          _
        // Predicated region
        $region49: #{tpu_custom_call.1} parent=11 // pred_check
          %p385 = pneg %p262
        $region50: #{tpu_custom_call.1} parent=11 // pred_check_branch
          %387 = sbr.rel (%p385) target = $region52
        $region51: #{tpu_custom_call.1} parent=11 // pred_region
          _
        $region52: #{tpu_custom_call.1} parent=11 // pred_fallthru
          _
      $region12: #{tpu_custom_call.1} parent=5 // pred_fallthru
        _
      %p388 = scmp.lt.s32.totalorder %s26, 2
      // Predicated region
      $region53: #{tpu_custom_call.1} parent=5 // pred_check
        %p389 = pneg %p388
      $region54: #{tpu_custom_call.1} parent=5 // pred_check_branch
        %391 = sbr.rel (%p389) target = $region56
      $region55: #{tpu_custom_call.1} parent=5 // pred_region
        // Predicated region
        $region57: #{tpu_custom_call.1} parent=55 // pred_check
          %p392 = pneg %p46
        $region58: #{tpu_custom_call.1} parent=55 // pred_check_branch
          %394 = sbr.rel (%p392) target = $region60
        $region59: #{tpu_custom_call.1} parent=55 // pred_region
          %s395 = sand.u32 %s36, 1
          %s396 = scalar_lea.sflag [#allocation5], %s395
          %s397 = sand.u32 %s36, 1
          %s398 = smul.addr %s397, 256
          %s399 = scalar_lea.vmem [#allocation4], %s398
          %401 = vsyncadd %s396, 0
          %s402 = smul.addr %s26, 32
          %s403 = smul.addr %s402, 8
          %s404 = scalar_lea.hbm %s0, %s403
          %s405 = sshll.u32 %s404, 4
          %s406 = int_to_ptr.hbm [resolvable:$true] %s405
          %s407 = sshll.u32 %s399, 4
          %s408 = int_to_ptr.vmem [resolvable:$true] %s407
          %413 = dma.hbm_to_vmem [thread:$0]  %s406, 4096, %s408, %s396, 128, 128, 8
        $region60: #{tpu_custom_call.1} parent=55 // pred_fallthru
          _
      $region56: #{tpu_custom_call.1} parent=5 // pred_fallthru
        _
      %p414 = scmp.le.s32.totalorder 1, %s26
      %p415 = scmp.lt.s32.totalorder %s26, 3
      %p416 = pnand %p414, %p415
      %p417 = pneg %p416
      // Predicated region
      $region61: #{tpu_custom_call.1} parent=5 // pred_check
        _
      $region62: #{tpu_custom_call.1} parent=5 // pred_check_branch
        %419 = sbr.rel (%p416) target = $region64
      $region63: #{tpu_custom_call.1} parent=5 // pred_region
        %s420 = ssub.s32 %s26, 1
        %s421 = sand.u32 %s39, 1
        %s422 = scalar_lea.sflag [#allocation5], %s421
        %s423 = sand.u32 %s39, 1
        %s424 = smul.addr %s423, 256
        %s425 = scalar_lea.vmem [#allocation4], %s424
        // Predicated region
        $region65: #{tpu_custom_call.1} parent=63 // pred_check
          %p426 = pneg %p52
        $region66: #{tpu_custom_call.1} parent=63 // pred_check_branch
          %428 = sbr.rel (%p426) target = $region68
        $region67: #{tpu_custom_call.1} parent=63 // pred_region
          %430 = dma.done %s422, 4096
        $region68: #{tpu_custom_call.1} parent=63 // pred_fallthru
          _
        // Predicated region
        $region69: #{tpu_custom_call.1} parent=63 // pred_check
          %p431 = pneg %p73
        $region70: #{tpu_custom_call.1} parent=63 // pred_check_branch
          %433 = sbr.rel (%p431) target = $region72
        $region71: #{tpu_custom_call.1} parent=63 // pred_region
          %435 = dma.done [#allocation8], 9216
        $region72: #{tpu_custom_call.1} parent=63 // pred_fallthru
          _
        // Predicated region
        $region73: #{tpu_custom_call.1} parent=63 // pred_check
          %p436 = pneg %p115
        $region74: #{tpu_custom_call.1} parent=63 // pred_check_branch
          %438 = sbr.rel (%p436) target = $region76
        $region75: #{tpu_custom_call.1} parent=63 // pred_region
          %440 = dma.done [#allocation8], 1024
        $region76: #{tpu_custom_call.1} parent=63 // pred_fallthru
          _
        // Predicated region
        $region77: #{tpu_custom_call.1} parent=63 // pred_check
          %p441 = pneg %p157
        $region78: #{tpu_custom_call.1} parent=63 // pred_check_branch
          %443 = sbr.rel (%p441) target = $region80
        $region79: #{tpu_custom_call.1} parent=63 // pred_region
          %445 = dma.done [#allocation11], 1024
        $region80: #{tpu_custom_call.1} parent=63 // pred_fallthru
          _
        // Predicated region
        $region81: #{tpu_custom_call.1} parent=63 // pred_check
          %p446 = pneg %p199
        $region82: #{tpu_custom_call.1} parent=63 // pred_check_branch
          %448 = sbr.rel (%p446) target = $region84
        $region83: #{tpu_custom_call.1} parent=63 // pred_region
          %450 = dma.done [#allocation11], 1024
        $region84: #{tpu_custom_call.1} parent=63 // pred_fallthru
          _
        // Predicated region
        $region85: #{tpu_custom_call.1} parent=63 // pred_check
          %p451 = pneg %p241
        $region86: #{tpu_custom_call.1} parent=63 // pred_check_branch
          %453 = sbr.rel (%p451) target = $region88
        $region87: #{tpu_custom_call.1} parent=63 // pred_region
          %455 = dma.done [#allocation14], 1024
        $region88: #{tpu_custom_call.1} parent=63 // pred_fallthru
          _
        %s456 = sand.u32 %s39, 1
        %s457 = scalar_lea.sflag [#allocation5], %s456
        %s458 = sand.u32 %s39, 1
        %s459 = smul.addr %s458, 256
        %s460 = scalar_lea.vmem [#allocation4], %s459
        %p461 = pneg %p52
        %p462 = pneg %p49
        %p463 = pneg %p73
        %p464 = pneg %p70
        %p465 = pneg %p94
        %p466 = pneg %p91
        %p467 = pneg %p115
        %p468 = pneg %p112
        %p469 = pneg %p136
        %p470 = pneg %p133
        %p471 = pneg %p157
        %p472 = pneg %p154
        %p473 = pneg %p178
        %p474 = pneg %p175
        %p475 = pneg %p199
        %p476 = pneg %p196
        %p477 = pneg %p220
        %p478 = pneg %p217
        %p479 = pneg %p241
        %p480 = pneg %p238
        %p481 = pneg %p262
        %p482 = pneg %p259
        %p483 = pneg %p288
        %p484 = pneg %p285
        %s485 = sand.u32 %s275, 1
        %s486 = scalar_lea.sflag [#allocation6], %s485
        %s487 = sand.u32 %s275, 1
        %s488 = smul.addr %s487, 256
        %s489 = scalar_lea.vmem [#allocation15], %s488
        %490 = vst [vmem:[#allocation2] sm:$0xff] 0.0
        %491 = vst [vmem:[#allocation2 + $0x8] sm:$0xff] 0.0
        %492 = vst [vmem:[#allocation2 + $0x10] sm:$0x3] 0.0
        %493 = vst [vmem:[#allocation2 + $0x18] sm:$0xff] 0.0
        %494 = vst [vmem:[#allocation2 + $0x20] sm:$0xff] 0.0
        %495 = vst [vmem:[#allocation2 + $0x28] sm:$0x3] 0.0
        %496 = vst [vmem:[#allocation2 + $0x30] sm:$0xff] 0.0
        %497 = vst [vmem:[#allocation2 + $0x38] sm:$0xff] 0.0
        %498 = vst [vmem:[#allocation2 + $0x40] sm:$0x3] 0.0
        %499 = vst [vmem:[#allocation2 + $0x48] sm:$0xff] 0.0
        %500 = vst [vmem:[#allocation2 + $0x50] sm:$0xff] 0.0
        %501 = vst [vmem:[#allocation2 + $0x58] sm:$0x3] 0.0
        %502 = vst [vmem:[#allocation2 + $0x60] sm:$0xff] 0.0
        %503 = vst [vmem:[#allocation2 + $0x68] sm:$0xff] 0.0
        %504 = vst [vmem:[#allocation2 + $0x70] sm:$0x3] 0.0
        %505 = vst [vmem:[#allocation2 + $0x78] sm:$0xff] 0.0
        %506 = vst [vmem:[#allocation2 + $0x80] sm:$0xff] 0.0
        %507 = vst [vmem:[#allocation2 + $0x88] sm:$0x3] 0.0
        %508 = vst [vmem:[#allocation2 + $0x90] sm:$0xff] 0.0
        %509 = vst [vmem:[#allocation2 + $0x98] sm:$0xff] 0.0
        %510 = vst [vmem:[#allocation2 + $0xa0] sm:$0x3] 0.0
        %511 = vst [vmem:[#allocation2 + $0xa8] sm:$0xff] 0.0
        %512 = vst [vmem:[#allocation2 + $0xb0] sm:$0xff] 0.0
        %513 = vst [vmem:[#allocation2 + $0xb8] sm:$0x3] 0.0
        %514 = vst [vmem:[#allocation2 + $0xc0] sm:$0xff] 0.0
        %515 = vst [vmem:[#allocation2 + $0xc8] sm:$0xff] 0.0
        %516 = vst [vmem:[#allocation2 + $0xd0] sm:$0x3] 0.0
        %517 = vst [vmem:[#allocation2 + $0xd8] sm:$0xff] 0.0
        %518 = vst [vmem:[#allocation2 + $0xe0] sm:$0xff] 0.0
        %519 = vst [vmem:[#allocation2 + $0xe8] sm:$0x3] 0.0
        %520 = vst [vmem:[#allocation2 + $0xf0] sm:$0xff] 0.0
        %521 = vst [vmem:[#allocation2 + $0xf8] sm:$0xff] 0.0
        %522 = vst [vmem:[#allocation2 + $0x100] sm:$0x3] 0.0
        %523 = vst [vmem:[#allocation2 + $0x108] sm:$0xff] 0.0
        %524 = vst [vmem:[#allocation2 + $0x110] sm:$0xff] 0.0
        %525 = vst [vmem:[#allocation2 + $0x118] sm:$0x3] 0.0
        %526 = vst [vmem:[#allocation2 + $0x120] sm:$0xff] 0.0
        %527 = vst [vmem:[#allocation2 + $0x128] sm:$0xff] 0.0
        %528 = vst [vmem:[#allocation2 + $0x130] sm:$0x3] 0.0
        %529 = vst [vmem:[#allocation2 + $0x138] sm:$0xff] 0.0
        %530 = vst [vmem:[#allocation2 + $0x140] sm:$0xff] 0.0
        %531 = vst [vmem:[#allocation2 + $0x148] sm:$0x3] 0.0
        %532 = vst [vmem:[#allocation2 + $0x150] sm:$0xff] 0.0
        %533 = vst [vmem:[#allocation2 + $0x158] sm:$0xff] 0.0
        %534 = vst [vmem:[#allocation2 + $0x160] sm:$0x3] 0.0
        %535 = vst [vmem:[#allocation2 + $0x168] sm:$0xff] 0.0
        %536 = vst [vmem:[#allocation2 + $0x170] sm:$0xff] 0.0
        %537 = vst [vmem:[#allocation2 + $0x178] sm:$0x3] 0.0
        %538 = vst [vmem:[#allocation2 + $0x180] sm:$0xff] 0.0
        %539 = vst [vmem:[#allocation2 + $0x188] sm:$0xff] 0.0
        %540 = vst [vmem:[#allocation2 + $0x190] sm:$0x3] 0.0
        %541 = vst [vmem:[#allocation2 + $0x198] sm:$0xff] 0.0
        %542 = vst [vmem:[#allocation2 + $0x1a0] sm:$0xff] 0.0
        %543 = vst [vmem:[#allocation2 + $0x1a8] sm:$0x3] 0.0
        %544 = vst [vmem:[#allocation3] sm:$0xff] -3e+38
        %545 = vst [vmem:[#allocation3 + $0x8] sm:$0xff] -3e+38
        %546 = vst [vmem:[#allocation3 + $0x10] sm:$0x3] -3e+38
        %547 = vst [vmem:[#allocation3 + $0x18] sm:$0xff] -3e+38
        %548 = vst [vmem:[#allocation3 + $0x20] sm:$0xff] -3e+38
        %549 = vst [vmem:[#allocation3 + $0x28] sm:$0x3] -3e+38
        %550 = vst [vmem:[#allocation3 + $0x30] sm:$0xff] -3e+38
        %551 = vst [vmem:[#allocation3 + $0x38] sm:$0xff] -3e+38
        %552 = vst [vmem:[#allocation3 + $0x40] sm:$0x3] -3e+38
        %553 = vst [vmem:[#allocation3 + $0x48] sm:$0xff] -3e+38
        %554 = vst [vmem:[#allocation3 + $0x50] sm:$0xff] -3e+38
        %555 = vst [vmem:[#allocation3 + $0x58] sm:$0x3] -3e+38
        %556 = vst [vmem:[#allocation3 + $0x60] sm:$0xff] -3e+38
        %557 = vst [vmem:[#allocation3 + $0x68] sm:$0xff] -3e+38
        %558 = vst [vmem:[#allocation3 + $0x70] sm:$0x3] -3e+38
        %559 = vst [vmem:[#allocation3 + $0x78] sm:$0xff] -3e+38
        %560 = vst [vmem:[#allocation3 + $0x80] sm:$0xff] -3e+38
        %561 = vst [vmem:[#allocation3 + $0x88] sm:$0x3] -3e+38
        %562 = vst [vmem:[#allocation3 + $0x90] sm:$0xff] -3e+38
        %563 = vst [vmem:[#allocation3 + $0x98] sm:$0xff] -3e+38
        %564 = vst [vmem:[#allocation3 + $0xa0] sm:$0x3] -3e+38
        %565 = vst [vmem:[#allocation3 + $0xa8] sm:$0xff] -3e+38
        %566 = vst [vmem:[#allocation3 + $0xb0] sm:$0xff] -3e+38
        %567 = vst [vmem:[#allocation3 + $0xb8] sm:$0x3] -3e+38
        %568 = vst [vmem:[#allocation3 + $0xc0] sm:$0xff] -3e+38
        %569 = vst [vmem:[#allocation3 + $0xc8] sm:$0xff] -3e+38
        %570 = vst [vmem:[#allocation3 + $0xd0] sm:$0x3] -3e+38
        %571 = vst [vmem:[#allocation3 + $0xd8] sm:$0xff] -3e+38
        %572 = vst [vmem:[#allocation3 + $0xe0] sm:$0xff] -3e+38
        %573 = vst [vmem:[#allocation3 + $0xe8] sm:$0x3] -3e+38
        %574 = vst [vmem:[#allocation3 + $0xf0] sm:$0xff] -3e+38
        %575 = vst [vmem:[#allocation3 + $0xf8] sm:$0xff] -3e+38
        %576 = vst [vmem:[#allocation3 + $0x100] sm:$0x3] -3e+38
        %577 = vst [vmem:[#allocation3 + $0x108] sm:$0xff] -3e+38
        %578 = vst [vmem:[#allocation3 + $0x110] sm:$0xff] -3e+38
        %579 = vst [vmem:[#allocation3 + $0x118] sm:$0x3] -3e+38
        %580 = vst [vmem:[#allocation3 + $0x120] sm:$0xff] -3e+38
        %581 = vst [vmem:[#allocation3 + $0x128] sm:$0xff] -3e+38
        %582 = vst [vmem:[#allocation3 + $0x130] sm:$0x3] -3e+38
        %583 = vst [vmem:[#allocation3 + $0x138] sm:$0xff] -3e+38
        %584 = vst [vmem:[#allocation3 + $0x140] sm:$0xff] -3e+38
        %585 = vst [vmem:[#allocation3 + $0x148] sm:$0x3] -3e+38
        %586 = vst [vmem:[#allocation3 + $0x150] sm:$0xff] -3e+38
        %587 = vst [vmem:[#allocation3 + $0x158] sm:$0xff] -3e+38
        %588 = vst [vmem:[#allocation3 + $0x160] sm:$0x3] -3e+38
        %589 = vst [vmem:[#allocation3 + $0x168] sm:$0xff] -3e+38
        %590 = vst [vmem:[#allocation3 + $0x170] sm:$0xff] -3e+38
        %591 = vst [vmem:[#allocation3 + $0x178] sm:$0x3] -3e+38
        %592 = vst [vmem:[#allocation3 + $0x180] sm:$0xff] -3e+38
        %593 = vst [vmem:[#allocation3 + $0x188] sm:$0xff] -3e+38
        %594 = vst [vmem:[#allocation3 + $0x190] sm:$0x3] -3e+38
        %595 = vst [vmem:[#allocation3 + $0x198] sm:$0xff] -3e+38
        %596 = vst [vmem:[#allocation3 + $0x1a0] sm:$0xff] -3e+38
        %597 = vst [vmem:[#allocation3 + $0x1a8] sm:$0x3] -3e+38
        %v598 = vld [vmem:[%s425] sm:$0xff]
        %v599 = vld [vmem:[%s425 + $0x8] sm:$0xff]
        %v600 = vld [vmem:[%s425 + $0x10] sm:$0xff]
        %v601 = vld [vmem:[%s425 + $0x18] sm:$0xff]
        %v602 = vld [vmem:[%s425 + $0x20] sm:$0xff]
        %v603 = vld [vmem:[%s425 + $0x28] sm:$0xff]
        %v604 = vld [vmem:[%s425 + $0x30] sm:$0xff]
        %v605 = vld [vmem:[%s425 + $0x38] sm:$0xff]
        %v606 = vld [vmem:[%s425 + $0x40] sm:$0xff]
        %v607 = vld [vmem:[%s425 + $0x48] sm:$0xff]
        %v608 = vld [vmem:[%s425 + $0x50] sm:$0xff]
        %v609 = vld [vmem:[%s425 + $0x58] sm:$0xff]
        %v610 = vld [vmem:[%s425 + $0x60] sm:$0xff]
        %v611 = vld [vmem:[%s425 + $0x68] sm:$0xff]
        %v612 = vld [vmem:[%s425 + $0x70] sm:$0xff]
        %v613 = vld [vmem:[%s425 + $0x78] sm:$0xff]
        %v614 = vld [vmem:[%s425 + $0x80] sm:$0xff]
        %v615 = vld [vmem:[%s425 + $0x88] sm:$0xff]
        %v616 = vld [vmem:[%s425 + $0x90] sm:$0xff]
        %v617 = vld [vmem:[%s425 + $0x98] sm:$0xff]
        %v618 = vld [vmem:[%s425 + $0xa0] sm:$0xff]
        %v619 = vld [vmem:[%s425 + $0xa8] sm:$0xff]
        %v620 = vld [vmem:[%s425 + $0xb0] sm:$0xff]
        %v621 = vld [vmem:[%s425 + $0xb8] sm:$0xff]
        %v622 = vld [vmem:[%s425 + $0xc0] sm:$0xff]
        %v623 = vld [vmem:[%s425 + $0xc8] sm:$0xff]
        %v624 = vld [vmem:[%s425 + $0xd0] sm:$0xff]
        %v625 = vld [vmem:[%s425 + $0xd8] sm:$0xff]
        %v626 = vld [vmem:[%s425 + $0xe0] sm:$0xff]
        %v627 = vld [vmem:[%s425 + $0xe8] sm:$0xff]
        %v628 = vld [vmem:[%s425 + $0xf0] sm:$0xff]
        %v629 = vld [vmem:[%s425 + $0xf8] sm:$0xff]
        %v630 = vpack.c.bf16 %v599, %v598
        %v631 = vpack.c.bf16 %v601, %v600
        %v632 = vpack.c.bf16 %v603, %v602
        %v633 = vpack.c.bf16 %v605, %v604
        %v634 = vpack.c.bf16 %v607, %v606
        %v635 = vpack.c.bf16 %v609, %v608
        %v636 = vpack.c.bf16 %v611, %v610
        %v637 = vpack.c.bf16 %v613, %v612
        %v638 = vpack.c.bf16 %v615, %v614
        %v639 = vpack.c.bf16 %v617, %v616
        %v640 = vpack.c.bf16 %v619, %v618
        %v641 = vpack.c.bf16 %v621, %v620
        %v642 = vpack.c.bf16 %v623, %v622
        %v643 = vpack.c.bf16 %v625, %v624
        %v644 = vpack.c.bf16 %v627, %v626
        %v645 = vpack.c.bf16 %v629, %v628
        %v646 = vld [vmem:[#allocation10] sm:$0xf]
        %v647 = vld [vmem:[#allocation10 + $0x4] sm:$0xf]
        %v648 = vld [vmem:[#allocation10 + $0x8] sm:$0xf]
        %v649 = vld [vmem:[#allocation10 + $0xc] sm:$0xf]
        %v650 = vld [vmem:[#allocation10 + $0x10] sm:$0xf]
        %v651 = vld [vmem:[#allocation10 + $0x14] sm:$0xf]
        %v652 = vld [vmem:[#allocation10 + $0x18] sm:$0xf]
        %v653 = vld [vmem:[#allocation10 + $0x1c] sm:$0xf]
        %v654 = vld [vmem:[#allocation10 + $0x20] sm:$0xf]
        %v655 = vld [vmem:[#allocation10 + $0x24] sm:$0xf]
        %v656 = vld [vmem:[#allocation10 + $0x28] sm:$0xf]
        %v657 = vld [vmem:[#allocation10 + $0x2c] sm:$0xf]
        %v658 = vld [vmem:[#allocation10 + $0x30] sm:$0xf]
        %v659 = vld [vmem:[#allocation10 + $0x34] sm:$0xf]
        %v660 = vld [vmem:[#allocation10 + $0x38] sm:$0xf]
        %v661 = vld [vmem:[#allocation10 + $0x3c] sm:$0xf]
        %v662 = vld [vmem:[%s6] sm:$0x1]
        %v664 = vperm.slane %v662, 0
        %v682 = vunpack.c.l.b16 %v646
        %v683 = vunpack.c.l.b16 %v647
        %v684 = vunpack.c.l.b16 %v648
        %v685 = vunpack.c.l.b16 %v649
        %v686 = vunpack.c.l.b16 %v650
        %v687 = vunpack.c.l.b16 %v651
        %v688 = vunpack.c.l.b16 %v652
        %v689 = vunpack.c.l.b16 %v653
        %v690 = vunpack.c.l.b16 %v654
        %v691 = vunpack.c.l.b16 %v655
        %v692 = vunpack.c.l.b16 %v656
        %v693 = vunpack.c.l.b16 %v657
        %v694 = vunpack.c.l.b16 %v658
        %v695 = vunpack.c.l.b16 %v659
        %v696 = vunpack.c.l.b16 %v660
        %v697 = vunpack.c.l.b16 %v661
        %v698 = vpack.c.b16 %v683, %v682
        %v699 = vpack.c.b16 %v685, %v684
        %v700 = vpack.c.b16 %v687, %v686
        %v701 = vpack.c.b16 %v689, %v688
        %v702 = vpack.c.b16 %v691, %v690
        %v703 = vpack.c.b16 %v693, %v692
        %v704 = vpack.c.b16 %v695, %v694
        %v705 = vpack.c.b16 %v697, %v696
        %714 = vmatpush.bf16.msra.mxu0 %v705
        %715 = vmatpush.bf16.msra.mxu0 %v704
        %716 = vmatpush.bf16.msra.mxu0 %v703
        %717 = vmatpush.bf16.msra.mxu0 %v702
        %718 = vmatpush.bf16.msra.mxu0 %v701
        %719 = vmatpush.bf16.msra.mxu0 %v700
        %720 = vmatpush.bf16.msra.mxu0 %v699
        %721 = vmatpush.bf16.msra.mxu0 %v698
        %722 = vmatmul.bf16.gmra.mxu0 %v630
        %v723 = vpop.f32.mrf.mxu0
        %v724 = vadd.f32 %v664, %v723
        %v725 = vpop.f32.mrf.mxu0
        %v726 = vadd.f32 %v664, %v725
        %727 = vmatmul.bf16.gmra.mxu0 %v631
        %v728 = vpop.f32.mrf.mxu0
        %v729 = vadd.f32 %v664, %v728
        %v730 = vpop.f32.mrf.mxu0
        %v731 = vadd.f32 %v664, %v730
        %732 = vmatmul.bf16.gmra.mxu0 %v632
        %v733 = vpop.f32.mrf.mxu0
        %v734 = vadd.f32 %v664, %v733
        %v735 = vpop.f32.mrf.mxu0
        %v736 = vadd.f32 %v664, %v735
        %737 = vmatmul.bf16.gmra.mxu0 %v633
        %v738 = vpop.f32.mrf.mxu0
        %v739 = vadd.f32 %v664, %v738
        %v740 = vpop.f32.mrf.mxu0
        %v741 = vadd.f32 %v664, %v740
        %742 = vmatmul.bf16.gmra.mxu0 %v634
        %v743 = vpop.f32.mrf.mxu0
        %v744 = vadd.f32 %v664, %v743
        %v745 = vpop.f32.mrf.mxu0
        %v746 = vadd.f32 %v664, %v745
        %747 = vmatmul.bf16.gmra.mxu0 %v635
        %v748 = vpop.f32.mrf.mxu0
        %v749 = vadd.f32 %v664, %v748
        %v750 = vpop.f32.mrf.mxu0
        %v751 = vadd.f32 %v664, %v750
        %752 = vmatmul.bf16.gmra.mxu0 %v636
        %v753 = vpop.f32.mrf.mxu0
        %v754 = vadd.f32 %v664, %v753
        %v755 = vpop.f32.mrf.mxu0
        %v756 = vadd.f32 %v664, %v755
        %757 = vmatmul.bf16.gmra.mxu0 %v637
        %v758 = vpop.f32.mrf.mxu0
        %v759 = vadd.f32 %v664, %v758
        %v760 = vpop.f32.mrf.mxu0
        %v761 = vadd.f32 %v664, %v760
        %762 = vmatmul.bf16.gmra.mxu0 %v638
        %v763 = vpop.f32.mrf.mxu0
        %v764 = vadd.f32 %v664, %v763
        %v765 = vpop.f32.mrf.mxu0
        %v766 = vadd.f32 %v664, %v765
        %767 = vmatmul.bf16.gmra.mxu0 %v639
        %v768 = vpop.f32.mrf.mxu0
        %v769 = vadd.f32 %v664, %v768
        %v770 = vpop.f32.mrf.mxu0
        %v771 = vadd.f32 %v664, %v770
        %772 = vmatmul.bf16.gmra.mxu0 %v640
        %v773 = vpop.f32.mrf.mxu0
        %v774 = vadd.f32 %v664, %v773
        %v775 = vpop.f32.mrf.mxu0
        %v776 = vadd.f32 %v664, %v775
        %777 = vmatmul.bf16.gmra.mxu0 %v641
        %v778 = vpop.f32.mrf.mxu0
        %v779 = vadd.f32 %v664, %v778
        %v780 = vpop.f32.mrf.mxu0
        %v781 = vadd.f32 %v664, %v780
        %782 = vmatmul.bf16.gmra.mxu0 %v642
        %v783 = vpop.f32.mrf.mxu0
        %v784 = vadd.f32 %v664, %v783
        %v785 = vpop.f32.mrf.mxu0
        %v786 = vadd.f32 %v664, %v785
        %787 = vmatmul.bf16.gmra.mxu0 %v643
        %v788 = vpop.f32.mrf.mxu0
        %v789 = vadd.f32 %v664, %v788
        %v790 = vpop.f32.mrf.mxu0
        %v791 = vadd.f32 %v664, %v790
        %792 = vmatmul.bf16.gmra.mxu0 %v644
        %v793 = vpop.f32.mrf.mxu0
        %v794 = vadd.f32 %v664, %v793
        %v795 = vpop.f32.mrf.mxu0
        %v796 = vadd.f32 %v664, %v795
        %797 = vmatmul.bf16.gmra.mxu0 %v645
        %v798 = vpop.f32.mrf.mxu0
        %v799 = vadd.f32 %v664, %v798
        %v800 = vpop.f32.mrf.mxu0
        %v801 = vadd.f32 %v664, %v800
        %802 = vdwg.mxu0
        %v803 = vmax.f32 %v724, 0.0
        %v804 = vmax.f32 %v726, 0.0
        %v805 = vmax.f32 %v729, 0.0
        %v806 = vmax.f32 %v731, 0.0
        %v807 = vmax.f32 %v734, 0.0
        %v808 = vmax.f32 %v736, 0.0
        %v809 = vmax.f32 %v739, 0.0
        %v810 = vmax.f32 %v741, 0.0
        %v811 = vmax.f32 %v744, 0.0
        %v812 = vmax.f32 %v746, 0.0
        %v813 = vmax.f32 %v749, 0.0
        %v814 = vmax.f32 %v751, 0.0
        %v815 = vmax.f32 %v754, 0.0
        %v816 = vmax.f32 %v756, 0.0
        %v817 = vmax.f32 %v759, 0.0
        %v818 = vmax.f32 %v761, 0.0
        %v819 = vmax.f32 %v764, 0.0
        %v820 = vmax.f32 %v766, 0.0
        %v821 = vmax.f32 %v769, 0.0
        %v822 = vmax.f32 %v771, 0.0
        %v823 = vmax.f32 %v774, 0.0
        %v824 = vmax.f32 %v776, 0.0
        %v825 = vmax.f32 %v779, 0.0
        %v826 = vmax.f32 %v781, 0.0
        %v827 = vmax.f32 %v784, 0.0
        %v828 = vmax.f32 %v786, 0.0
        %v829 = vmax.f32 %v789, 0.0
        %v830 = vmax.f32 %v791, 0.0
        %v831 = vmax.f32 %v794, 0.0
        %v832 = vmax.f32 %v796, 0.0
        %v833 = vmax.f32 %v799, 0.0
        %v834 = vmax.f32 %v801, 0.0
        %s835 = scalar_lea.vmem [#allocation2], 24
        %836 = vst [vmem:[%s835 + $0x1] sm:$0xff] %v803
        %837 = vst [vmem:[%s835 + $0x9] sm:$0xff] %v804
        %838 = vst [vmem:[%s835 + $0x19] sm:$0xff] %v805
        %839 = vst [vmem:[%s835 + $0x21] sm:$0xff] %v806
        %840 = vst [vmem:[%s835 + $0x31] sm:$0xff] %v807
        %841 = vst [vmem:[%s835 + $0x39] sm:$0xff] %v808
        %842 = vst [vmem:[%s835 + $0x49] sm:$0xff] %v809
        %843 = vst [vmem:[%s835 + $0x51] sm:$0xff] %v810
        %844 = vst [vmem:[%s835 + $0x61] sm:$0xff] %v811
        %845 = vst [vmem:[%s835 + $0x69] sm:$0xff] %v812
        %846 = vst [vmem:[%s835 + $0x79] sm:$0xff] %v813
        %847 = vst [vmem:[%s835 + $0x81] sm:$0xff] %v814
        %848 = vst [vmem:[%s835 + $0x91] sm:$0xff] %v815
        %849 = vst [vmem:[%s835 + $0x99] sm:$0xff] %v816
        %850 = vst [vmem:[%s835 + $0xa9] sm:$0xff] %v817
        %851 = vst [vmem:[%s835 + $0xb1] sm:$0xff] %v818
        %852 = vst [vmem:[%s835 + $0xc1] sm:$0xff] %v819
        %853 = vst [vmem:[%s835 + $0xc9] sm:$0xff] %v820
        %854 = vst [vmem:[%s835 + $0xd9] sm:$0xff] %v821
        %855 = vst [vmem:[%s835 + $0xe1] sm:$0xff] %v822
        %856 = vst [vmem:[%s835 + $0xf1] sm:$0xff] %v823
        %857 = vst [vmem:[%s835 + $0xf9] sm:$0xff] %v824
        %858 = vst [vmem:[%s835 + $0x109] sm:$0xff] %v825
        %859 = vst [vmem:[%s835 + $0x111] sm:$0xff] %v826
        %860 = vst [vmem:[%s835 + $0x121] sm:$0xff] %v827
        %861 = vst [vmem:[%s835 + $0x129] sm:$0xff] %v828
        %862 = vst [vmem:[%s835 + $0x139] sm:$0xff] %v829
        %863 = vst [vmem:[%s835 + $0x141] sm:$0xff] %v830
        %864 = vst [vmem:[%s835 + $0x151] sm:$0xff] %v831
        %865 = vst [vmem:[%s835 + $0x159] sm:$0xff] %v832
        %866 = vst [vmem:[%s835 + $0x169] sm:$0xff] %v833
        %867 = vst [vmem:[%s835 + $0x171] sm:$0xff] %v834
        %v868 = vld [vmem:[#allocation2] sm:$0xff]
        %v869 = vld [vmem:[#allocation2 + $0x8] sm:$0xff]
        %v870 = vld [vmem:[#allocation2 + $0x18] sm:$0xff]
        %v871 = vld [vmem:[#allocation2 + $0x20] sm:$0xff]
        %v872 = vld [vmem:[#allocation2 + $0x30] sm:$0xff]
        %v873 = vld [vmem:[#allocation2 + $0x38] sm:$0xff]
        %v874 = vld [vmem:[#allocation2 + $0x48] sm:$0xff]
        %v875 = vld [vmem:[#allocation2 + $0x50] sm:$0xff]
        %v876 = vld [vmem:[#allocation2 + $0x60] sm:$0xff]
        %v877 = vld [vmem:[#allocation2 + $0x68] sm:$0xff]
        %v878 = vld [vmem:[#allocation2 + $0x78] sm:$0xff]
        %v879 = vld [vmem:[#allocation2 + $0x80] sm:$0xff]
        %v880 = vld [vmem:[#allocation2 + $0x90] sm:$0xff]
        %v881 = vld [vmem:[#allocation2 + $0x98] sm:$0xff]
        %v882 = vld [vmem:[#allocation2 + $0xa8] sm:$0xff]
        %v883 = vld [vmem:[#allocation2 + $0xb0] sm:$0xff]
        %v884 = vld [vmem:[#allocation2 + $0xc0] sm:$0xff]
        %v885 = vld [vmem:[#allocation2 + $0xc8] sm:$0xff]
        %v886 = vld [vmem:[#allocation2 + $0xd8] sm:$0xff]
        %v887 = vld [vmem:[#allocation2 + $0xe0] sm:$0xff]
        %v888 = vld [vmem:[#allocation2 + $0xf0] sm:$0xff]
        %v889 = vld [vmem:[#allocation2 + $0xf8] sm:$0xff]
        %v890 = vld [vmem:[#allocation2 + $0x108] sm:$0xff]
        %v891 = vld [vmem:[#allocation2 + $0x110] sm:$0xff]
        %v892 = vld [vmem:[#allocation2 + $0x120] sm:$0xff]
        %v893 = vld [vmem:[#allocation2 + $0x128] sm:$0xff]
        %v894 = vld [vmem:[#allocation2 + $0x138] sm:$0xff]
        %v895 = vld [vmem:[#allocation2 + $0x140] sm:$0xff]
        %v896 = vld [vmem:[#allocation2 + $0x150] sm:$0xff]
        %v897 = vld [vmem:[#allocation2 + $0x158] sm:$0xff]
        %v898 = vld [vmem:[#allocation2 + $0x168] sm:$0xff]
        %v899 = vld [vmem:[#allocation2 + $0x170] sm:$0xff]
        %v900 = vpack.c.bf16 %v869, %v868
        %v901 = vpack.c.bf16 %v871, %v870
        %v902 = vpack.c.bf16 %v873, %v872
        %v903 = vpack.c.bf16 %v875, %v874
        %v904 = vpack.c.bf16 %v877, %v876
        %v905 = vpack.c.bf16 %v879, %v878
        %v906 = vpack.c.bf16 %v881, %v880
        %v907 = vpack.c.bf16 %v883, %v882
        %v908 = vpack.c.bf16 %v885, %v884
        %v909 = vpack.c.bf16 %v887, %v886
        %v910 = vpack.c.bf16 %v889, %v888
        %v911 = vpack.c.bf16 %v891, %v890
        %v912 = vpack.c.bf16 %v893, %v892
        %v913 = vpack.c.bf16 %v895, %v894
        %v914 = vpack.c.bf16 %v897, %v896
        %v915 = vpack.c.bf16 %v899, %v898
        %v916 = vld [vmem:[#allocation7] sm:$0xf]
        %v917 = vld [vmem:[#allocation7 + $0x4] sm:$0xf]
        %v918 = vld [vmem:[#allocation7 + $0x8] sm:$0xf]
        %v919 = vld [vmem:[#allocation7 + $0xc] sm:$0xf]
        %v920 = vld [vmem:[#allocation7 + $0x10] sm:$0xf]
        %v921 = vld [vmem:[#allocation7 + $0x14] sm:$0xf]
        %v922 = vld [vmem:[#allocation7 + $0x18] sm:$0xf]
        %v923 = vld [vmem:[#allocation7 + $0x1c] sm:$0xf]
        %v924 = vld [vmem:[#allocation7 + $0x20] sm:$0xf]
        %v925 = vld [vmem:[#allocation7 + $0x24] sm:$0xf]
        %v926 = vld [vmem:[#allocation7 + $0x28] sm:$0xf]
        %v927 = vld [vmem:[#allocation7 + $0x2c] sm:$0xf]
        %v928 = vld [vmem:[#allocation7 + $0x30] sm:$0xf]
        %v929 = vld [vmem:[#allocation7 + $0x34] sm:$0xf]
        %v930 = vld [vmem:[#allocation7 + $0x38] sm:$0xf]
        %v931 = vld [vmem:[#allocation7 + $0x3c] sm:$0xf]
        %v932 = vld [vmem:[#allocation2 + $0x1] sm:$0xff]
        %v933 = vld [vmem:[#allocation2 + $0x9] sm:$0xff]
        %v934 = vld [vmem:[#allocation2 + $0x19] sm:$0xff]
        %v935 = vld [vmem:[#allocation2 + $0x21] sm:$0xff]
        %v936 = vld [vmem:[#allocation2 + $0x31] sm:$0xff]
        %v937 = vld [vmem:[#allocation2 + $0x39] sm:$0xff]
        %v938 = vld [vmem:[#allocation2 + $0x49] sm:$0xff]
        %v939 = vld [vmem:[#allocation2 + $0x51] sm:$0xff]
        %v940 = vld [vmem:[#allocation2 + $0x61] sm:$0xff]
        %v941 = vld [vmem:[#allocation2 + $0x69] sm:$0xff]
        %v942 = vld [vmem:[#allocation2 + $0x79] sm:$0xff]
        %v943 = vld [vmem:[#allocation2 + $0x81] sm:$0xff]
        %v944 = vld [vmem:[#allocation2 + $0x91] sm:$0xff]
        %v945 = vld [vmem:[#allocation2 + $0x99] sm:$0xff]
        %v946 = vld [vmem:[#allocation2 + $0xa9] sm:$0xff]
        %v947 = vld [vmem:[#allocation2 + $0xb1] sm:$0xff]
        %v948 = vld [vmem:[#allocation2 + $0xc1] sm:$0xff]
        %v949 = vld [vmem:[#allocation2 + $0xc9] sm:$0xff]
        %v950 = vld [vmem:[#allocation2 + $0xd9] sm:$0xff]
        %v951 = vld [vmem:[#allocation2 + $0xe1] sm:$0xff]
        %v952 = vld [vmem:[#allocation2 + $0xf1] sm:$0xff]
        %v953 = vld [vmem:[#allocation2 + $0xf9] sm:$0xff]
        %v954 = vld [vmem:[#allocation2 + $0x109] sm:$0xff]
        %v955 = vld [vmem:[#allocation2 + $0x111] sm:$0xff]
        %v956 = vld [vmem:[#allocation2 + $0x121] sm:$0xff]
        %v957 = vld [vmem:[#allocation2 + $0x129] sm:$0xff]
        %v958 = vld [vmem:[#allocation2 + $0x139] sm:$0xff]
        %v959 = vld [vmem:[#allocation2 + $0x141] sm:$0xff]
        %v960 = vld [vmem:[#allocation2 + $0x151] sm:$0xff]
        %v961 = vld [vmem:[#allocation2 + $0x159] sm:$0xff]
        %v962 = vld [vmem:[#allocation2 + $0x169] sm:$0xff]
        %v963 = vld [vmem:[#allocation2 + $0x171] sm:$0xff]
        %v964 = vpack.c.bf16 %v933, %v932
        %v965 = vpack.c.bf16 %v935, %v934
        %v966 = vpack.c.bf16 %v937, %v936
        %v967 = vpack.c.bf16 %v939, %v938
        %v968 = vpack.c.bf16 %v941, %v940
        %v969 = vpack.c.bf16 %v943, %v942
        %v970 = vpack.c.bf16 %v945, %v944
        %v971 = vpack.c.bf16 %v947, %v946
        %v972 = vpack.c.bf16 %v949, %v948
        %v973 = vpack.c.bf16 %v951, %v950
        %v974 = vpack.c.bf16 %v953, %v952
        %v975 = vpack.c.bf16 %v955, %v954
        %v976 = vpack.c.bf16 %v957, %v956
        %v977 = vpack.c.bf16 %v959, %v958
        %v978 = vpack.c.bf16 %v961, %v960
        %v979 = vpack.c.bf16 %v963, %v962
        %s980 = scalar_lea.vmem [#allocation7], 64
        %v981 = vld [vmem:[%s980] sm:$0xf]
        %v982 = vld [vmem:[%s980 + $0x4] sm:$0xf]
        %v983 = vld [vmem:[%s980 + $0x8] sm:$0xf]
        %v984 = vld [vmem:[%s980 + $0xc] sm:$0xf]
        %v985 = vld [vmem:[%s980 + $0x10] sm:$0xf]
        %v986 = vld [vmem:[%s980 + $0x14] sm:$0xf]
        %v987 = vld [vmem:[%s980 + $0x18] sm:$0xf]
        %v988 = vld [vmem:[%s980 + $0x1c] sm:$0xf]
        %v989 = vld [vmem:[%s980 + $0x20] sm:$0xf]
        %v990 = vld [vmem:[%s980 + $0x24] sm:$0xf]
        %v991 = vld [vmem:[%s980 + $0x28] sm:$0xf]
        %v992 = vld [vmem:[%s980 + $0x2c] sm:$0xf]
        %v993 = vld [vmem:[%s980 + $0x30] sm:$0xf]
        %v994 = vld [vmem:[%s980 + $0x34] sm:$0xf]
        %v995 = vld [vmem:[%s980 + $0x38] sm:$0xf]
        %v996 = vld [vmem:[%s980 + $0x3c] sm:$0xf]
        %v1013 = vunpack.c.l.b16 %v981
        %v1014 = vunpack.c.l.b16 %v982
        %v1015 = vunpack.c.l.b16 %v983
        %v1016 = vunpack.c.l.b16 %v984
        %v1017 = vunpack.c.l.b16 %v985
        %v1018 = vunpack.c.l.b16 %v986
        %v1019 = vunpack.c.l.b16 %v987
        %v1020 = vunpack.c.l.b16 %v988
        %v1021 = vunpack.c.l.b16 %v989
        %v1022 = vunpack.c.l.b16 %v990
        %v1023 = vunpack.c.l.b16 %v991
        %v1024 = vunpack.c.l.b16 %v992
        %v1025 = vunpack.c.l.b16 %v993
        %v1026 = vunpack.c.l.b16 %v994
        %v1027 = vunpack.c.l.b16 %v995
        %v1028 = vunpack.c.l.b16 %v996
        %v1029 = vpack.c.b16 %v1014, %v1013
        %v1030 = vpack.c.b16 %v1016, %v1015
        %v1031 = vpack.c.b16 %v1018, %v1017
        %v1032 = vpack.c.b16 %v1020, %v1019
        %v1033 = vpack.c.b16 %v1022, %v1021
        %v1034 = vpack.c.b16 %v1024, %v1023
        %v1035 = vpack.c.b16 %v1026, %v1025
        %v1036 = vpack.c.b16 %v1028, %v1027
        %1045 = vmatpush.bf16.msra.mxu0 %v1036
        %1046 = vmatpush.bf16.msra.mxu0 %v1035
        %1047 = vmatpush.bf16.msra.mxu0 %v1034
        %1048 = vmatpush.bf16.msra.mxu0 %v1033
        %1049 = vmatpush.bf16.msra.mxu0 %v1032
        %1050 = vmatpush.bf16.msra.mxu0 %v1031
        %1051 = vmatpush.bf16.msra.mxu0 %v1030
        %1052 = vmatpush.bf16.msra.mxu0 %v1029
        %1053 = vmatmul.bf16.gmra.mxu0 %v964
        %v1054 = vpop.f32.mrf.mxu0
        %v1055 = vadd.f32 0.0, %v1054
        %v1056 = vpop.f32.mrf.mxu0
        %v1057 = vadd.f32 0.0, %v1056
        %1058 = vmatmul.bf16.gmra.mxu0 %v965
        %v1059 = vpop.f32.mrf.mxu0
        %v1060 = vadd.f32 0.0, %v1059
        %v1061 = vpop.f32.mrf.mxu0
        %v1062 = vadd.f32 0.0, %v1061
        %1063 = vmatmul.bf16.gmra.mxu0 %v966
        %v1064 = vpop.f32.mrf.mxu0
        %v1065 = vadd.f32 0.0, %v1064
        %v1066 = vpop.f32.mrf.mxu0
        %v1067 = vadd.f32 0.0, %v1066
        %1068 = vmatmul.bf16.gmra.mxu0 %v967
        %v1069 = vpop.f32.mrf.mxu0
        %v1070 = vadd.f32 0.0, %v1069
        %v1071 = vpop.f32.mrf.mxu0
        %v1072 = vadd.f32 0.0, %v1071
        %1073 = vmatmul.bf16.gmra.mxu0 %v968
        %v1074 = vpop.f32.mrf.mxu0
        %v1075 = vadd.f32 0.0, %v1074
        %v1076 = vpop.f32.mrf.mxu0
        %v1077 = vadd.f32 0.0, %v1076
        %1078 = vmatmul.bf16.gmra.mxu0 %v969
        %v1079 = vpop.f32.mrf.mxu0
        %v1080 = vadd.f32 0.0, %v1079
        %v1081 = vpop.f32.mrf.mxu0
        %v1082 = vadd.f32 0.0, %v1081
        %1083 = vmatmul.bf16.gmra.mxu0 %v970
        %v1084 = vpop.f32.mrf.mxu0
        %v1085 = vadd.f32 0.0, %v1084
        %v1086 = vpop.f32.mrf.mxu0
        %v1087 = vadd.f32 0.0, %v1086
        %1088 = vmatmul.bf16.gmra.mxu0 %v971
        %v1089 = vpop.f32.mrf.mxu0
        %v1090 = vadd.f32 0.0, %v1089
        %v1091 = vpop.f32.mrf.mxu0
        %v1092 = vadd.f32 0.0, %v1091
        %1093 = vmatmul.bf16.gmra.mxu0 %v972
        %v1094 = vpop.f32.mrf.mxu0
        %v1095 = vadd.f32 0.0, %v1094
        %v1096 = vpop.f32.mrf.mxu0
        %v1097 = vadd.f32 0.0, %v1096
        %1098 = vmatmul.bf16.gmra.mxu0 %v973
        %v1099 = vpop.f32.mrf.mxu0
        %v1100 = vadd.f32 0.0, %v1099
        %v1101 = vpop.f32.mrf.mxu0
        %v1102 = vadd.f32 0.0, %v1101
        %1103 = vmatmul.bf16.gmra.mxu0 %v974
        %v1104 = vpop.f32.mrf.mxu0
        %v1105 = vadd.f32 0.0, %v1104
        %v1106 = vpop.f32.mrf.mxu0
        %v1107 = vadd.f32 0.0, %v1106
        %1108 = vmatmul.bf16.gmra.mxu0 %v975
        %v1109 = vpop.f32.mrf.mxu0
        %v1110 = vadd.f32 0.0, %v1109
        %v1111 = vpop.f32.mrf.mxu0
        %v1112 = vadd.f32 0.0, %v1111
        %1113 = vmatmul.bf16.gmra.mxu0 %v976
        %v1114 = vpop.f32.mrf.mxu0
        %v1115 = vadd.f32 0.0, %v1114
        %v1116 = vpop.f32.mrf.mxu0
        %v1117 = vadd.f32 0.0, %v1116
        %1118 = vmatmul.bf16.gmra.mxu0 %v977
        %v1119 = vpop.f32.mrf.mxu0
        %v1120 = vadd.f32 0.0, %v1119
        %v1121 = vpop.f32.mrf.mxu0
        %v1122 = vadd.f32 0.0, %v1121
        %1123 = vmatmul.bf16.gmra.mxu0 %v978
        %v1124 = vpop.f32.mrf.mxu0
        %v1125 = vadd.f32 0.0, %v1124
        %v1126 = vpop.f32.mrf.mxu0
        %v1127 = vadd.f32 0.0, %v1126
        %1128 = vmatmul.bf16.gmra.mxu0 %v979
        %v1129 = vpop.f32.mrf.mxu0
        %v1130 = vadd.f32 0.0, %v1129
        %v1131 = vpop.f32.mrf.mxu0
        %v1132 = vadd.f32 0.0, %v1131
        %1133 = vdwg.mxu0
        %v1150 = vunpack.c.l.b16 %v916
        %v1151 = vunpack.c.l.b16 %v917
        %v1152 = vunpack.c.l.b16 %v918
        %v1153 = vunpack.c.l.b16 %v919
        %v1154 = vunpack.c.l.b16 %v920
        %v1155 = vunpack.c.l.b16 %v921
        %v1156 = vunpack.c.l.b16 %v922
        %v1157 = vunpack.c.l.b16 %v923
        %v1158 = vunpack.c.l.b16 %v924
        %v1159 = vunpack.c.l.b16 %v925
        %v1160 = vunpack.c.l.b16 %v926
        %v1161 = vunpack.c.l.b16 %v927
        %v1162 = vunpack.c.l.b16 %v928
        %v1163 = vunpack.c.l.b16 %v929
        %v1164 = vunpack.c.l.b16 %v930
        %v1165 = vunpack.c.l.b16 %v931
        %v1166 = vpack.c.b16 %v1151, %v1150
        %v1167 = vpack.c.b16 %v1153, %v1152
        %v1168 = vpack.c.b16 %v1155, %v1154
        %v1169 = vpack.c.b16 %v1157, %v1156
        %v1170 = vpack.c.b16 %v1159, %v1158
        %v1171 = vpack.c.b16 %v1161, %v1160
        %v1172 = vpack.c.b16 %v1163, %v1162
        %v1173 = vpack.c.b16 %v1165, %v1164
        %1182 = vmatpush.bf16.msra.mxu0 %v1173
        %1183 = vmatpush.bf16.msra.mxu0 %v1172
        %1184 = vmatpush.bf16.msra.mxu0 %v1171
        %1185 = vmatpush.bf16.msra.mxu0 %v1170
        %1186 = vmatpush.bf16.msra.mxu0 %v1169
        %1187 = vmatpush.bf16.msra.mxu0 %v1168
        %1188 = vmatpush.bf16.msra.mxu0 %v1167
        %1189 = vmatpush.bf16.msra.mxu0 %v1166
        %1190 = vmatmul.bf16.gmra.mxu0 %v900
        %v1191 = vpop.f32.mrf.mxu0
        %v1192 = vadd.f32 %v1055, %v1191
        %v1193 = vpop.f32.mrf.mxu0
        %v1194 = vadd.f32 %v1057, %v1193
        %1195 = vmatmul.bf16.gmra.mxu0 %v901
        %v1196 = vpop.f32.mrf.mxu0
        %v1197 = vadd.f32 %v1060, %v1196
        %v1198 = vpop.f32.mrf.mxu0
        %v1199 = vadd.f32 %v1062, %v1198
        %1200 = vmatmul.bf16.gmra.mxu0 %v902
        %v1201 = vpop.f32.mrf.mxu0
        %v1202 = vadd.f32 %v1065, %v1201
        %v1203 = vpop.f32.mrf.mxu0
        %v1204 = vadd.f32 %v1067, %v1203
        %1205 = vmatmul.bf16.gmra.mxu0 %v903
        %v1206 = vpop.f32.mrf.mxu0
        %v1207 = vadd.f32 %v1070, %v1206
        %v1208 = vpop.f32.mrf.mxu0
        %v1209 = vadd.f32 %v1072, %v1208
        %1210 = vmatmul.bf16.gmra.mxu0 %v904
        %v1211 = vpop.f32.mrf.mxu0
        %v1212 = vadd.f32 %v1075, %v1211
        %v1213 = vpop.f32.mrf.mxu0
        %v1214 = vadd.f32 %v1077, %v1213
        %1215 = vmatmul.bf16.gmra.mxu0 %v905
        %v1216 = vpop.f32.mrf.mxu0
        %v1217 = vadd.f32 %v1080, %v1216
        %v1218 = vpop.f32.mrf.mxu0
        %v1219 = vadd.f32 %v1082, %v1218
        %1220 = vmatmul.bf16.gmra.mxu0 %v906
        %v1221 = vpop.f32.mrf.mxu0
        %v1222 = vadd.f32 %v1085, %v1221
        %v1223 = vpop.f32.mrf.mxu0
        %v1224 = vadd.f32 %v1087, %v1223
        %1225 = vmatmul.bf16.gmra.mxu0 %v907
        %v1226 = vpop.f32.mrf.mxu0
        %v1227 = vadd.f32 %v1090, %v1226
        %v1228 = vpop.f32.mrf.mxu0
        %v1229 = vadd.f32 %v1092, %v1228
        %1230 = vmatmul.bf16.gmra.mxu0 %v908
        %v1231 = vpop.f32.mrf.mxu0
        %v1232 = vadd.f32 %v1095, %v1231
        %v1233 = vpop.f32.mrf.mxu0
        %v1234 = vadd.f32 %v1097, %v1233
        %1235 = vmatmul.bf16.gmra.mxu0 %v909
        %v1236 = vpop.f32.mrf.mxu0
        %v1237 = vadd.f32 %v1100, %v1236
        %v1238 = vpop.f32.mrf.mxu0
        %v1239 = vadd.f32 %v1102, %v1238
        %1240 = vmatmul.bf16.gmra.mxu0 %v910
        %v1241 = vpop.f32.mrf.mxu0
        %v1242 = vadd.f32 %v1105, %v1241
        %v1243 = vpop.f32.mrf.mxu0
        %v1244 = vadd.f32 %v1107, %v1243
        %1245 = vmatmul.bf16.gmra.mxu0 %v911
        %v1246 = vpop.f32.mrf.mxu0
        %v1247 = vadd.f32 %v1110, %v1246
        %v1248 = vpop.f32.mrf.mxu0
        %v1249 = vadd.f32 %v1112, %v1248
        %1250 = vmatmul.bf16.gmra.mxu0 %v912
        %v1251 = vpop.f32.mrf.mxu0
        %v1252 = vadd.f32 %v1115, %v1251
        %v1253 = vpop.f32.mrf.mxu0
        %v1254 = vadd.f32 %v1117, %v1253
        %1255 = vmatmul.bf16.gmra.mxu0 %v913
        %v1256 = vpop.f32.mrf.mxu0
        %v1257 = vadd.f32 %v1120, %v1256
        %v1258 = vpop.f32.mrf.mxu0
        %v1259 = vadd.f32 %v1122, %v1258
        %1260 = vmatmul.bf16.gmra.mxu0 %v914
        %v1261 = vpop.f32.mrf.mxu0
        %v1262 = vadd.f32 %v1125, %v1261
        %v1263 = vpop.f32.mrf.mxu0
        %v1264 = vadd.f32 %v1127, %v1263
        %1265 = vmatmul.bf16.gmra.mxu0 %v915
        %v1266 = vpop.f32.mrf.mxu0
        %v1267 = vadd.f32 %v1130, %v1266
        %v1268 = vpop.f32.mrf.mxu0
        %v1269 = vadd.f32 %v1132, %v1268
        %1270 = vdwg.mxu0
        %v1271 = vld [vmem:[#allocation2 + $0x2] sm:$0xff]
        %v1272 = vld [vmem:[#allocation2 + $0xa] sm:$0xff]
        %v1273 = vld [vmem:[#allocation2 + $0x1a] sm:$0xff]
        %v1274 = vld [vmem:[#allocation2 + $0x22] sm:$0xff]
        %v1275 = vld [vmem:[#allocation2 + $0x32] sm:$0xff]
        %v1276 = vld [vmem:[#allocation2 + $0x3a] sm:$0xff]
        %v1277 = vld [vmem:[#allocation2 + $0x4a] sm:$0xff]
        %v1278 = vld [vmem:[#allocation2 + $0x52] sm:$0xff]
        %v1279 = vld [vmem:[#allocation2 + $0x62] sm:$0xff]
        %v1280 = vld [vmem:[#allocation2 + $0x6a] sm:$0xff]
        %v1281 = vld [vmem:[#allocation2 + $0x7a] sm:$0xff]
        %v1282 = vld [vmem:[#allocation2 + $0x82] sm:$0xff]
        %v1283 = vld [vmem:[#allocation2 + $0x92] sm:$0xff]
        %v1284 = vld [vmem:[#allocation2 + $0x9a] sm:$0xff]
        %v1285 = vld [vmem:[#allocation2 + $0xaa] sm:$0xff]
        %v1286 = vld [vmem:[#allocation2 + $0xb2] sm:$0xff]
        %v1287 = vld [vmem:[#allocation2 + $0xc2] sm:$0xff]
        %v1288 = vld [vmem:[#allocation2 + $0xca] sm:$0xff]
        %v1289 = vld [vmem:[#allocation2 + $0xda] sm:$0xff]
        %v1290 = vld [vmem:[#allocation2 + $0xe2] sm:$0xff]
        %v1291 = vld [vmem:[#allocation2 + $0xf2] sm:$0xff]
        %v1292 = vld [vmem:[#allocation2 + $0xfa] sm:$0xff]
        %v1293 = vld [vmem:[#allocation2 + $0x10a] sm:$0xff]
        %v1294 = vld [vmem:[#allocation2 + $0x112] sm:$0xff]
        %v1295 = vld [vmem:[#allocation2 + $0x122] sm:$0xff]
        %v1296 = vld [vmem:[#allocation2 + $0x12a] sm:$0xff]
        %v1297 = vld [vmem:[#allocation2 + $0x13a] sm:$0xff]
        %v1298 = vld [vmem:[#allocation2 + $0x142] sm:$0xff]
        %v1299 = vld [vmem:[#allocation2 + $0x152] sm:$0xff]
        %v1300 = vld [vmem:[#allocation2 + $0x15a] sm:$0xff]
        %v1301 = vld [vmem:[#allocation2 + $0x16a] sm:$0xff]
        %v1302 = vld [vmem:[#allocation2 + $0x172] sm:$0xff]
        %v1303 = vpack.c.bf16 %v1272, %v1271
        %v1304 = vpack.c.bf16 %v1274, %v1273
        %v1305 = vpack.c.bf16 %v1276, %v1275
        %v1306 = vpack.c.bf16 %v1278, %v1277
        %v1307 = vpack.c.bf16 %v1280, %v1279
        %v1308 = vpack.c.bf16 %v1282, %v1281
        %v1309 = vpack.c.bf16 %v1284, %v1283
        %v1310 = vpack.c.bf16 %v1286, %v1285
        %v1311 = vpack.c.bf16 %v1288, %v1287
        %v1312 = vpack.c.bf16 %v1290, %v1289
        %v1313 = vpack.c.bf16 %v1292, %v1291
        %v1314 = vpack.c.bf16 %v1294, %v1293
        %v1315 = vpack.c.bf16 %v1296, %v1295
        %v1316 = vpack.c.bf16 %v1298, %v1297
        %v1317 = vpack.c.bf16 %v1300, %v1299
        %v1318 = vpack.c.bf16 %v1302, %v1301
        %s1319 = scalar_lea.vmem [#allocation7], 128
        %v1320 = vld [vmem:[%s1319] sm:$0xf]
        %v1321 = vld [vmem:[%s1319 + $0x4] sm:$0xf]
        %v1322 = vld [vmem:[%s1319 + $0x8] sm:$0xf]
        %v1323 = vld [vmem:[%s1319 + $0xc] sm:$0xf]
        %v1324 = vld [vmem:[%s1319 + $0x10] sm:$0xf]
        %v1325 = vld [vmem:[%s1319 + $0x14] sm:$0xf]
        %v1326 = vld [vmem:[%s1319 + $0x18] sm:$0xf]
        %v1327 = vld [vmem:[%s1319 + $0x1c] sm:$0xf]
        %v1328 = vld [vmem:[%s1319 + $0x20] sm:$0xf]
        %v1329 = vld [vmem:[%s1319 + $0x24] sm:$0xf]
        %v1330 = vld [vmem:[%s1319 + $0x28] sm:$0xf]
        %v1331 = vld [vmem:[%s1319 + $0x2c] sm:$0xf]
        %v1332 = vld [vmem:[%s1319 + $0x30] sm:$0xf]
        %v1333 = vld [vmem:[%s1319 + $0x34] sm:$0xf]
        %v1334 = vld [vmem:[%s1319 + $0x38] sm:$0xf]
        %v1335 = vld [vmem:[%s1319 + $0x3c] sm:$0xf]
        %v1352 = vunpack.c.l.b16 %v1320
        %v1353 = vunpack.c.l.b16 %v1321
        %v1354 = vunpack.c.l.b16 %v1322
        %v1355 = vunpack.c.l.b16 %v1323
        %v1356 = vunpack.c.l.b16 %v1324
        %v1357 = vunpack.c.l.b16 %v1325
        %v1358 = vunpack.c.l.b16 %v1326
        %v1359 = vunpack.c.l.b16 %v1327
        %v1360 = vunpack.c.l.b16 %v1328
        %v1361 = vunpack.c.l.b16 %v1329
        %v1362 = vunpack.c.l.b16 %v1330
        %v1363 = vunpack.c.l.b16 %v1331
        %v1364 = vunpack.c.l.b16 %v1332
        %v1365 = vunpack.c.l.b16 %v1333
        %v1366 = vunpack.c.l.b16 %v1334
        %v1367 = vunpack.c.l.b16 %v1335
        %v1368 = vpack.c.b16 %v1353, %v1352
        %v1369 = vpack.c.b16 %v1355, %v1354
        %v1370 = vpack.c.b16 %v1357, %v1356
        %v1371 = vpack.c.b16 %v1359, %v1358
        %v1372 = vpack.c.b16 %v1361, %v1360
        %v1373 = vpack.c.b16 %v1363, %v1362
        %v1374 = vpack.c.b16 %v1365, %v1364
        %v1375 = vpack.c.b16 %v1367, %v1366
        %1384 = vmatpush.bf16.msra.mxu0 %v1375
        %1385 = vmatpush.bf16.msra.mxu0 %v1374
        %1386 = vmatpush.bf16.msra.mxu0 %v1373
        %1387 = vmatpush.bf16.msra.mxu0 %v1372
        %1388 = vmatpush.bf16.msra.mxu0 %v1371
        %1389 = vmatpush.bf16.msra.mxu0 %v1370
        %1390 = vmatpush.bf16.msra.mxu0 %v1369
        %1391 = vmatpush.bf16.msra.mxu0 %v1368
        %1392 = vmatmul.bf16.gmra.mxu0 %v1303
        %v1393 = vpop.f32.mrf.mxu0
        %v1394 = vadd.f32 0.0, %v1393
        %v1395 = vpop.f32.mrf.mxu0
        %v1396 = vadd.f32 0.0, %v1395
        %1397 = vmatmul.bf16.gmra.mxu0 %v1304
        %v1398 = vpop.f32.mrf.mxu0
        %v1399 = vadd.f32 0.0, %v1398
        %v1400 = vpop.f32.mrf.mxu0
        %v1401 = vadd.f32 0.0, %v1400
        %1402 = vmatmul.bf16.gmra.mxu0 %v1305
        %v1403 = vpop.f32.mrf.mxu0
        %v1404 = vadd.f32 0.0, %v1403
        %v1405 = vpop.f32.mrf.mxu0
        %v1406 = vadd.f32 0.0, %v1405
        %1407 = vmatmul.bf16.gmra.mxu0 %v1306
        %v1408 = vpop.f32.mrf.mxu0
        %v1409 = vadd.f32 0.0, %v1408
        %v1410 = vpop.f32.mrf.mxu0
        %v1411 = vadd.f32 0.0, %v1410
        %1412 = vmatmul.bf16.gmra.mxu0 %v1307
        %v1413 = vpop.f32.mrf.mxu0
        %v1414 = vadd.f32 0.0, %v1413
        %v1415 = vpop.f32.mrf.mxu0
        %v1416 = vadd.f32 0.0, %v1415
        %1417 = vmatmul.bf16.gmra.mxu0 %v1308
        %v1418 = vpop.f32.mrf.mxu0
        %v1419 = vadd.f32 0.0, %v1418
        %v1420 = vpop.f32.mrf.mxu0
        %v1421 = vadd.f32 0.0, %v1420
        %1422 = vmatmul.bf16.gmra.mxu0 %v1309
        %v1423 = vpop.f32.mrf.mxu0
        %v1424 = vadd.f32 0.0, %v1423
        %v1425 = vpop.f32.mrf.mxu0
        %v1426 = vadd.f32 0.0, %v1425
        %1427 = vmatmul.bf16.gmra.mxu0 %v1310
        %v1428 = vpop.f32.mrf.mxu0
        %v1429 = vadd.f32 0.0, %v1428
        %v1430 = vpop.f32.mrf.mxu0
        %v1431 = vadd.f32 0.0, %v1430
        %1432 = vmatmul.bf16.gmra.mxu0 %v1311
        %v1433 = vpop.f32.mrf.mxu0
        %v1434 = vadd.f32 0.0, %v1433
        %v1435 = vpop.f32.mrf.mxu0
        %v1436 = vadd.f32 0.0, %v1435
        %1437 = vmatmul.bf16.gmra.mxu0 %v1312
        %v1438 = vpop.f32.mrf.mxu0
        %v1439 = vadd.f32 0.0, %v1438
        %v1440 = vpop.f32.mrf.mxu0
        %v1441 = vadd.f32 0.0, %v1440
        %1442 = vmatmul.bf16.gmra.mxu0 %v1313
        %v1443 = vpop.f32.mrf.mxu0
        %v1444 = vadd.f32 0.0, %v1443
        %v1445 = vpop.f32.mrf.mxu0
        %v1446 = vadd.f32 0.0, %v1445
        %1447 = vmatmul.bf16.gmra.mxu0 %v1314
        %v1448 = vpop.f32.mrf.mxu0
        %v1449 = vadd.f32 0.0, %v1448
        %v1450 = vpop.f32.mrf.mxu0
        %v1451 = vadd.f32 0.0, %v1450
        %1452 = vmatmul.bf16.gmra.mxu0 %v1315
        %v1453 = vpop.f32.mrf.mxu0
        %v1454 = vadd.f32 0.0, %v1453
        %v1455 = vpop.f32.mrf.mxu0
        %v1456 = vadd.f32 0.0, %v1455
        %1457 = vmatmul.bf16.gmra.mxu0 %v1316
        %v1458 = vpop.f32.mrf.mxu0
        %v1459 = vadd.f32 0.0, %v1458
        %v1460 = vpop.f32.mrf.mxu0
        %v1461 = vadd.f32 0.0, %v1460
        %1462 = vmatmul.bf16.gmra.mxu0 %v1317
        %v1463 = vpop.f32.mrf.mxu0
        %v1464 = vadd.f32 0.0, %v1463
        %v1465 = vpop.f32.mrf.mxu0
        %v1466 = vadd.f32 0.0, %v1465
        %1467 = vmatmul.bf16.gmra.mxu0 %v1318
        %v1468 = vpop.f32.mrf.mxu0
        %v1469 = vadd.f32 0.0, %v1468
        %v1470 = vpop.f32.mrf.mxu0
        %v1471 = vadd.f32 0.0, %v1470
        %1472 = vdwg.mxu0
        %v1473 = vadd.f32 %v1192, %v1394
        %v1474 = vadd.f32 %v1194, %v1396
        %v1475 = vadd.f32 %v1197, %v1399
        %v1476 = vadd.f32 %v1199, %v1401
        %v1477 = vadd.f32 %v1202, %v1404
        %v1478 = vadd.f32 %v1204, %v1406
        %v1479 = vadd.f32 %v1207, %v1409
        %v1480 = vadd.f32 %v1209, %v1411
        %v1481 = vadd.f32 %v1212, %v1414
        %v1482 = vadd.f32 %v1214, %v1416
        %v1483 = vadd.f32 %v1217, %v1419
        %v1484 = vadd.f32 %v1219, %v1421
        %v1485 = vadd.f32 %v1222, %v1424
        %v1486 = vadd.f32 %v1224, %v1426
        %v1487 = vadd.f32 %v1227, %v1429
        %v1488 = vadd.f32 %v1229, %v1431
        %v1489 = vadd.f32 %v1232, %v1434
        %v1490 = vadd.f32 %v1234, %v1436
        %v1491 = vadd.f32 %v1237, %v1439
        %v1492 = vadd.f32 %v1239, %v1441
        %v1493 = vadd.f32 %v1242, %v1444
        %v1494 = vadd.f32 %v1244, %v1446
        %v1495 = vadd.f32 %v1247, %v1449
        %v1496 = vadd.f32 %v1249, %v1451
        %v1497 = vadd.f32 %v1252, %v1454
        %v1498 = vadd.f32 %v1254, %v1456
        %v1499 = vadd.f32 %v1257, %v1459
        %v1500 = vadd.f32 %v1259, %v1461
        %v1501 = vadd.f32 %v1262, %v1464
        %v1502 = vadd.f32 %v1264, %v1466
        %v1503 = vadd.f32 %v1267, %v1469
        %v1504 = vadd.f32 %v1269, %v1471
        %v1505 = vld [vmem:[%s835] sm:$0xff]
        %v1506 = vld [vmem:[%s835 + $0x8] sm:$0xff]
        %v1507 = vld [vmem:[%s835 + $0x18] sm:$0xff]
        %v1508 = vld [vmem:[%s835 + $0x20] sm:$0xff]
        %v1509 = vld [vmem:[%s835 + $0x30] sm:$0xff]
        %v1510 = vld [vmem:[%s835 + $0x38] sm:$0xff]
        %v1511 = vld [vmem:[%s835 + $0x48] sm:$0xff]
        %v1512 = vld [vmem:[%s835 + $0x50] sm:$0xff]
        %v1513 = vld [vmem:[%s835 + $0x60] sm:$0xff]
        %v1514 = vld [vmem:[%s835 + $0x68] sm:$0xff]
        %v1515 = vld [vmem:[%s835 + $0x78] sm:$0xff]
        %v1516 = vld [vmem:[%s835 + $0x80] sm:$0xff]
        %v1517 = vld [vmem:[%s835 + $0x90] sm:$0xff]
        %v1518 = vld [vmem:[%s835 + $0x98] sm:$0xff]
        %v1519 = vld [vmem:[%s835 + $0xa8] sm:$0xff]
        %v1520 = vld [vmem:[%s835 + $0xb0] sm:$0xff]
        %v1521 = vld [vmem:[%s835 + $0xc0] sm:$0xff]
        %v1522 = vld [vmem:[%s835 + $0xc8] sm:$0xff]
        %v1523 = vld [vmem:[%s835 + $0xd8] sm:$0xff]
        %v1524 = vld [vmem:[%s835 + $0xe0] sm:$0xff]
        %v1525 = vld [vmem:[%s835 + $0xf0] sm:$0xff]
        %v1526 = vld [vmem:[%s835 + $0xf8] sm:$0xff]
        %v1527 = vld [vmem:[%s835 + $0x108] sm:$0xff]
        %v1528 = vld [vmem:[%s835 + $0x110] sm:$0xff]
        %v1529 = vld [vmem:[%s835 + $0x120] sm:$0xff]
        %v1530 = vld [vmem:[%s835 + $0x128] sm:$0xff]
        %v1531 = vld [vmem:[%s835 + $0x138] sm:$0xff]
        %v1532 = vld [vmem:[%s835 + $0x140] sm:$0xff]
        %v1533 = vld [vmem:[%s835 + $0x150] sm:$0xff]
        %v1534 = vld [vmem:[%s835 + $0x158] sm:$0xff]
        %v1535 = vld [vmem:[%s835 + $0x168] sm:$0xff]
        %v1536 = vld [vmem:[%s835 + $0x170] sm:$0xff]
        %v1537 = vpack.c.bf16 %v1506, %v1505
        %v1538 = vpack.c.bf16 %v1508, %v1507
        %v1539 = vpack.c.bf16 %v1510, %v1509
        %v1540 = vpack.c.bf16 %v1512, %v1511
        %v1541 = vpack.c.bf16 %v1514, %v1513
        %v1542 = vpack.c.bf16 %v1516, %v1515
        %v1543 = vpack.c.bf16 %v1518, %v1517
        %v1544 = vpack.c.bf16 %v1520, %v1519
        %v1545 = vpack.c.bf16 %v1522, %v1521
        %v1546 = vpack.c.bf16 %v1524, %v1523
        %v1547 = vpack.c.bf16 %v1526, %v1525
        %v1548 = vpack.c.bf16 %v1528, %v1527
        %v1549 = vpack.c.bf16 %v1530, %v1529
        %v1550 = vpack.c.bf16 %v1532, %v1531
        %v1551 = vpack.c.bf16 %v1534, %v1533
        %v1552 = vpack.c.bf16 %v1536, %v1535
        %s1553 = scalar_lea.vmem [#allocation7], 192
        %v1554 = vld [vmem:[%s1553] sm:$0xf]
        %v1555 = vld [vmem:[%s1553 + $0x4] sm:$0xf]
        %v1556 = vld [vmem:[%s1553 + $0x8] sm:$0xf]
        %v1557 = vld [vmem:[%s1553 + $0xc] sm:$0xf]
        %v1558 = vld [vmem:[%s1553 + $0x10] sm:$0xf]
        %v1559 = vld [vmem:[%s1553 + $0x14] sm:$0xf]
        %v1560 = vld [vmem:[%s1553 + $0x18] sm:$0xf]
        %v1561 = vld [vmem:[%s1553 + $0x1c] sm:$0xf]
        %v1562 = vld [vmem:[%s1553 + $0x20] sm:$0xf]
        %v1563 = vld [vmem:[%s1553 + $0x24] sm:$0xf]
        %v1564 = vld [vmem:[%s1553 + $0x28] sm:$0xf]
        %v1565 = vld [vmem:[%s1553 + $0x2c] sm:$0xf]
        %v1566 = vld [vmem:[%s1553 + $0x30] sm:$0xf]
        %v1567 = vld [vmem:[%s1553 + $0x34] sm:$0xf]
        %v1568 = vld [vmem:[%s1553 + $0x38] sm:$0xf]
        %v1569 = vld [vmem:[%s1553 + $0x3c] sm:$0xf]
        %v1586 = vunpack.c.l.b16 %v1554
        %v1587 = vunpack.c.l.b16 %v1555
        %v1588 = vunpack.c.l.b16 %v1556
        %v1589 = vunpack.c.l.b16 %v1557
        %v1590 = vunpack.c.l.b16 %v1558
        %v1591 = vunpack.c.l.b16 %v1559
        %v1592 = vunpack.c.l.b16 %v1560
        %v1593 = vunpack.c.l.b16 %v1561
        %v1594 = vunpack.c.l.b16 %v1562
        %v1595 = vunpack.c.l.b16 %v1563
        %v1596 = vunpack.c.l.b16 %v1564
        %v1597 = vunpack.c.l.b16 %v1565
        %v1598 = vunpack.c.l.b16 %v1566
        %v1599 = vunpack.c.l.b16 %v1567
        %v1600 = vunpack.c.l.b16 %v1568
        %v1601 = vunpack.c.l.b16 %v1569
        %v1602 = vpack.c.b16 %v1587, %v1586
        %v1603 = vpack.c.b16 %v1589, %v1588
        %v1604 = vpack.c.b16 %v1591, %v1590
        %v1605 = vpack.c.b16 %v1593, %v1592
        %v1606 = vpack.c.b16 %v1595, %v1594
        %v1607 = vpack.c.b16 %v1597, %v1596
        %v1608 = vpack.c.b16 %v1599, %v1598
        %v1609 = vpack.c.b16 %v1601, %v1600
        %1618 = vmatpush.bf16.msra.mxu0 %v1609
        %1619 = vmatpush.bf16.msra.mxu0 %v1608
        %1620 = vmatpush.bf16.msra.mxu0 %v1607
        %1621 = vmatpush.bf16.msra.mxu0 %v1606
        %1622 = vmatpush.bf16.msra.mxu0 %v1605
        %1623 = vmatpush.bf16.msra.mxu0 %v1604
        %1624 = vmatpush.bf16.msra.mxu0 %v1603
        %1625 = vmatpush.bf16.msra.mxu0 %v1602
        %1626 = vmatmul.bf16.gmra.mxu0 %v1537
        %v1627 = vpop.f32.mrf.mxu0
        %v1628 = vadd.f32 0.0, %v1627
        %v1629 = vpop.f32.mrf.mxu0
        %v1630 = vadd.f32 0.0, %v1629
        %1631 = vmatmul.bf16.gmra.mxu0 %v1538
        %v1632 = vpop.f32.mrf.mxu0
        %v1633 = vadd.f32 0.0, %v1632
        %v1634 = vpop.f32.mrf.mxu0
        %v1635 = vadd.f32 0.0, %v1634
        %1636 = vmatmul.bf16.gmra.mxu0 %v1539
        %v1637 = vpop.f32.mrf.mxu0
        %v1638 = vadd.f32 0.0, %v1637
        %v1639 = vpop.f32.mrf.mxu0
        %v1640 = vadd.f32 0.0, %v1639
        %1641 = vmatmul.bf16.gmra.mxu0 %v1540
        %v1642 = vpop.f32.mrf.mxu0
        %v1643 = vadd.f32 0.0, %v1642
        %v1644 = vpop.f32.mrf.mxu0
        %v1645 = vadd.f32 0.0, %v1644
        %1646 = vmatmul.bf16.gmra.mxu0 %v1541
        %v1647 = vpop.f32.mrf.mxu0
        %v1648 = vadd.f32 0.0, %v1647
        %v1649 = vpop.f32.mrf.mxu0
        %v1650 = vadd.f32 0.0, %v1649
        %1651 = vmatmul.bf16.gmra.mxu0 %v1542
        %v1652 = vpop.f32.mrf.mxu0
        %v1653 = vadd.f32 0.0, %v1652
        %v1654 = vpop.f32.mrf.mxu0
        %v1655 = vadd.f32 0.0, %v1654
        %1656 = vmatmul.bf16.gmra.mxu0 %v1543
        %v1657 = vpop.f32.mrf.mxu0
        %v1658 = vadd.f32 0.0, %v1657
        %v1659 = vpop.f32.mrf.mxu0
        %v1660 = vadd.f32 0.0, %v1659
        %1661 = vmatmul.bf16.gmra.mxu0 %v1544
        %v1662 = vpop.f32.mrf.mxu0
        %v1663 = vadd.f32 0.0, %v1662
        %v1664 = vpop.f32.mrf.mxu0
        %v1665 = vadd.f32 0.0, %v1664
        %1666 = vmatmul.bf16.gmra.mxu0 %v1545
        %v1667 = vpop.f32.mrf.mxu0
        %v1668 = vadd.f32 0.0, %v1667
        %v1669 = vpop.f32.mrf.mxu0
        %v1670 = vadd.f32 0.0, %v1669
        %1671 = vmatmul.bf16.gmra.mxu0 %v1546
        %v1672 = vpop.f32.mrf.mxu0
        %v1673 = vadd.f32 0.0, %v1672
        %v1674 = vpop.f32.mrf.mxu0
        %v1675 = vadd.f32 0.0, %v1674
        %1676 = vmatmul.bf16.gmra.mxu0 %v1547
        %v1677 = vpop.f32.mrf.mxu0
        %v1678 = vadd.f32 0.0, %v1677
        %v1679 = vpop.f32.mrf.mxu0
        %v1680 = vadd.f32 0.0, %v1679
        %1681 = vmatmul.bf16.gmra.mxu0 %v1548
        %v1682 = vpop.f32.mrf.mxu0
        %v1683 = vadd.f32 0.0, %v1682
        %v1684 = vpop.f32.mrf.mxu0
        %v1685 = vadd.f32 0.0, %v1684
        %1686 = vmatmul.bf16.gmra.mxu0 %v1549
        %v1687 = vpop.f32.mrf.mxu0
        %v1688 = vadd.f32 0.0, %v1687
        %v1689 = vpop.f32.mrf.mxu0
        %v1690 = vadd.f32 0.0, %v1689
        %1691 = vmatmul.bf16.gmra.mxu0 %v1550
        %v1692 = vpop.f32.mrf.mxu0
        %v1693 = vadd.f32 0.0, %v1692
        %v1694 = vpop.f32.mrf.mxu0
        %v1695 = vadd.f32 0.0, %v1694
        %1696 = vmatmul.bf16.gmra.mxu0 %v1551
        %v1697 = vpop.f32.mrf.mxu0
        %v1698 = vadd.f32 0.0, %v1697
        %v1699 = vpop.f32.mrf.mxu0
        %v1700 = vadd.f32 0.0, %v1699
        %1701 = vmatmul.bf16.gmra.mxu0 %v1552
        %v1702 = vpop.f32.mrf.mxu0
        %v1703 = vadd.f32 0.0, %v1702
        %v1704 = vpop.f32.mrf.mxu0
        %v1705 = vadd.f32 0.0, %v1704
        %1706 = vdwg.mxu0
        %v1707 = vadd.f32 %v1473, %v1628
        %v1708 = vadd.f32 %v1474, %v1630
        %v1709 = vadd.f32 %v1475, %v1633
        %v1710 = vadd.f32 %v1476, %v1635
        %v1711 = vadd.f32 %v1477, %v1638
        %v1712 = vadd.f32 %v1478, %v1640
        %v1713 = vadd.f32 %v1479, %v1643
        %v1714 = vadd.f32 %v1480, %v1645
        %v1715 = vadd.f32 %v1481, %v1648
        %v1716 = vadd.f32 %v1482, %v1650
        %v1717 = vadd.f32 %v1483, %v1653
        %v1718 = vadd.f32 %v1484, %v1655
        %v1719 = vadd.f32 %v1485, %v1658
        %v1720 = vadd.f32 %v1486, %v1660
        %v1721 = vadd.f32 %v1487, %v1663
        %v1722 = vadd.f32 %v1488, %v1665
        %v1723 = vadd.f32 %v1489, %v1668
        %v1724 = vadd.f32 %v1490, %v1670
        %v1725 = vadd.f32 %v1491, %v1673
        %v1726 = vadd.f32 %v1492, %v1675
        %v1727 = vadd.f32 %v1493, %v1678
        %v1728 = vadd.f32 %v1494, %v1680
        %v1729 = vadd.f32 %v1495, %v1683
        %v1730 = vadd.f32 %v1496, %v1685
        %v1731 = vadd.f32 %v1497, %v1688
        %v1732 = vadd.f32 %v1498, %v1690
        %v1733 = vadd.f32 %v1499, %v1693
        %v1734 = vadd.f32 %v1500, %v1695
        %v1735 = vadd.f32 %v1501, %v1698
        %v1736 = vadd.f32 %v1502, %v1700
        %v1737 = vadd.f32 %v1503, %v1703
        %v1738 = vadd.f32 %v1504, %v1705
        %v1739 = vld [vmem:[%s835 + $0x1] sm:$0xff]
        %v1740 = vld [vmem:[%s835 + $0x9] sm:$0xff]
        %v1741 = vld [vmem:[%s835 + $0x19] sm:$0xff]
        %v1742 = vld [vmem:[%s835 + $0x21] sm:$0xff]
        %v1743 = vld [vmem:[%s835 + $0x31] sm:$0xff]
        %v1744 = vld [vmem:[%s835 + $0x39] sm:$0xff]
        %v1745 = vld [vmem:[%s835 + $0x49] sm:$0xff]
        %v1746 = vld [vmem:[%s835 + $0x51] sm:$0xff]
        %v1747 = vld [vmem:[%s835 + $0x61] sm:$0xff]
        %v1748 = vld [vmem:[%s835 + $0x69] sm:$0xff]
        %v1749 = vld [vmem:[%s835 + $0x79] sm:$0xff]
        %v1750 = vld [vmem:[%s835 + $0x81] sm:$0xff]
        %v1751 = vld [vmem:[%s835 + $0x91] sm:$0xff]
        %v1752 = vld [vmem:[%s835 + $0x99] sm:$0xff]
        %v1753 = vld [vmem:[%s835 + $0xa9] sm:$0xff]
        %v1754 = vld [vmem:[%s835 + $0xb1] sm:$0xff]
        %v1755 = vld [vmem:[%s835 + $0xc1] sm:$0xff]
        %v1756 = vld [vmem:[%s835 + $0xc9] sm:$0xff]
        %v1757 = vld [vmem:[%s835 + $0xd9] sm:$0xff]
        %v1758 = vld [vmem:[%s835 + $0xe1] sm:$0xff]
        %v1759 = vld [vmem:[%s835 + $0xf1] sm:$0xff]
        %v1760 = vld [vmem:[%s835 + $0xf9] sm:$0xff]
        %v1761 = vld [vmem:[%s835 + $0x109] sm:$0xff]
        %v1762 = vld [vmem:[%s835 + $0x111] sm:$0xff]
        %v1763 = vld [vmem:[%s835 + $0x121] sm:$0xff]
        %v1764 = vld [vmem:[%s835 + $0x129] sm:$0xff]
        %v1765 = vld [vmem:[%s835 + $0x139] sm:$0xff]
        %v1766 = vld [vmem:[%s835 + $0x141] sm:$0xff]
        %v1767 = vld [vmem:[%s835 + $0x151] sm:$0xff]
        %v1768 = vld [vmem:[%s835 + $0x159] sm:$0xff]
        %v1769 = vld [vmem:[%s835 + $0x169] sm:$0xff]
        %v1770 = vld [vmem:[%s835 + $0x171] sm:$0xff]
        %v1771 = vpack.c.bf16 %v1740, %v1739
        %v1772 = vpack.c.bf16 %v1742, %v1741
        %v1773 = vpack.c.bf16 %v1744, %v1743
        %v1774 = vpack.c.bf16 %v1746, %v1745
        %v1775 = vpack.c.bf16 %v1748, %v1747
        %v1776 = vpack.c.bf16 %v1750, %v1749
        %v1777 = vpack.c.bf16 %v1752, %v1751
        %v1778 = vpack.c.bf16 %v1754, %v1753
        %v1779 = vpack.c.bf16 %v1756, %v1755
        %v1780 = vpack.c.bf16 %v1758, %v1757
        %v1781 = vpack.c.bf16 %v1760, %v1759
        %v1782 = vpack.c.bf16 %v1762, %v1761
        %v1783 = vpack.c.bf16 %v1764, %v1763
        %v1784 = vpack.c.bf16 %v1766, %v1765
        %v1785 = vpack.c.bf16 %v1768, %v1767
        %v1786 = vpack.c.bf16 %v1770, %v1769
        %s1787 = scalar_lea.vmem [#allocation7], 256
        %v1788 = vld [vmem:[%s1787] sm:$0xf]
        %v1789 = vld [vmem:[%s1787 + $0x4] sm:$0xf]
        %v1790 = vld [vmem:[%s1787 + $0x8] sm:$0xf]
        %v1791 = vld [vmem:[%s1787 + $0xc] sm:$0xf]
        %v1792 = vld [vmem:[%s1787 + $0x10] sm:$0xf]
        %v1793 = vld [vmem:[%s1787 + $0x14] sm:$0xf]
        %v1794 = vld [vmem:[%s1787 + $0x18] sm:$0xf]
        %v1795 = vld [vmem:[%s1787 + $0x1c] sm:$0xf]
        %v1796 = vld [vmem:[%s1787 + $0x20] sm:$0xf]
        %v1797 = vld [vmem:[%s1787 + $0x24] sm:$0xf]
        %v1798 = vld [vmem:[%s1787 + $0x28] sm:$0xf]
        %v1799 = vld [vmem:[%s1787 + $0x2c] sm:$0xf]
        %v1800 = vld [vmem:[%s1787 + $0x30] sm:$0xf]
        %v1801 = vld [vmem:[%s1787 + $0x34] sm:$0xf]
        %v1802 = vld [vmem:[%s1787 + $0x38] sm:$0xf]
        %v1803 = vld [vmem:[%s1787 + $0x3c] sm:$0xf]
        %v1820 = vunpack.c.l.b16 %v1788
        %v1821 = vunpack.c.l.b16 %v1789
        %v1822 = vunpack.c.l.b16 %v1790
        %v1823 = vunpack.c.l.b16 %v1791
        %v1824 = vunpack.c.l.b16 %v1792
        %v1825 = vunpack.c.l.b16 %v1793
        %v1826 = vunpack.c.l.b16 %v1794
        %v1827 = vunpack.c.l.b16 %v1795
        %v1828 = vunpack.c.l.b16 %v1796
        %v1829 = vunpack.c.l.b16 %v1797
        %v1830 = vunpack.c.l.b16 %v1798
        %v1831 = vunpack.c.l.b16 %v1799
        %v1832 = vunpack.c.l.b16 %v1800
        %v1833 = vunpack.c.l.b16 %v1801
        %v1834 = vunpack.c.l.b16 %v1802
        %v1835 = vunpack.c.l.b16 %v1803
        %v1836 = vpack.c.b16 %v1821, %v1820
        %v1837 = vpack.c.b16 %v1823, %v1822
        %v1838 = vpack.c.b16 %v1825, %v1824
        %v1839 = vpack.c.b16 %v1827, %v1826
        %v1840 = vpack.c.b16 %v1829, %v1828
        %v1841 = vpack.c.b16 %v1831, %v1830
        %v1842 = vpack.c.b16 %v1833, %v1832
        %v1843 = vpack.c.b16 %v1835, %v1834
        %1852 = vmatpush.bf16.msra.mxu0 %v1843
        %1853 = vmatpush.bf16.msra.mxu0 %v1842
        %1854 = vmatpush.bf16.msra.mxu0 %v1841
        %1855 = vmatpush.bf16.msra.mxu0 %v1840
        %1856 = vmatpush.bf16.msra.mxu0 %v1839
        %1857 = vmatpush.bf16.msra.mxu0 %v1838
        %1858 = vmatpush.bf16.msra.mxu0 %v1837
        %1859 = vmatpush.bf16.msra.mxu0 %v1836
        %1860 = vmatmul.bf16.gmra.mxu0 %v1771
        %v1861 = vpop.f32.mrf.mxu0
        %v1862 = vadd.f32 0.0, %v1861
        %v1863 = vpop.f32.mrf.mxu0
        %v1864 = vadd.f32 0.0, %v1863
        %1865 = vmatmul.bf16.gmra.mxu0 %v1772
        %v1866 = vpop.f32.mrf.mxu0
        %v1867 = vadd.f32 0.0, %v1866
        %v1868 = vpop.f32.mrf.mxu0
        %v1869 = vadd.f32 0.0, %v1868
        %1870 = vmatmul.bf16.gmra.mxu0 %v1773
        %v1871 = vpop.f32.mrf.mxu0
        %v1872 = vadd.f32 0.0, %v1871
        %v1873 = vpop.f32.mrf.mxu0
        %v1874 = vadd.f32 0.0, %v1873
        %1875 = vmatmul.bf16.gmra.mxu0 %v1774
        %v1876 = vpop.f32.mrf.mxu0
        %v1877 = vadd.f32 0.0, %v1876
        %v1878 = vpop.f32.mrf.mxu0
        %v1879 = vadd.f32 0.0, %v1878
        %1880 = vmatmul.bf16.gmra.mxu0 %v1775
        %v1881 = vpop.f32.mrf.mxu0
        %v1882 = vadd.f32 0.0, %v1881
        %v1883 = vpop.f32.mrf.mxu0
        %v1884 = vadd.f32 0.0, %v1883
        %1885 = vmatmul.bf16.gmra.mxu0 %v1776
        %v1886 = vpop.f32.mrf.mxu0
        %v1887 = vadd.f32 0.0, %v1886
        %v1888 = vpop.f32.mrf.mxu0
        %v1889 = vadd.f32 0.0, %v1888
        %1890 = vmatmul.bf16.gmra.mxu0 %v1777
        %v1891 = vpop.f32.mrf.mxu0
        %v1892 = vadd.f32 0.0, %v1891
        %v1893 = vpop.f32.mrf.mxu0
        %v1894 = vadd.f32 0.0, %v1893
        %1895 = vmatmul.bf16.gmra.mxu0 %v1778
        %v1896 = vpop.f32.mrf.mxu0
        %v1897 = vadd.f32 0.0, %v1896
        %v1898 = vpop.f32.mrf.mxu0
        %v1899 = vadd.f32 0.0, %v1898
        %1900 = vmatmul.bf16.gmra.mxu0 %v1779
        %v1901 = vpop.f32.mrf.mxu0
        %v1902 = vadd.f32 0.0, %v1901
        %v1903 = vpop.f32.mrf.mxu0
        %v1904 = vadd.f32 0.0, %v1903
        %1905 = vmatmul.bf16.gmra.mxu0 %v1780
        %v1906 = vpop.f32.mrf.mxu0
        %v1907 = vadd.f32 0.0, %v1906
        %v1908 = vpop.f32.mrf.mxu0
        %v1909 = vadd.f32 0.0, %v1908
        %1910 = vmatmul.bf16.gmra.mxu0 %v1781
        %v1911 = vpop.f32.mrf.mxu0
        %v1912 = vadd.f32 0.0, %v1911
        %v1913 = vpop.f32.mrf.mxu0
        %v1914 = vadd.f32 0.0, %v1913
        %1915 = vmatmul.bf16.gmra.mxu0 %v1782
        %v1916 = vpop.f32.mrf.mxu0
        %v1917 = vadd.f32 0.0, %v1916
        %v1918 = vpop.f32.mrf.mxu0
        %v1919 = vadd.f32 0.0, %v1918
        %1920 = vmatmul.bf16.gmra.mxu0 %v1783
        %v1921 = vpop.f32.mrf.mxu0
        %v1922 = vadd.f32 0.0, %v1921
        %v1923 = vpop.f32.mrf.mxu0
        %v1924 = vadd.f32 0.0, %v1923
        %1925 = vmatmul.bf16.gmra.mxu0 %v1784
        %v1926 = vpop.f32.mrf.mxu0
        %v1927 = vadd.f32 0.0, %v1926
        %v1928 = vpop.f32.mrf.mxu0
        %v1929 = vadd.f32 0.0, %v1928
        %1930 = vmatmul.bf16.gmra.mxu0 %v1785
        %v1931 = vpop.f32.mrf.mxu0
        %v1932 = vadd.f32 0.0, %v1931
        %v1933 = vpop.f32.mrf.mxu0
        %v1934 = vadd.f32 0.0, %v1933
        %1935 = vmatmul.bf16.gmra.mxu0 %v1786
        %v1936 = vpop.f32.mrf.mxu0
        %v1937 = vadd.f32 0.0, %v1936
        %v1938 = vpop.f32.mrf.mxu0
        %v1939 = vadd.f32 0.0, %v1938
        %1940 = vdwg.mxu0
        %v1941 = vadd.f32 %v1707, %v1862
        %v1942 = vadd.f32 %v1708, %v1864
        %v1943 = vadd.f32 %v1709, %v1867
        %v1944 = vadd.f32 %v1710, %v1869
        %v1945 = vadd.f32 %v1711, %v1872
        %v1946 = vadd.f32 %v1712, %v1874
        %v1947 = vadd.f32 %v1713, %v1877
        %v1948 = vadd.f32 %v1714, %v1879
        %v1949 = vadd.f32 %v1715, %v1882
        %v1950 = vadd.f32 %v1716, %v1884
        %v1951 = vadd.f32 %v1717, %v1887
        %v1952 = vadd.f32 %v1718, %v1889
        %v1953 = vadd.f32 %v1719, %v1892
        %v1954 = vadd.f32 %v1720, %v1894
        %v1955 = vadd.f32 %v1721, %v1897
        %v1956 = vadd.f32 %v1722, %v1899
        %v1957 = vadd.f32 %v1723, %v1902
        %v1958 = vadd.f32 %v1724, %v1904
        %v1959 = vadd.f32 %v1725, %v1907
        %v1960 = vadd.f32 %v1726, %v1909
        %v1961 = vadd.f32 %v1727, %v1912
        %v1962 = vadd.f32 %v1728, %v1914
        %v1963 = vadd.f32 %v1729, %v1917
        %v1964 = vadd.f32 %v1730, %v1919
        %v1965 = vadd.f32 %v1731, %v1922
        %v1966 = vadd.f32 %v1732, %v1924
        %v1967 = vadd.f32 %v1733, %v1927
        %v1968 = vadd.f32 %v1734, %v1929
        %v1969 = vadd.f32 %v1735, %v1932
        %v1970 = vadd.f32 %v1736, %v1934
        %v1971 = vadd.f32 %v1737, %v1937
        %v1972 = vadd.f32 %v1738, %v1939
        %v1973 = vld [vmem:[%s835 + $0x2] sm:$0xff]
        %v1974 = vld [vmem:[%s835 + $0xa] sm:$0xff]
        %v1975 = vld [vmem:[%s835 + $0x1a] sm:$0xff]
        %v1976 = vld [vmem:[%s835 + $0x22] sm:$0xff]
        %v1977 = vld [vmem:[%s835 + $0x32] sm:$0xff]
        %v1978 = vld [vmem:[%s835 + $0x3a] sm:$0xff]
        %v1979 = vld [vmem:[%s835 + $0x4a] sm:$0xff]
        %v1980 = vld [vmem:[%s835 + $0x52] sm:$0xff]
        %v1981 = vld [vmem:[%s835 + $0x62] sm:$0xff]
        %v1982 = vld [vmem:[%s835 + $0x6a] sm:$0xff]
        %v1983 = vld [vmem:[%s835 + $0x7a] sm:$0xff]
        %v1984 = vld [vmem:[%s835 + $0x82] sm:$0xff]
        %v1985 = vld [vmem:[%s835 + $0x92] sm:$0xff]
        %v1986 = vld [vmem:[%s835 + $0x9a] sm:$0xff]
        %v1987 = vld [vmem:[%s835 + $0xaa] sm:$0xff]
        %v1988 = vld [vmem:[%s835 + $0xb2] sm:$0xff]
        %v1989 = vld [vmem:[%s835 + $0xc2] sm:$0xff]
        %v1990 = vld [vmem:[%s835 + $0xca] sm:$0xff]
        %v1991 = vld [vmem:[%s835 + $0xda] sm:$0xff]
        %v1992 = vld [vmem:[%s835 + $0xe2] sm:$0xff]
        %v1993 = vld [vmem:[%s835 + $0xf2] sm:$0xff]
        %v1994 = vld [vmem:[%s835 + $0xfa] sm:$0xff]
        %v1995 = vld [vmem:[%s835 + $0x10a] sm:$0xff]
        %v1996 = vld [vmem:[%s835 + $0x112] sm:$0xff]
        %v1997 = vld [vmem:[%s835 + $0x122] sm:$0xff]
        %v1998 = vld [vmem:[%s835 + $0x12a] sm:$0xff]
        %v1999 = vld [vmem:[%s835 + $0x13a] sm:$0xff]
        %v2000 = vld [vmem:[%s835 + $0x142] sm:$0xff]
        %v2001 = vld [vmem:[%s835 + $0x152] sm:$0xff]
        %v2002 = vld [vmem:[%s835 + $0x15a] sm:$0xff]
        %v2003 = vld [vmem:[%s835 + $0x16a] sm:$0xff]
        %v2004 = vld [vmem:[%s835 + $0x172] sm:$0xff]
        %v2005 = vpack.c.bf16 %v1974, %v1973
        %v2006 = vpack.c.bf16 %v1976, %v1975
        %v2007 = vpack.c.bf16 %v1978, %v1977
        %v2008 = vpack.c.bf16 %v1980, %v1979
        %v2009 = vpack.c.bf16 %v1982, %v1981
        %v2010 = vpack.c.bf16 %v1984, %v1983
        %v2011 = vpack.c.bf16 %v1986, %v1985
        %v2012 = vpack.c.bf16 %v1988, %v1987
        %v2013 = vpack.c.bf16 %v1990, %v1989
        %v2014 = vpack.c.bf16 %v1992, %v1991
        %v2015 = vpack.c.bf16 %v1994, %v1993
        %v2016 = vpack.c.bf16 %v1996, %v1995
        %v2017 = vpack.c.bf16 %v1998, %v1997
        %v2018 = vpack.c.bf16 %v2000, %v1999
        %v2019 = vpack.c.bf16 %v2002, %v2001
        %v2020 = vpack.c.bf16 %v2004, %v2003
        %s2021 = scalar_lea.vmem [#allocation7], 320
        %v2022 = vld [vmem:[%s2021] sm:$0xf]
        %v2023 = vld [vmem:[%s2021 + $0x4] sm:$0xf]
        %v2024 = vld [vmem:[%s2021 + $0x8] sm:$0xf]
        %v2025 = vld [vmem:[%s2021 + $0xc] sm:$0xf]
        %v2026 = vld [vmem:[%s2021 + $0x10] sm:$0xf]
        %v2027 = vld [vmem:[%s2021 + $0x14] sm:$0xf]
        %v2028 = vld [vmem:[%s2021 + $0x18] sm:$0xf]
        %v2029 = vld [vmem:[%s2021 + $0x1c] sm:$0xf]
        %v2030 = vld [vmem:[%s2021 + $0x20] sm:$0xf]
        %v2031 = vld [vmem:[%s2021 + $0x24] sm:$0xf]
        %v2032 = vld [vmem:[%s2021 + $0x28] sm:$0xf]
        %v2033 = vld [vmem:[%s2021 + $0x2c] sm:$0xf]
        %v2034 = vld [vmem:[%s2021 + $0x30] sm:$0xf]
        %v2035 = vld [vmem:[%s2021 + $0x34] sm:$0xf]
        %v2036 = vld [vmem:[%s2021 + $0x38] sm:$0xf]
        %v2037 = vld [vmem:[%s2021 + $0x3c] sm:$0xf]
        %v2054 = vunpack.c.l.b16 %v2022
        %v2055 = vunpack.c.l.b16 %v2023
        %v2056 = vunpack.c.l.b16 %v2024
        %v2057 = vunpack.c.l.b16 %v2025
        %v2058 = vunpack.c.l.b16 %v2026
        %v2059 = vunpack.c.l.b16 %v2027
        %v2060 = vunpack.c.l.b16 %v2028
        %v2061 = vunpack.c.l.b16 %v2029
        %v2062 = vunpack.c.l.b16 %v2030
        %v2063 = vunpack.c.l.b16 %v2031
        %v2064 = vunpack.c.l.b16 %v2032
        %v2065 = vunpack.c.l.b16 %v2033
        %v2066 = vunpack.c.l.b16 %v2034
        %v2067 = vunpack.c.l.b16 %v2035
        %v2068 = vunpack.c.l.b16 %v2036
        %v2069 = vunpack.c.l.b16 %v2037
        %v2070 = vpack.c.b16 %v2055, %v2054
        %v2071 = vpack.c.b16 %v2057, %v2056
        %v2072 = vpack.c.b16 %v2059, %v2058
        %v2073 = vpack.c.b16 %v2061, %v2060
        %v2074 = vpack.c.b16 %v2063, %v2062
        %v2075 = vpack.c.b16 %v2065, %v2064
        %v2076 = vpack.c.b16 %v2067, %v2066
        %v2077 = vpack.c.b16 %v2069, %v2068
        %2086 = vmatpush.bf16.msra.mxu0 %v2077
        %2087 = vmatpush.bf16.msra.mxu0 %v2076
        %2088 = vmatpush.bf16.msra.mxu0 %v2075
        %2089 = vmatpush.bf16.msra.mxu0 %v2074
        %2090 = vmatpush.bf16.msra.mxu0 %v2073
        %2091 = vmatpush.bf16.msra.mxu0 %v2072
        %2092 = vmatpush.bf16.msra.mxu0 %v2071
        %2093 = vmatpush.bf16.msra.mxu0 %v2070
        %2094 = vmatmul.bf16.gmra.mxu0 %v2005
        %v2095 = vpop.f32.mrf.mxu0
        %v2096 = vadd.f32 0.0, %v2095
        %v2097 = vpop.f32.mrf.mxu0
        %v2098 = vadd.f32 0.0, %v2097
        %2099 = vmatmul.bf16.gmra.mxu0 %v2006
        %v2100 = vpop.f32.mrf.mxu0
        %v2101 = vadd.f32 0.0, %v2100
        %v2102 = vpop.f32.mrf.mxu0
        %v2103 = vadd.f32 0.0, %v2102
        %2104 = vmatmul.bf16.gmra.mxu0 %v2007
        %v2105 = vpop.f32.mrf.mxu0
        %v2106 = vadd.f32 0.0, %v2105
        %v2107 = vpop.f32.mrf.mxu0
        %v2108 = vadd.f32 0.0, %v2107
        %2109 = vmatmul.bf16.gmra.mxu0 %v2008
        %v2110 = vpop.f32.mrf.mxu0
        %v2111 = vadd.f32 0.0, %v2110
        %v2112 = vpop.f32.mrf.mxu0
        %v2113 = vadd.f32 0.0, %v2112
        %2114 = vmatmul.bf16.gmra.mxu0 %v2009
        %v2115 = vpop.f32.mrf.mxu0
        %v2116 = vadd.f32 0.0, %v2115
        %v2117 = vpop.f32.mrf.mxu0
        %v2118 = vadd.f32 0.0, %v2117
        %2119 = vmatmul.bf16.gmra.mxu0 %v2010
        %v2120 = vpop.f32.mrf.mxu0
        %v2121 = vadd.f32 0.0, %v2120
        %v2122 = vpop.f32.mrf.mxu0
        %v2123 = vadd.f32 0.0, %v2122
        %2124 = vmatmul.bf16.gmra.mxu0 %v2011
        %v2125 = vpop.f32.mrf.mxu0
        %v2126 = vadd.f32 0.0, %v2125
        %v2127 = vpop.f32.mrf.mxu0
        %v2128 = vadd.f32 0.0, %v2127
        %2129 = vmatmul.bf16.gmra.mxu0 %v2012
        %v2130 = vpop.f32.mrf.mxu0
        %v2131 = vadd.f32 0.0, %v2130
        %v2132 = vpop.f32.mrf.mxu0
        %v2133 = vadd.f32 0.0, %v2132
        %2134 = vmatmul.bf16.gmra.mxu0 %v2013
        %v2135 = vpop.f32.mrf.mxu0
        %v2136 = vadd.f32 0.0, %v2135
        %v2137 = vpop.f32.mrf.mxu0
        %v2138 = vadd.f32 0.0, %v2137
        %2139 = vmatmul.bf16.gmra.mxu0 %v2014
        %v2140 = vpop.f32.mrf.mxu0
        %v2141 = vadd.f32 0.0, %v2140
        %v2142 = vpop.f32.mrf.mxu0
        %v2143 = vadd.f32 0.0, %v2142
        %2144 = vmatmul.bf16.gmra.mxu0 %v2015
        %v2145 = vpop.f32.mrf.mxu0
        %v2146 = vadd.f32 0.0, %v2145
        %v2147 = vpop.f32.mrf.mxu0
        %v2148 = vadd.f32 0.0, %v2147
        %2149 = vmatmul.bf16.gmra.mxu0 %v2016
        %v2150 = vpop.f32.mrf.mxu0
        %v2151 = vadd.f32 0.0, %v2150
        %v2152 = vpop.f32.mrf.mxu0
        %v2153 = vadd.f32 0.0, %v2152
        %2154 = vmatmul.bf16.gmra.mxu0 %v2017
        %v2155 = vpop.f32.mrf.mxu0
        %v2156 = vadd.f32 0.0, %v2155
        %v2157 = vpop.f32.mrf.mxu0
        %v2158 = vadd.f32 0.0, %v2157
        %2159 = vmatmul.bf16.gmra.mxu0 %v2018
        %v2160 = vpop.f32.mrf.mxu0
        %v2161 = vadd.f32 0.0, %v2160
        %v2162 = vpop.f32.mrf.mxu0
        %v2163 = vadd.f32 0.0, %v2162
        %2164 = vmatmul.bf16.gmra.mxu0 %v2019
        %v2165 = vpop.f32.mrf.mxu0
        %v2166 = vadd.f32 0.0, %v2165
        %v2167 = vpop.f32.mrf.mxu0
        %v2168 = vadd.f32 0.0, %v2167
        %2169 = vmatmul.bf16.gmra.mxu0 %v2020
        %v2170 = vpop.f32.mrf.mxu0
        %v2171 = vadd.f32 0.0, %v2170
        %v2172 = vpop.f32.mrf.mxu0
        %v2173 = vadd.f32 0.0, %v2172
        %2174 = vdwg.mxu0
        %v2175 = vadd.f32 %v1941, %v2096
        %v2176 = vadd.f32 %v1942, %v2098
        %v2177 = vadd.f32 %v1943, %v2101
        %v2178 = vadd.f32 %v1944, %v2103
        %v2179 = vadd.f32 %v1945, %v2106
        %v2180 = vadd.f32 %v1946, %v2108
        %v2181 = vadd.f32 %v1947, %v2111
        %v2182 = vadd.f32 %v1948, %v2113
        %v2183 = vadd.f32 %v1949, %v2116
        %v2184 = vadd.f32 %v1950, %v2118
        %v2185 = vadd.f32 %v1951, %v2121
        %v2186 = vadd.f32 %v1952, %v2123
        %v2187 = vadd.f32 %v1953, %v2126
        %v2188 = vadd.f32 %v1954, %v2128
        %v2189 = vadd.f32 %v1955, %v2131
        %v2190 = vadd.f32 %v1956, %v2133
        %v2191 = vadd.f32 %v1957, %v2136
        %v2192 = vadd.f32 %v1958, %v2138
        %v2193 = vadd.f32 %v1959, %v2141
        %v2194 = vadd.f32 %v1960, %v2143
        %v2195 = vadd.f32 %v1961, %v2146
        %v2196 = vadd.f32 %v1962, %v2148
        %v2197 = vadd.f32 %v1963, %v2151
        %v2198 = vadd.f32 %v1964, %v2153
        %v2199 = vadd.f32 %v1965, %v2156
        %v2200 = vadd.f32 %v1966, %v2158
        %v2201 = vadd.f32 %v1967, %v2161
        %v2202 = vadd.f32 %v1968, %v2163
        %v2203 = vadd.f32 %v1969, %v2166
        %v2204 = vadd.f32 %v1970, %v2168
        %v2205 = vadd.f32 %v1971, %v2171
        %v2206 = vadd.f32 %v1972, %v2173
        %s2207 = scalar_lea.vmem [#allocation2], 48
        %v2208 = vld [vmem:[%s2207] sm:$0xff]
        %v2209 = vld [vmem:[%s2207 + $0x8] sm:$0xff]
        %v2210 = vld [vmem:[%s2207 + $0x18] sm:$0xff]
        %v2211 = vld [vmem:[%s2207 + $0x20] sm:$0xff]
        %v2212 = vld [vmem:[%s2207 + $0x30] sm:$0xff]
        %v2213 = vld [vmem:[%s2207 + $0x38] sm:$0xff]
        %v2214 = vld [vmem:[%s2207 + $0x48] sm:$0xff]
        %v2215 = vld [vmem:[%s2207 + $0x50] sm:$0xff]
        %v2216 = vld [vmem:[%s2207 + $0x60] sm:$0xff]
        %v2217 = vld [vmem:[%s2207 + $0x68] sm:$0xff]
        %v2218 = vld [vmem:[%s2207 + $0x78] sm:$0xff]
        %v2219 = vld [vmem:[%s2207 + $0x80] sm:$0xff]
        %v2220 = vld [vmem:[%s2207 + $0x90] sm:$0xff]
        %v2221 = vld [vmem:[%s2207 + $0x98] sm:$0xff]
        %v2222 = vld [vmem:[%s2207 + $0xa8] sm:$0xff]
        %v2223 = vld [vmem:[%s2207 + $0xb0] sm:$0xff]
        %v2224 = vld [vmem:[%s2207 + $0xc0] sm:$0xff]
        %v2225 = vld [vmem:[%s2207 + $0xc8] sm:$0xff]
        %v2226 = vld [vmem:[%s2207 + $0xd8] sm:$0xff]
        %v2227 = vld [vmem:[%s2207 + $0xe0] sm:$0xff]
        %v2228 = vld [vmem:[%s2207 + $0xf0] sm:$0xff]
        %v2229 = vld [vmem:[%s2207 + $0xf8] sm:$0xff]
        %v2230 = vld [vmem:[%s2207 + $0x108] sm:$0xff]
        %v2231 = vld [vmem:[%s2207 + $0x110] sm:$0xff]
        %v2232 = vld [vmem:[%s2207 + $0x120] sm:$0xff]
        %v2233 = vld [vmem:[%s2207 + $0x128] sm:$0xff]
        %v2234 = vld [vmem:[%s2207 + $0x138] sm:$0xff]
        %v2235 = vld [vmem:[%s2207 + $0x140] sm:$0xff]
        %v2236 = vld [vmem:[%s2207 + $0x150] sm:$0xff]
        %v2237 = vld [vmem:[%s2207 + $0x158] sm:$0xff]
        %v2238 = vld [vmem:[%s2207 + $0x168] sm:$0xff]
        %v2239 = vld [vmem:[%s2207 + $0x170] sm:$0xff]
        %v2240 = vpack.c.bf16 %v2209, %v2208
        %v2241 = vpack.c.bf16 %v2211, %v2210
        %v2242 = vpack.c.bf16 %v2213, %v2212
        %v2243 = vpack.c.bf16 %v2215, %v2214
        %v2244 = vpack.c.bf16 %v2217, %v2216
        %v2245 = vpack.c.bf16 %v2219, %v2218
        %v2246 = vpack.c.bf16 %v2221, %v2220
        %v2247 = vpack.c.bf16 %v2223, %v2222
        %v2248 = vpack.c.bf16 %v2225, %v2224
        %v2249 = vpack.c.bf16 %v2227, %v2226
        %v2250 = vpack.c.bf16 %v2229, %v2228
        %v2251 = vpack.c.bf16 %v2231, %v2230
        %v2252 = vpack.c.bf16 %v2233, %v2232
        %v2253 = vpack.c.bf16 %v2235, %v2234
        %v2254 = vpack.c.bf16 %v2237, %v2236
        %v2255 = vpack.c.bf16 %v2239, %v2238
        %s2256 = scalar_lea.vmem [#allocation7], 384
        %v2257 = vld [vmem:[%s2256] sm:$0xf]
        %v2258 = vld [vmem:[%s2256 + $0x4] sm:$0xf]
        %v2259 = vld [vmem:[%s2256 + $0x8] sm:$0xf]
        %v2260 = vld [vmem:[%s2256 + $0xc] sm:$0xf]
        %v2261 = vld [vmem:[%s2256 + $0x10] sm:$0xf]
        %v2262 = vld [vmem:[%s2256 + $0x14] sm:$0xf]
        %v2263 = vld [vmem:[%s2256 + $0x18] sm:$0xf]
        %v2264 = vld [vmem:[%s2256 + $0x1c] sm:$0xf]
        %v2265 = vld [vmem:[%s2256 + $0x20] sm:$0xf]
        %v2266 = vld [vmem:[%s2256 + $0x24] sm:$0xf]
        %v2267 = vld [vmem:[%s2256 + $0x28] sm:$0xf]
        %v2268 = vld [vmem:[%s2256 + $0x2c] sm:$0xf]
        %v2269 = vld [vmem:[%s2256 + $0x30] sm:$0xf]
        %v2270 = vld [vmem:[%s2256 + $0x34] sm:$0xf]
        %v2271 = vld [vmem:[%s2256 + $0x38] sm:$0xf]
        %v2272 = vld [vmem:[%s2256 + $0x3c] sm:$0xf]
        %v2289 = vunpack.c.l.b16 %v2257
        %v2290 = vunpack.c.l.b16 %v2258
        %v2291 = vunpack.c.l.b16 %v2259
        %v2292 = vunpack.c.l.b16 %v2260
        %v2293 = vunpack.c.l.b16 %v2261
        %v2294 = vunpack.c.l.b16 %v2262
        %v2295 = vunpack.c.l.b16 %v2263
        %v2296 = vunpack.c.l.b16 %v2264
        %v2297 = vunpack.c.l.b16 %v2265
        %v2298 = vunpack.c.l.b16 %v2266
        %v2299 = vunpack.c.l.b16 %v2267
        %v2300 = vunpack.c.l.b16 %v2268
        %v2301 = vunpack.c.l.b16 %v2269
        %v2302 = vunpack.c.l.b16 %v2270
        %v2303 = vunpack.c.l.b16 %v2271
        %v2304 = vunpack.c.l.b16 %v2272
        %v2305 = vpack.c.b16 %v2290, %v2289
        %v2306 = vpack.c.b16 %v2292, %v2291
        %v2307 = vpack.c.b16 %v2294, %v2293
        %v2308 = vpack.c.b16 %v2296, %v2295
        %v2309 = vpack.c.b16 %v2298, %v2297
        %v2310 = vpack.c.b16 %v2300, %v2299
        %v2311 = vpack.c.b16 %v2302, %v2301
        %v2312 = vpack.c.b16 %v2304, %v2303
        %2321 = vmatpush.bf16.msra.mxu0 %v2312
        %2322 = vmatpush.bf16.msra.mxu0 %v2311
        %2323 = vmatpush.bf16.msra.mxu0 %v2310
        %2324 = vmatpush.bf16.msra.mxu0 %v2309
        %2325 = vmatpush.bf16.msra.mxu0 %v2308
        %2326 = vmatpush.bf16.msra.mxu0 %v2307
        %2327 = vmatpush.bf16.msra.mxu0 %v2306
        %2328 = vmatpush.bf16.msra.mxu0 %v2305
        %2329 = vmatmul.bf16.gmra.mxu0 %v2240
        %v2330 = vpop.f32.mrf.mxu0
        %v2331 = vadd.f32 0.0, %v2330
        %v2332 = vpop.f32.mrf.mxu0
        %v2333 = vadd.f32 0.0, %v2332
        %2334 = vmatmul.bf16.gmra.mxu0 %v2241
        %v2335 = vpop.f32.mrf.mxu0
        %v2336 = vadd.f32 0.0, %v2335
        %v2337 = vpop.f32.mrf.mxu0
        %v2338 = vadd.f32 0.0, %v2337
        %2339 = vmatmul.bf16.gmra.mxu0 %v2242
        %v2340 = vpop.f32.mrf.mxu0
        %v2341 = vadd.f32 0.0, %v2340
        %v2342 = vpop.f32.mrf.mxu0
        %v2343 = vadd.f32 0.0, %v2342
        %2344 = vmatmul.bf16.gmra.mxu0 %v2243
        %v2345 = vpop.f32.mrf.mxu0
        %v2346 = vadd.f32 0.0, %v2345
        %v2347 = vpop.f32.mrf.mxu0
        %v2348 = vadd.f32 0.0, %v2347
        %2349 = vmatmul.bf16.gmra.mxu0 %v2244
        %v2350 = vpop.f32.mrf.mxu0
        %v2351 = vadd.f32 0.0, %v2350
        %v2352 = vpop.f32.mrf.mxu0
        %v2353 = vadd.f32 0.0, %v2352
        %2354 = vmatmul.bf16.gmra.mxu0 %v2245
        %v2355 = vpop.f32.mrf.mxu0
        %v2356 = vadd.f32 0.0, %v2355
        %v2357 = vpop.f32.mrf.mxu0
        %v2358 = vadd.f32 0.0, %v2357
        %2359 = vmatmul.bf16.gmra.mxu0 %v2246
        %v2360 = vpop.f32.mrf.mxu0
        %v2361 = vadd.f32 0.0, %v2360
        %v2362 = vpop.f32.mrf.mxu0
        %v2363 = vadd.f32 0.0, %v2362
        %2364 = vmatmul.bf16.gmra.mxu0 %v2247
        %v2365 = vpop.f32.mrf.mxu0
        %v2366 = vadd.f32 0.0, %v2365
        %v2367 = vpop.f32.mrf.mxu0
        %v2368 = vadd.f32 0.0, %v2367
        %2369 = vmatmul.bf16.gmra.mxu0 %v2248
        %v2370 = vpop.f32.mrf.mxu0
        %v2371 = vadd.f32 0.0, %v2370
        %v2372 = vpop.f32.mrf.mxu0
        %v2373 = vadd.f32 0.0, %v2372
        %2374 = vmatmul.bf16.gmra.mxu0 %v2249
        %v2375 = vpop.f32.mrf.mxu0
        %v2376 = vadd.f32 0.0, %v2375
        %v2377 = vpop.f32.mrf.mxu0
        %v2378 = vadd.f32 0.0, %v2377
        %2379 = vmatmul.bf16.gmra.mxu0 %v2250
        %v2380 = vpop.f32.mrf.mxu0
        %v2381 = vadd.f32 0.0, %v2380
        %v2382 = vpop.f32.mrf.mxu0
        %v2383 = vadd.f32 0.0, %v2382
        %2384 = vmatmul.bf16.gmra.mxu0 %v2251
        %v2385 = vpop.f32.mrf.mxu0
        %v2386 = vadd.f32 0.0, %v2385
        %v2387 = vpop.f32.mrf.mxu0
        %v2388 = vadd.f32 0.0, %v2387
        %2389 = vmatmul.bf16.gmra.mxu0 %v2252
        %v2390 = vpop.f32.mrf.mxu0
        %v2391 = vadd.f32 0.0, %v2390
        %v2392 = vpop.f32.mrf.mxu0
        %v2393 = vadd.f32 0.0, %v2392
        %2394 = vmatmul.bf16.gmra.mxu0 %v2253
        %v2395 = vpop.f32.mrf.mxu0
        %v2396 = vadd.f32 0.0, %v2395
        %v2397 = vpop.f32.mrf.mxu0
        %v2398 = vadd.f32 0.0, %v2397
        %2399 = vmatmul.bf16.gmra.mxu0 %v2254
        %v2400 = vpop.f32.mrf.mxu0
        %v2401 = vadd.f32 0.0, %v2400
        %v2402 = vpop.f32.mrf.mxu0
        %v2403 = vadd.f32 0.0, %v2402
        %2404 = vmatmul.bf16.gmra.mxu0 %v2255
        %v2405 = vpop.f32.mrf.mxu0
        %v2406 = vadd.f32 0.0, %v2405
        %v2407 = vpop.f32.mrf.mxu0
        %v2408 = vadd.f32 0.0, %v2407
        %2409 = vdwg.mxu0
        %v2410 = vadd.f32 %v2175, %v2331
        %v2411 = vadd.f32 %v2176, %v2333
        %v2412 = vadd.f32 %v2177, %v2336
        %v2413 = vadd.f32 %v2178, %v2338
        %v2414 = vadd.f32 %v2179, %v2341
        %v2415 = vadd.f32 %v2180, %v2343
        %v2416 = vadd.f32 %v2181, %v2346
        %v2417 = vadd.f32 %v2182, %v2348
        %v2418 = vadd.f32 %v2183, %v2351
        %v2419 = vadd.f32 %v2184, %v2353
        %v2420 = vadd.f32 %v2185, %v2356
        %v2421 = vadd.f32 %v2186, %v2358
        %v2422 = vadd.f32 %v2187, %v2361
        %v2423 = vadd.f32 %v2188, %v2363
        %v2424 = vadd.f32 %v2189, %v2366
        %v2425 = vadd.f32 %v2190, %v2368
        %v2426 = vadd.f32 %v2191, %v2371
        %v2427 = vadd.f32 %v2192, %v2373
        %v2428 = vadd.f32 %v2193, %v2376
        %v2429 = vadd.f32 %v2194, %v2378
        %v2430 = vadd.f32 %v2195, %v2381
        %v2431 = vadd.f32 %v2196, %v2383
        %v2432 = vadd.f32 %v2197, %v2386
        %v2433 = vadd.f32 %v2198, %v2388
        %v2434 = vadd.f32 %v2199, %v2391
        %v2435 = vadd.f32 %v2200, %v2393
        %v2436 = vadd.f32 %v2201, %v2396
        %v2437 = vadd.f32 %v2202, %v2398
        %v2438 = vadd.f32 %v2203, %v2401
        %v2439 = vadd.f32 %v2204, %v2403
        %v2440 = vadd.f32 %v2205, %v2406
        %v2441 = vadd.f32 %v2206, %v2408
        %v2442 = vld [vmem:[%s2207 + $0x1] sm:$0xff]
        %v2443 = vld [vmem:[%s2207 + $0x9] sm:$0xff]
        %v2444 = vld [vmem:[%s2207 + $0x19] sm:$0xff]
        %v2445 = vld [vmem:[%s2207 + $0x21] sm:$0xff]
        %v2446 = vld [vmem:[%s2207 + $0x31] sm:$0xff]
        %v2447 = vld [vmem:[%s2207 + $0x39] sm:$0xff]
        %v2448 = vld [vmem:[%s2207 + $0x49] sm:$0xff]
        %v2449 = vld [vmem:[%s2207 + $0x51] sm:$0xff]
        %v2450 = vld [vmem:[%s2207 + $0x61] sm:$0xff]
        %v2451 = vld [vmem:[%s2207 + $0x69] sm:$0xff]
        %v2452 = vld [vmem:[%s2207 + $0x79] sm:$0xff]
        %v2453 = vld [vmem:[%s2207 + $0x81] sm:$0xff]
        %v2454 = vld [vmem:[%s2207 + $0x91] sm:$0xff]
        %v2455 = vld [vmem:[%s2207 + $0x99] sm:$0xff]
        %v2456 = vld [vmem:[%s2207 + $0xa9] sm:$0xff]
        %v2457 = vld [vmem:[%s2207 + $0xb1] sm:$0xff]
        %v2458 = vld [vmem:[%s2207 + $0xc1] sm:$0xff]
        %v2459 = vld [vmem:[%s2207 + $0xc9] sm:$0xff]
        %v2460 = vld [vmem:[%s2207 + $0xd9] sm:$0xff]
        %v2461 = vld [vmem:[%s2207 + $0xe1] sm:$0xff]
        %v2462 = vld [vmem:[%s2207 + $0xf1] sm:$0xff]
        %v2463 = vld [vmem:[%s2207 + $0xf9] sm:$0xff]
        %v2464 = vld [vmem:[%s2207 + $0x109] sm:$0xff]
        %v2465 = vld [vmem:[%s2207 + $0x111] sm:$0xff]
        %v2466 = vld [vmem:[%s2207 + $0x121] sm:$0xff]
        %v2467 = vld [vmem:[%s2207 + $0x129] sm:$0xff]
        %v2468 = vld [vmem:[%s2207 + $0x139] sm:$0xff]
        %v2469 = vld [vmem:[%s2207 + $0x141] sm:$0xff]
        %v2470 = vld [vmem:[%s2207 + $0x151] sm:$0xff]
        %v2471 = vld [vmem:[%s2207 + $0x159] sm:$0xff]
        %v2472 = vld [vmem:[%s2207 + $0x169] sm:$0xff]
        %v2473 = vld [vmem:[%s2207 + $0x171] sm:$0xff]
        %v2474 = vpack.c.bf16 %v2443, %v2442
        %v2475 = vpack.c.bf16 %v2445, %v2444
        %v2476 = vpack.c.bf16 %v2447, %v2446
        %v2477 = vpack.c.bf16 %v2449, %v2448
        %v2478 = vpack.c.bf16 %v2451, %v2450
        %v2479 = vpack.c.bf16 %v2453, %v2452
        %v2480 = vpack.c.bf16 %v2455, %v2454
        %v2481 = vpack.c.bf16 %v2457, %v2456
        %v2482 = vpack.c.bf16 %v2459, %v2458
        %v2483 = vpack.c.bf16 %v2461, %v2460
        %v2484 = vpack.c.bf16 %v2463, %v2462
        %v2485 = vpack.c.bf16 %v2465, %v2464
        %v2486 = vpack.c.bf16 %v2467, %v2466
        %v2487 = vpack.c.bf16 %v2469, %v2468
        %v2488 = vpack.c.bf16 %v2471, %v2470
        %v2489 = vpack.c.bf16 %v2473, %v2472
        %s2490 = scalar_lea.vmem [#allocation7], 448
        %v2491 = vld [vmem:[%s2490] sm:$0xf]
        %v2492 = vld [vmem:[%s2490 + $0x4] sm:$0xf]
        %v2493 = vld [vmem:[%s2490 + $0x8] sm:$0xf]
        %v2494 = vld [vmem:[%s2490 + $0xc] sm:$0xf]
        %v2495 = vld [vmem:[%s2490 + $0x10] sm:$0xf]
        %v2496 = vld [vmem:[%s2490 + $0x14] sm:$0xf]
        %v2497 = vld [vmem:[%s2490 + $0x18] sm:$0xf]
        %v2498 = vld [vmem:[%s2490 + $0x1c] sm:$0xf]
        %v2499 = vld [vmem:[%s2490 + $0x20] sm:$0xf]
        %v2500 = vld [vmem:[%s2490 + $0x24] sm:$0xf]
        %v2501 = vld [vmem:[%s2490 + $0x28] sm:$0xf]
        %v2502 = vld [vmem:[%s2490 + $0x2c] sm:$0xf]
        %v2503 = vld [vmem:[%s2490 + $0x30] sm:$0xf]
        %v2504 = vld [vmem:[%s2490 + $0x34] sm:$0xf]
        %v2505 = vld [vmem:[%s2490 + $0x38] sm:$0xf]
        %v2506 = vld [vmem:[%s2490 + $0x3c] sm:$0xf]
        %v2523 = vunpack.c.l.b16 %v2491
        %v2524 = vunpack.c.l.b16 %v2492
        %v2525 = vunpack.c.l.b16 %v2493
        %v2526 = vunpack.c.l.b16 %v2494
        %v2527 = vunpack.c.l.b16 %v2495
        %v2528 = vunpack.c.l.b16 %v2496
        %v2529 = vunpack.c.l.b16 %v2497
        %v2530 = vunpack.c.l.b16 %v2498
        %v2531 = vunpack.c.l.b16 %v2499
        %v2532 = vunpack.c.l.b16 %v2500
        %v2533 = vunpack.c.l.b16 %v2501
        %v2534 = vunpack.c.l.b16 %v2502
        %v2535 = vunpack.c.l.b16 %v2503
        %v2536 = vunpack.c.l.b16 %v2504
        %v2537 = vunpack.c.l.b16 %v2505
        %v2538 = vunpack.c.l.b16 %v2506
        %v2539 = vpack.c.b16 %v2524, %v2523
        %v2540 = vpack.c.b16 %v2526, %v2525
        %v2541 = vpack.c.b16 %v2528, %v2527
        %v2542 = vpack.c.b16 %v2530, %v2529
        %v2543 = vpack.c.b16 %v2532, %v2531
        %v2544 = vpack.c.b16 %v2534, %v2533
        %v2545 = vpack.c.b16 %v2536, %v2535
        %v2546 = vpack.c.b16 %v2538, %v2537
        %2555 = vmatpush.bf16.msra.mxu0 %v2546
        %2556 = vmatpush.bf16.msra.mxu0 %v2545
        %2557 = vmatpush.bf16.msra.mxu0 %v2544
        %2558 = vmatpush.bf16.msra.mxu0 %v2543
        %2559 = vmatpush.bf16.msra.mxu0 %v2542
        %2560 = vmatpush.bf16.msra.mxu0 %v2541
        %2561 = vmatpush.bf16.msra.mxu0 %v2540
        %2562 = vmatpush.bf16.msra.mxu0 %v2539
        %2563 = vmatmul.bf16.gmra.mxu0 %v2474
        %v2564 = vpop.f32.mrf.mxu0
        %v2565 = vadd.f32 0.0, %v2564
        %v2566 = vpop.f32.mrf.mxu0
        %v2567 = vadd.f32 0.0, %v2566
        %2568 = vmatmul.bf16.gmra.mxu0 %v2475
        %v2569 = vpop.f32.mrf.mxu0
        %v2570 = vadd.f32 0.0, %v2569
        %v2571 = vpop.f32.mrf.mxu0
        %v2572 = vadd.f32 0.0, %v2571
        %2573 = vmatmul.bf16.gmra.mxu0 %v2476
        %v2574 = vpop.f32.mrf.mxu0
        %v2575 = vadd.f32 0.0, %v2574
        %v2576 = vpop.f32.mrf.mxu0
        %v2577 = vadd.f32 0.0, %v2576
        %2578 = vmatmul.bf16.gmra.mxu0 %v2477
        %v2579 = vpop.f32.mrf.mxu0
        %v2580 = vadd.f32 0.0, %v2579
        %v2581 = vpop.f32.mrf.mxu0
        %v2582 = vadd.f32 0.0, %v2581
        %2583 = vmatmul.bf16.gmra.mxu0 %v2478
        %v2584 = vpop.f32.mrf.mxu0
        %v2585 = vadd.f32 0.0, %v2584
        %v2586 = vpop.f32.mrf.mxu0
        %v2587 = vadd.f32 0.0, %v2586
        %2588 = vmatmul.bf16.gmra.mxu0 %v2479
        %v2589 = vpop.f32.mrf.mxu0
        %v2590 = vadd.f32 0.0, %v2589
        %v2591 = vpop.f32.mrf.mxu0
        %v2592 = vadd.f32 0.0, %v2591
        %2593 = vmatmul.bf16.gmra.mxu0 %v2480
        %v2594 = vpop.f32.mrf.mxu0
        %v2595 = vadd.f32 0.0, %v2594
        %v2596 = vpop.f32.mrf.mxu0
        %v2597 = vadd.f32 0.0, %v2596
        %2598 = vmatmul.bf16.gmra.mxu0 %v2481
        %v2599 = vpop.f32.mrf.mxu0
        %v2600 = vadd.f32 0.0, %v2599
        %v2601 = vpop.f32.mrf.mxu0
        %v2602 = vadd.f32 0.0, %v2601
        %2603 = vmatmul.bf16.gmra.mxu0 %v2482
        %v2604 = vpop.f32.mrf.mxu0
        %v2605 = vadd.f32 0.0, %v2604
        %v2606 = vpop.f32.mrf.mxu0
        %v2607 = vadd.f32 0.0, %v2606
        %2608 = vmatmul.bf16.gmra.mxu0 %v2483
        %v2609 = vpop.f32.mrf.mxu0
        %v2610 = vadd.f32 0.0, %v2609
        %v2611 = vpop.f32.mrf.mxu0
        %v2612 = vadd.f32 0.0, %v2611
        %2613 = vmatmul.bf16.gmra.mxu0 %v2484
        %v2614 = vpop.f32.mrf.mxu0
        %v2615 = vadd.f32 0.0, %v2614
        %v2616 = vpop.f32.mrf.mxu0
        %v2617 = vadd.f32 0.0, %v2616
        %2618 = vmatmul.bf16.gmra.mxu0 %v2485
        %v2619 = vpop.f32.mrf.mxu0
        %v2620 = vadd.f32 0.0, %v2619
        %v2621 = vpop.f32.mrf.mxu0
        %v2622 = vadd.f32 0.0, %v2621
        %2623 = vmatmul.bf16.gmra.mxu0 %v2486
        %v2624 = vpop.f32.mrf.mxu0
        %v2625 = vadd.f32 0.0, %v2624
        %v2626 = vpop.f32.mrf.mxu0
        %v2627 = vadd.f32 0.0, %v2626
        %2628 = vmatmul.bf16.gmra.mxu0 %v2487
        %v2629 = vpop.f32.mrf.mxu0
        %v2630 = vadd.f32 0.0, %v2629
        %v2631 = vpop.f32.mrf.mxu0
        %v2632 = vadd.f32 0.0, %v2631
        %2633 = vmatmul.bf16.gmra.mxu0 %v2488
        %v2634 = vpop.f32.mrf.mxu0
        %v2635 = vadd.f32 0.0, %v2634
        %v2636 = vpop.f32.mrf.mxu0
        %v2637 = vadd.f32 0.0, %v2636
        %2638 = vmatmul.bf16.gmra.mxu0 %v2489
        %v2639 = vpop.f32.mrf.mxu0
        %v2640 = vadd.f32 0.0, %v2639
        %v2641 = vpop.f32.mrf.mxu0
        %v2642 = vadd.f32 0.0, %v2641
        %2643 = vdwg.mxu0
        %v2644 = vadd.f32 %v2410, %v2565
        %v2645 = vadd.f32 %v2411, %v2567
        %v2646 = vadd.f32 %v2412, %v2570
        %v2647 = vadd.f32 %v2413, %v2572
        %v2648 = vadd.f32 %v2414, %v2575
        %v2649 = vadd.f32 %v2415, %v2577
        %v2650 = vadd.f32 %v2416, %v2580
        %v2651 = vadd.f32 %v2417, %v2582
        %v2652 = vadd.f32 %v2418, %v2585
        %v2653 = vadd.f32 %v2419, %v2587
        %v2654 = vadd.f32 %v2420, %v2590
        %v2655 = vadd.f32 %v2421, %v2592
        %v2656 = vadd.f32 %v2422, %v2595
        %v2657 = vadd.f32 %v2423, %v2597
        %v2658 = vadd.f32 %v2424, %v2600
        %v2659 = vadd.f32 %v2425, %v2602
        %v2660 = vadd.f32 %v2426, %v2605
        %v2661 = vadd.f32 %v2427, %v2607
        %v2662 = vadd.f32 %v2428, %v2610
        %v2663 = vadd.f32 %v2429, %v2612
        %v2664 = vadd.f32 %v2430, %v2615
        %v2665 = vadd.f32 %v2431, %v2617
        %v2666 = vadd.f32 %v2432, %v2620
        %v2667 = vadd.f32 %v2433, %v2622
        %v2668 = vadd.f32 %v2434, %v2625
        %v2669 = vadd.f32 %v2435, %v2627
        %v2670 = vadd.f32 %v2436, %v2630
        %v2671 = vadd.f32 %v2437, %v2632
        %v2672 = vadd.f32 %v2438, %v2635
        %v2673 = vadd.f32 %v2439, %v2637
        %v2674 = vadd.f32 %v2440, %v2640
        %v2675 = vadd.f32 %v2441, %v2642
        %v2676 = vld [vmem:[%s2207 + $0x2] sm:$0xff]
        %v2677 = vld [vmem:[%s2207 + $0xa] sm:$0xff]
        %v2678 = vld [vmem:[%s2207 + $0x1a] sm:$0xff]
        %v2679 = vld [vmem:[%s2207 + $0x22] sm:$0xff]
        %v2680 = vld [vmem:[%s2207 + $0x32] sm:$0xff]
        %v2681 = vld [vmem:[%s2207 + $0x3a] sm:$0xff]
        %v2682 = vld [vmem:[%s2207 + $0x4a] sm:$0xff]
        %v2683 = vld [vmem:[%s2207 + $0x52] sm:$0xff]
        %v2684 = vld [vmem:[%s2207 + $0x62] sm:$0xff]
        %v2685 = vld [vmem:[%s2207 + $0x6a] sm:$0xff]
        %v2686 = vld [vmem:[%s2207 + $0x7a] sm:$0xff]
        %v2687 = vld [vmem:[%s2207 + $0x82] sm:$0xff]
        %v2688 = vld [vmem:[%s2207 + $0x92] sm:$0xff]
        %v2689 = vld [vmem:[%s2207 + $0x9a] sm:$0xff]
        %v2690 = vld [vmem:[%s2207 + $0xaa] sm:$0xff]
        %v2691 = vld [vmem:[%s2207 + $0xb2] sm:$0xff]
        %v2692 = vld [vmem:[%s2207 + $0xc2] sm:$0xff]
        %v2693 = vld [vmem:[%s2207 + $0xca] sm:$0xff]
        %v2694 = vld [vmem:[%s2207 + $0xda] sm:$0xff]
        %v2695 = vld [vmem:[%s2207 + $0xe2] sm:$0xff]
        %v2696 = vld [vmem:[%s2207 + $0xf2] sm:$0xff]
        %v2697 = vld [vmem:[%s2207 + $0xfa] sm:$0xff]
        %v2698 = vld [vmem:[%s2207 + $0x10a] sm:$0xff]
        %v2699 = vld [vmem:[%s2207 + $0x112] sm:$0xff]
        %v2700 = vld [vmem:[%s2207 + $0x122] sm:$0xff]
        %v2701 = vld [vmem:[%s2207 + $0x12a] sm:$0xff]
        %v2702 = vld [vmem:[%s2207 + $0x13a] sm:$0xff]
        %v2703 = vld [vmem:[%s2207 + $0x142] sm:$0xff]
        %v2704 = vld [vmem:[%s2207 + $0x152] sm:$0xff]
        %v2705 = vld [vmem:[%s2207 + $0x15a] sm:$0xff]
        %v2706 = vld [vmem:[%s2207 + $0x16a] sm:$0xff]
        %v2707 = vld [vmem:[%s2207 + $0x172] sm:$0xff]
        %v2708 = vpack.c.bf16 %v2677, %v2676
        %v2709 = vpack.c.bf16 %v2679, %v2678
        %v2710 = vpack.c.bf16 %v2681, %v2680
        %v2711 = vpack.c.bf16 %v2683, %v2682
        %v2712 = vpack.c.bf16 %v2685, %v2684
        %v2713 = vpack.c.bf16 %v2687, %v2686
        %v2714 = vpack.c.bf16 %v2689, %v2688
        %v2715 = vpack.c.bf16 %v2691, %v2690
        %v2716 = vpack.c.bf16 %v2693, %v2692
        %v2717 = vpack.c.bf16 %v2695, %v2694
        %v2718 = vpack.c.bf16 %v2697, %v2696
        %v2719 = vpack.c.bf16 %v2699, %v2698
        %v2720 = vpack.c.bf16 %v2701, %v2700
        %v2721 = vpack.c.bf16 %v2703, %v2702
        %v2722 = vpack.c.bf16 %v2705, %v2704
        %v2723 = vpack.c.bf16 %v2707, %v2706
        %s2724 = scalar_lea.vmem [#allocation7], 512
        %v2725 = vld [vmem:[%s2724] sm:$0xf]
        %v2726 = vld [vmem:[%s2724 + $0x4] sm:$0xf]
        %v2727 = vld [vmem:[%s2724 + $0x8] sm:$0xf]
        %v2728 = vld [vmem:[%s2724 + $0xc] sm:$0xf]
        %v2729 = vld [vmem:[%s2724 + $0x10] sm:$0xf]
        %v2730 = vld [vmem:[%s2724 + $0x14] sm:$0xf]
        %v2731 = vld [vmem:[%s2724 + $0x18] sm:$0xf]
        %v2732 = vld [vmem:[%s2724 + $0x1c] sm:$0xf]
        %v2733 = vld [vmem:[%s2724 + $0x20] sm:$0xf]
        %v2734 = vld [vmem:[%s2724 + $0x24] sm:$0xf]
        %v2735 = vld [vmem:[%s2724 + $0x28] sm:$0xf]
        %v2736 = vld [vmem:[%s2724 + $0x2c] sm:$0xf]
        %v2737 = vld [vmem:[%s2724 + $0x30] sm:$0xf]
        %v2738 = vld [vmem:[%s2724 + $0x34] sm:$0xf]
        %v2739 = vld [vmem:[%s2724 + $0x38] sm:$0xf]
        %v2740 = vld [vmem:[%s2724 + $0x3c] sm:$0xf]
        %v2757 = vunpack.c.l.b16 %v2725
        %v2758 = vunpack.c.l.b16 %v2726
        %v2759 = vunpack.c.l.b16 %v2727
        %v2760 = vunpack.c.l.b16 %v2728
        %v2761 = vunpack.c.l.b16 %v2729
        %v2762 = vunpack.c.l.b16 %v2730
        %v2763 = vunpack.c.l.b16 %v2731
        %v2764 = vunpack.c.l.b16 %v2732
        %v2765 = vunpack.c.l.b16 %v2733
        %v2766 = vunpack.c.l.b16 %v2734
        %v2767 = vunpack.c.l.b16 %v2735
        %v2768 = vunpack.c.l.b16 %v2736
        %v2769 = vunpack.c.l.b16 %v2737
        %v2770 = vunpack.c.l.b16 %v2738
        %v2771 = vunpack.c.l.b16 %v2739
        %v2772 = vunpack.c.l.b16 %v2740
        %v2773 = vpack.c.b16 %v2758, %v2757
        %v2774 = vpack.c.b16 %v2760, %v2759
        %v2775 = vpack.c.b16 %v2762, %v2761
        %v2776 = vpack.c.b16 %v2764, %v2763
        %v2777 = vpack.c.b16 %v2766, %v2765
        %v2778 = vpack.c.b16 %v2768, %v2767
        %v2779 = vpack.c.b16 %v2770, %v2769
        %v2780 = vpack.c.b16 %v2772, %v2771
        %2789 = vmatpush.bf16.msra.mxu0 %v2780
        %2790 = vmatpush.bf16.msra.mxu0 %v2779
        %2791 = vmatpush.bf16.msra.mxu0 %v2778
        %2792 = vmatpush.bf16.msra.mxu0 %v2777
        %2793 = vmatpush.bf16.msra.mxu0 %v2776
        %2794 = vmatpush.bf16.msra.mxu0 %v2775
        %2795 = vmatpush.bf16.msra.mxu0 %v2774
        %2796 = vmatpush.bf16.msra.mxu0 %v2773
        %2797 = vmatmul.bf16.gmra.mxu0 %v2708
        %v2798 = vpop.f32.mrf.mxu0
        %v2799 = vadd.f32 0.0, %v2798
        %v2800 = vpop.f32.mrf.mxu0
        %v2801 = vadd.f32 0.0, %v2800
        %2802 = vmatmul.bf16.gmra.mxu0 %v2709
        %v2803 = vpop.f32.mrf.mxu0
        %v2804 = vadd.f32 0.0, %v2803
        %v2805 = vpop.f32.mrf.mxu0
        %v2806 = vadd.f32 0.0, %v2805
        %2807 = vmatmul.bf16.gmra.mxu0 %v2710
        %v2808 = vpop.f32.mrf.mxu0
        %v2809 = vadd.f32 0.0, %v2808
        %v2810 = vpop.f32.mrf.mxu0
        %v2811 = vadd.f32 0.0, %v2810
        %2812 = vmatmul.bf16.gmra.mxu0 %v2711
        %v2813 = vpop.f32.mrf.mxu0
        %v2814 = vadd.f32 0.0, %v2813
        %v2815 = vpop.f32.mrf.mxu0
        %v2816 = vadd.f32 0.0, %v2815
        %2817 = vmatmul.bf16.gmra.mxu0 %v2712
        %v2818 = vpop.f32.mrf.mxu0
        %v2819 = vadd.f32 0.0, %v2818
        %v2820 = vpop.f32.mrf.mxu0
        %v2821 = vadd.f32 0.0, %v2820
        %2822 = vmatmul.bf16.gmra.mxu0 %v2713
        %v2823 = vpop.f32.mrf.mxu0
        %v2824 = vadd.f32 0.0, %v2823
        %v2825 = vpop.f32.mrf.mxu0
        %v2826 = vadd.f32 0.0, %v2825
        %2827 = vmatmul.bf16.gmra.mxu0 %v2714
        %v2828 = vpop.f32.mrf.mxu0
        %v2829 = vadd.f32 0.0, %v2828
        %v2830 = vpop.f32.mrf.mxu0
        %v2831 = vadd.f32 0.0, %v2830
        %2832 = vmatmul.bf16.gmra.mxu0 %v2715
        %v2833 = vpop.f32.mrf.mxu0
        %v2834 = vadd.f32 0.0, %v2833
        %v2835 = vpop.f32.mrf.mxu0
        %v2836 = vadd.f32 0.0, %v2835
        %2837 = vmatmul.bf16.gmra.mxu0 %v2716
        %v2838 = vpop.f32.mrf.mxu0
        %v2839 = vadd.f32 0.0, %v2838
        %v2840 = vpop.f32.mrf.mxu0
        %v2841 = vadd.f32 0.0, %v2840
        %2842 = vmatmul.bf16.gmra.mxu0 %v2717
        %v2843 = vpop.f32.mrf.mxu0
        %v2844 = vadd.f32 0.0, %v2843
        %v2845 = vpop.f32.mrf.mxu0
        %v2846 = vadd.f32 0.0, %v2845
        %2847 = vmatmul.bf16.gmra.mxu0 %v2718
        %v2848 = vpop.f32.mrf.mxu0
        %v2849 = vadd.f32 0.0, %v2848
        %v2850 = vpop.f32.mrf.mxu0
        %v2851 = vadd.f32 0.0, %v2850
        %2852 = vmatmul.bf16.gmra.mxu0 %v2719
        %v2853 = vpop.f32.mrf.mxu0
        %v2854 = vadd.f32 0.0, %v2853
        %v2855 = vpop.f32.mrf.mxu0
        %v2856 = vadd.f32 0.0, %v2855
        %2857 = vmatmul.bf16.gmra.mxu0 %v2720
        %v2858 = vpop.f32.mrf.mxu0
        %v2859 = vadd.f32 0.0, %v2858
        %v2860 = vpop.f32.mrf.mxu0
        %v2861 = vadd.f32 0.0, %v2860
        %2862 = vmatmul.bf16.gmra.mxu0 %v2721
        %v2863 = vpop.f32.mrf.mxu0
        %v2864 = vadd.f32 0.0, %v2863
        %v2865 = vpop.f32.mrf.mxu0
        %v2866 = vadd.f32 0.0, %v2865
        %2867 = vmatmul.bf16.gmra.mxu0 %v2722
        %v2868 = vpop.f32.mrf.mxu0
        %v2869 = vadd.f32 0.0, %v2868
        %v2870 = vpop.f32.mrf.mxu0
        %v2871 = vadd.f32 0.0, %v2870
        %2872 = vmatmul.bf16.gmra.mxu0 %v2723
        %v2873 = vpop.f32.mrf.mxu0
        %v2874 = vadd.f32 0.0, %v2873
        %v2875 = vpop.f32.mrf.mxu0
        %v2876 = vadd.f32 0.0, %v2875
        %2877 = vdwg.mxu0
        %v2878 = vadd.f32 %v2644, %v2799
        %v2879 = vadd.f32 %v2645, %v2801
        %v2880 = vadd.f32 %v2646, %v2804
        %v2881 = vadd.f32 %v2647, %v2806
        %v2882 = vadd.f32 %v2648, %v2809
        %v2883 = vadd.f32 %v2649, %v2811
        %v2884 = vadd.f32 %v2650, %v2814
        %v2885 = vadd.f32 %v2651, %v2816
        %v2886 = vadd.f32 %v2652, %v2819
        %v2887 = vadd.f32 %v2653, %v2821
        %v2888 = vadd.f32 %v2654, %v2824
        %v2889 = vadd.f32 %v2655, %v2826
        %v2890 = vadd.f32 %v2656, %v2829
        %v2891 = vadd.f32 %v2657, %v2831
        %v2892 = vadd.f32 %v2658, %v2834
        %v2893 = vadd.f32 %v2659, %v2836
        %v2894 = vadd.f32 %v2660, %v2839
        %v2895 = vadd.f32 %v2661, %v2841
        %v2896 = vadd.f32 %v2662, %v2844
        %v2897 = vadd.f32 %v2663, %v2846
        %v2898 = vadd.f32 %v2664, %v2849
        %v2899 = vadd.f32 %v2665, %v2851
        %v2900 = vadd.f32 %v2666, %v2854
        %v2901 = vadd.f32 %v2667, %v2856
        %v2902 = vadd.f32 %v2668, %v2859
        %v2903 = vadd.f32 %v2669, %v2861
        %v2904 = vadd.f32 %v2670, %v2864
        %v2905 = vadd.f32 %v2671, %v2866
        %v2906 = vadd.f32 %v2672, %v2869
        %v2907 = vadd.f32 %v2673, %v2871
        %v2908 = vadd.f32 %v2674, %v2874
        %v2909 = vadd.f32 %v2675, %v2876
        %v2910 = vld [vmem:[%s2] sm:$0x1]
        %v2912 = vperm.slane %v2910, 0
        %v2914 = vadd.f32 %v2878, %v2912
        %v2915 = vadd.f32 %v2879, %v2912
        %v2916 = vadd.f32 %v2880, %v2912
        %v2917 = vadd.f32 %v2881, %v2912
        %v2918 = vadd.f32 %v2882, %v2912
        %v2919 = vadd.f32 %v2883, %v2912
        %v2920 = vadd.f32 %v2884, %v2912
        %v2921 = vadd.f32 %v2885, %v2912
        %v2922 = vadd.f32 %v2886, %v2912
        %v2923 = vadd.f32 %v2887, %v2912
        %v2924 = vadd.f32 %v2888, %v2912
        %v2925 = vadd.f32 %v2889, %v2912
        %v2926 = vadd.f32 %v2890, %v2912
        %v2927 = vadd.f32 %v2891, %v2912
        %v2928 = vadd.f32 %v2892, %v2912
        %v2929 = vadd.f32 %v2893, %v2912
        %v2930 = vadd.f32 %v2894, %v2912
        %v2931 = vadd.f32 %v2895, %v2912
        %v2932 = vadd.f32 %v2896, %v2912
        %v2933 = vadd.f32 %v2897, %v2912
        %v2934 = vadd.f32 %v2898, %v2912
        %v2935 = vadd.f32 %v2899, %v2912
        %v2936 = vadd.f32 %v2900, %v2912
        %v2937 = vadd.f32 %v2901, %v2912
        %v2938 = vadd.f32 %v2902, %v2912
        %v2939 = vadd.f32 %v2903, %v2912
        %v2940 = vadd.f32 %v2904, %v2912
        %v2941 = vadd.f32 %v2905, %v2912
        %v2942 = vadd.f32 %v2906, %v2912
        %v2943 = vadd.f32 %v2907, %v2912
        %v2944 = vadd.f32 %v2908, %v2912
        %v2945 = vadd.f32 %v2909, %v2912
        %v2946 = vmax.f32 %v2914, 0.0
        %v2947 = vmax.f32 %v2915, 0.0
        %v2948 = vmax.f32 %v2916, 0.0
        %v2949 = vmax.f32 %v2917, 0.0
        %v2950 = vmax.f32 %v2918, 0.0
        %v2951 = vmax.f32 %v2919, 0.0
        %v2952 = vmax.f32 %v2920, 0.0
        %v2953 = vmax.f32 %v2921, 0.0
        %v2954 = vmax.f32 %v2922, 0.0
        %v2955 = vmax.f32 %v2923, 0.0
        %v2956 = vmax.f32 %v2924, 0.0
        %v2957 = vmax.f32 %v2925, 0.0
        %v2958 = vmax.f32 %v2926, 0.0
        %v2959 = vmax.f32 %v2927, 0.0
        %v2960 = vmax.f32 %v2928, 0.0
        %v2961 = vmax.f32 %v2929, 0.0
        %v2962 = vmax.f32 %v2930, 0.0
        %v2963 = vmax.f32 %v2931, 0.0
        %v2964 = vmax.f32 %v2932, 0.0
        %v2965 = vmax.f32 %v2933, 0.0
        %v2966 = vmax.f32 %v2934, 0.0
        %v2967 = vmax.f32 %v2935, 0.0
        %v2968 = vmax.f32 %v2936, 0.0
        %v2969 = vmax.f32 %v2937, 0.0
        %v2970 = vmax.f32 %v2938, 0.0
        %v2971 = vmax.f32 %v2939, 0.0
        %v2972 = vmax.f32 %v2940, 0.0
        %v2973 = vmax.f32 %v2941, 0.0
        %v2974 = vmax.f32 %v2942, 0.0
        %v2975 = vmax.f32 %v2943, 0.0
        %v2976 = vmax.f32 %v2944, 0.0
        %v2977 = vmax.f32 %v2945, 0.0
        %v2978 = vld [vmem:[#allocation12] sm:$0xf]
        %v2979 = vld [vmem:[#allocation12 + $0x4] sm:$0xf]
        %v2980 = vld [vmem:[#allocation12 + $0x8] sm:$0xf]
        %v2981 = vld [vmem:[#allocation12 + $0xc] sm:$0xf]
        %v2982 = vld [vmem:[#allocation12 + $0x10] sm:$0xf]
        %v2983 = vld [vmem:[#allocation12 + $0x14] sm:$0xf]
        %v2984 = vld [vmem:[#allocation12 + $0x18] sm:$0xf]
        %v2985 = vld [vmem:[#allocation12 + $0x1c] sm:$0xf]
        %v2986 = vld [vmem:[#allocation12 + $0x20] sm:$0xf]
        %v2987 = vld [vmem:[#allocation12 + $0x24] sm:$0xf]
        %v2988 = vld [vmem:[#allocation12 + $0x28] sm:$0xf]
        %v2989 = vld [vmem:[#allocation12 + $0x2c] sm:$0xf]
        %v2990 = vld [vmem:[#allocation12 + $0x30] sm:$0xf]
        %v2991 = vld [vmem:[#allocation12 + $0x34] sm:$0xf]
        %v2992 = vld [vmem:[#allocation12 + $0x38] sm:$0xf]
        %v2993 = vld [vmem:[#allocation12 + $0x3c] sm:$0xf]
        %v2994 = vld [vmem:[%s8] sm:$0x1]
        %v2996 = vperm.slane %v2994, 0
        %v3014 = vunpack.c.l.b16 %v2978
        %v3015 = vunpack.c.l.b16 %v2979
        %v3016 = vunpack.c.l.b16 %v2980
        %v3017 = vunpack.c.l.b16 %v2981
        %v3018 = vunpack.c.l.b16 %v2982
        %v3019 = vunpack.c.l.b16 %v2983
        %v3020 = vunpack.c.l.b16 %v2984
        %v3021 = vunpack.c.l.b16 %v2985
        %v3022 = vunpack.c.l.b16 %v2986
        %v3023 = vunpack.c.l.b16 %v2987
        %v3024 = vunpack.c.l.b16 %v2988
        %v3025 = vunpack.c.l.b16 %v2989
        %v3026 = vunpack.c.l.b16 %v2990
        %v3027 = vunpack.c.l.b16 %v2991
        %v3028 = vunpack.c.l.b16 %v2992
        %v3029 = vunpack.c.l.b16 %v2993
        %v3030 = vpack.c.b16 %v3015, %v3014
        %v3031 = vpack.c.b16 %v3017, %v3016
        %v3032 = vpack.c.b16 %v3019, %v3018
        %v3033 = vpack.c.b16 %v3021, %v3020
        %v3034 = vpack.c.b16 %v3023, %v3022
        %v3035 = vpack.c.b16 %v3025, %v3024
        %v3036 = vpack.c.b16 %v3027, %v3026
        %v3037 = vpack.c.b16 %v3029, %v3028
        %3046 = vmatpush.bf16.msra.mxu0 %v3037
        %3047 = vmatpush.bf16.msra.mxu0 %v3036
        %3048 = vmatpush.bf16.msra.mxu0 %v3035
        %3049 = vmatpush.bf16.msra.mxu0 %v3034
        %3050 = vmatpush.bf16.msra.mxu0 %v3033
        %3051 = vmatpush.bf16.msra.mxu0 %v3032
        %3052 = vmatpush.bf16.msra.mxu0 %v3031
        %3053 = vmatpush.bf16.msra.mxu0 %v3030
        %3054 = vmatmul.bf16.gmra.mxu0 %v630
        %v3055 = vpop.f32.mrf.mxu0
        %v3056 = vadd.f32 %v2996, %v3055
        %v3057 = vpop.f32.mrf.mxu0
        %v3058 = vadd.f32 %v2996, %v3057
        %3059 = vmatmul.bf16.gmra.mxu0 %v631
        %v3060 = vpop.f32.mrf.mxu0
        %v3061 = vadd.f32 %v2996, %v3060
        %v3062 = vpop.f32.mrf.mxu0
        %v3063 = vadd.f32 %v2996, %v3062
        %3064 = vmatmul.bf16.gmra.mxu0 %v632
        %v3065 = vpop.f32.mrf.mxu0
        %v3066 = vadd.f32 %v2996, %v3065
        %v3067 = vpop.f32.mrf.mxu0
        %v3068 = vadd.f32 %v2996, %v3067
        %3069 = vmatmul.bf16.gmra.mxu0 %v633
        %v3070 = vpop.f32.mrf.mxu0
        %v3071 = vadd.f32 %v2996, %v3070
        %v3072 = vpop.f32.mrf.mxu0
        %v3073 = vadd.f32 %v2996, %v3072
        %3074 = vmatmul.bf16.gmra.mxu0 %v634
        %v3075 = vpop.f32.mrf.mxu0
        %v3076 = vadd.f32 %v2996, %v3075
        %v3077 = vpop.f32.mrf.mxu0
        %v3078 = vadd.f32 %v2996, %v3077
        %3079 = vmatmul.bf16.gmra.mxu0 %v635
        %v3080 = vpop.f32.mrf.mxu0
        %v3081 = vadd.f32 %v2996, %v3080
        %v3082 = vpop.f32.mrf.mxu0
        %v3083 = vadd.f32 %v2996, %v3082
        %3084 = vmatmul.bf16.gmra.mxu0 %v636
        %v3085 = vpop.f32.mrf.mxu0
        %v3086 = vadd.f32 %v2996, %v3085
        %v3087 = vpop.f32.mrf.mxu0
        %v3088 = vadd.f32 %v2996, %v3087
        %3089 = vmatmul.bf16.gmra.mxu0 %v637
        %v3090 = vpop.f32.mrf.mxu0
        %v3091 = vadd.f32 %v2996, %v3090
        %v3092 = vpop.f32.mrf.mxu0
        %v3093 = vadd.f32 %v2996, %v3092
        %3094 = vmatmul.bf16.gmra.mxu0 %v638
        %v3095 = vpop.f32.mrf.mxu0
        %v3096 = vadd.f32 %v2996, %v3095
        %v3097 = vpop.f32.mrf.mxu0
        %v3098 = vadd.f32 %v2996, %v3097
        %3099 = vmatmul.bf16.gmra.mxu0 %v639
        %v3100 = vpop.f32.mrf.mxu0
        %v3101 = vadd.f32 %v2996, %v3100
        %v3102 = vpop.f32.mrf.mxu0
        %v3103 = vadd.f32 %v2996, %v3102
        %3104 = vmatmul.bf16.gmra.mxu0 %v640
        %v3105 = vpop.f32.mrf.mxu0
        %v3106 = vadd.f32 %v2996, %v3105
        %v3107 = vpop.f32.mrf.mxu0
        %v3108 = vadd.f32 %v2996, %v3107
        %3109 = vmatmul.bf16.gmra.mxu0 %v641
        %v3110 = vpop.f32.mrf.mxu0
        %v3111 = vadd.f32 %v2996, %v3110
        %v3112 = vpop.f32.mrf.mxu0
        %v3113 = vadd.f32 %v2996, %v3112
        %3114 = vmatmul.bf16.gmra.mxu0 %v642
        %v3115 = vpop.f32.mrf.mxu0
        %v3116 = vadd.f32 %v2996, %v3115
        %v3117 = vpop.f32.mrf.mxu0
        %v3118 = vadd.f32 %v2996, %v3117
        %3119 = vmatmul.bf16.gmra.mxu0 %v643
        %v3120 = vpop.f32.mrf.mxu0
        %v3121 = vadd.f32 %v2996, %v3120
        %v3122 = vpop.f32.mrf.mxu0
        %v3123 = vadd.f32 %v2996, %v3122
        %3124 = vmatmul.bf16.gmra.mxu0 %v644
        %v3125 = vpop.f32.mrf.mxu0
        %v3126 = vadd.f32 %v2996, %v3125
        %v3127 = vpop.f32.mrf.mxu0
        %v3128 = vadd.f32 %v2996, %v3127
        %3129 = vmatmul.bf16.gmra.mxu0 %v645
        %v3130 = vpop.f32.mrf.mxu0
        %v3131 = vadd.f32 %v2996, %v3130
        %v3132 = vpop.f32.mrf.mxu0
        %v3133 = vadd.f32 %v2996, %v3132
        %3134 = vdwg.mxu0
        %v3135 = vmax.f32 %v3056, 0.0
        %v3136 = vmax.f32 %v3058, 0.0
        %v3137 = vmax.f32 %v3061, 0.0
        %v3138 = vmax.f32 %v3063, 0.0
        %v3139 = vmax.f32 %v3066, 0.0
        %v3140 = vmax.f32 %v3068, 0.0
        %v3141 = vmax.f32 %v3071, 0.0
        %v3142 = vmax.f32 %v3073, 0.0
        %v3143 = vmax.f32 %v3076, 0.0
        %v3144 = vmax.f32 %v3078, 0.0
        %v3145 = vmax.f32 %v3081, 0.0
        %v3146 = vmax.f32 %v3083, 0.0
        %v3147 = vmax.f32 %v3086, 0.0
        %v3148 = vmax.f32 %v3088, 0.0
        %v3149 = vmax.f32 %v3091, 0.0
        %v3150 = vmax.f32 %v3093, 0.0
        %v3151 = vmax.f32 %v3096, 0.0
        %v3152 = vmax.f32 %v3098, 0.0
        %v3153 = vmax.f32 %v3101, 0.0
        %v3154 = vmax.f32 %v3103, 0.0
        %v3155 = vmax.f32 %v3106, 0.0
        %v3156 = vmax.f32 %v3108, 0.0
        %v3157 = vmax.f32 %v3111, 0.0
        %v3158 = vmax.f32 %v3113, 0.0
        %v3159 = vmax.f32 %v3116, 0.0
        %v3160 = vmax.f32 %v3118, 0.0
        %v3161 = vmax.f32 %v3121, 0.0
        %v3162 = vmax.f32 %v3123, 0.0
        %v3163 = vmax.f32 %v3126, 0.0
        %v3164 = vmax.f32 %v3128, 0.0
        %v3165 = vmax.f32 %v3131, 0.0
        %v3166 = vmax.f32 %v3133, 0.0
        %v3167 = vpack.c.bf16 %v3136, %v3135
        %v3168 = vpack.c.bf16 %v3138, %v3137
        %v3169 = vpack.c.bf16 %v3140, %v3139
        %v3170 = vpack.c.bf16 %v3142, %v3141
        %v3171 = vpack.c.bf16 %v3144, %v3143
        %v3172 = vpack.c.bf16 %v3146, %v3145
        %v3173 = vpack.c.bf16 %v3148, %v3147
        %v3174 = vpack.c.bf16 %v3150, %v3149
        %v3175 = vpack.c.bf16 %v3152, %v3151
        %v3176 = vpack.c.bf16 %v3154, %v3153
        %v3177 = vpack.c.bf16 %v3156, %v3155
        %v3178 = vpack.c.bf16 %v3158, %v3157
        %v3179 = vpack.c.bf16 %v3160, %v3159
        %v3180 = vpack.c.bf16 %v3162, %v3161
        %v3181 = vpack.c.bf16 %v3164, %v3163
        %v3182 = vpack.c.bf16 %v3166, %v3165
        %v3183 = vld [vmem:[#allocation9] sm:$0xf]
        %v3184 = vld [vmem:[#allocation9 + $0x4] sm:$0xf]
        %v3185 = vld [vmem:[#allocation9 + $0x8] sm:$0xf]
        %v3186 = vld [vmem:[#allocation9 + $0xc] sm:$0xf]
        %v3187 = vld [vmem:[#allocation9 + $0x10] sm:$0xf]
        %v3188 = vld [vmem:[#allocation9 + $0x14] sm:$0xf]
        %v3189 = vld [vmem:[#allocation9 + $0x18] sm:$0xf]
        %v3190 = vld [vmem:[#allocation9 + $0x1c] sm:$0xf]
        %v3191 = vld [vmem:[#allocation9 + $0x20] sm:$0xf]
        %v3192 = vld [vmem:[#allocation9 + $0x24] sm:$0xf]
        %v3193 = vld [vmem:[#allocation9 + $0x28] sm:$0xf]
        %v3194 = vld [vmem:[#allocation9 + $0x2c] sm:$0xf]
        %v3195 = vld [vmem:[#allocation9 + $0x30] sm:$0xf]
        %v3196 = vld [vmem:[#allocation9 + $0x34] sm:$0xf]
        %v3197 = vld [vmem:[#allocation9 + $0x38] sm:$0xf]
        %v3198 = vld [vmem:[#allocation9 + $0x3c] sm:$0xf]
        %v3199 = vld [vmem:[%s4] sm:$0x1]
        %v3201 = vperm.slane %v3199, 0
        %v3219 = vunpack.c.l.b16 %v3183
        %v3220 = vunpack.c.l.b16 %v3184
        %v3221 = vunpack.c.l.b16 %v3185
        %v3222 = vunpack.c.l.b16 %v3186
        %v3223 = vunpack.c.l.b16 %v3187
        %v3224 = vunpack.c.l.b16 %v3188
        %v3225 = vunpack.c.l.b16 %v3189
        %v3226 = vunpack.c.l.b16 %v3190
        %v3227 = vunpack.c.l.b16 %v3191
        %v3228 = vunpack.c.l.b16 %v3192
        %v3229 = vunpack.c.l.b16 %v3193
        %v3230 = vunpack.c.l.b16 %v3194
        %v3231 = vunpack.c.l.b16 %v3195
        %v3232 = vunpack.c.l.b16 %v3196
        %v3233 = vunpack.c.l.b16 %v3197
        %v3234 = vunpack.c.l.b16 %v3198
        %v3235 = vpack.c.b16 %v3220, %v3219
        %v3236 = vpack.c.b16 %v3222, %v3221
        %v3237 = vpack.c.b16 %v3224, %v3223
        %v3238 = vpack.c.b16 %v3226, %v3225
        %v3239 = vpack.c.b16 %v3228, %v3227
        %v3240 = vpack.c.b16 %v3230, %v3229
        %v3241 = vpack.c.b16 %v3232, %v3231
        %v3242 = vpack.c.b16 %v3234, %v3233
        %3251 = vmatpush.bf16.msra.mxu0 %v3242
        %3252 = vmatpush.bf16.msra.mxu0 %v3241
        %3253 = vmatpush.bf16.msra.mxu0 %v3240
        %3254 = vmatpush.bf16.msra.mxu0 %v3239
        %3255 = vmatpush.bf16.msra.mxu0 %v3238
        %3256 = vmatpush.bf16.msra.mxu0 %v3237
        %3257 = vmatpush.bf16.msra.mxu0 %v3236
        %3258 = vmatpush.bf16.msra.mxu0 %v3235
        %3259 = vmatmul.bf16.gmra.mxu0 %v3167
        %v3260 = vpop.f32.mrf.mxu0
        %v3261 = vadd.f32 %v3201, %v3260
        %v3262 = vpop.f32.mrf.mxu0
        %v3263 = vadd.f32 %v3201, %v3262
        %3264 = vmatmul.bf16.gmra.mxu0 %v3168
        %v3265 = vpop.f32.mrf.mxu0
        %v3266 = vadd.f32 %v3201, %v3265
        %v3267 = vpop.f32.mrf.mxu0
        %v3268 = vadd.f32 %v3201, %v3267
        %3269 = vmatmul.bf16.gmra.mxu0 %v3169
        %v3270 = vpop.f32.mrf.mxu0
        %v3271 = vadd.f32 %v3201, %v3270
        %v3272 = vpop.f32.mrf.mxu0
        %v3273 = vadd.f32 %v3201, %v3272
        %3274 = vmatmul.bf16.gmra.mxu0 %v3170
        %v3275 = vpop.f32.mrf.mxu0
        %v3276 = vadd.f32 %v3201, %v3275
        %v3277 = vpop.f32.mrf.mxu0
        %v3278 = vadd.f32 %v3201, %v3277
        %3279 = vmatmul.bf16.gmra.mxu0 %v3171
        %v3280 = vpop.f32.mrf.mxu0
        %v3281 = vadd.f32 %v3201, %v3280
        %v3282 = vpop.f32.mrf.mxu0
        %v3283 = vadd.f32 %v3201, %v3282
        %3284 = vmatmul.bf16.gmra.mxu0 %v3172
        %v3285 = vpop.f32.mrf.mxu0
        %v3286 = vadd.f32 %v3201, %v3285
        %v3287 = vpop.f32.mrf.mxu0
        %v3288 = vadd.f32 %v3201, %v3287
        %3289 = vmatmul.bf16.gmra.mxu0 %v3173
        %v3290 = vpop.f32.mrf.mxu0
        %v3291 = vadd.f32 %v3201, %v3290
        %v3292 = vpop.f32.mrf.mxu0
        %v3293 = vadd.f32 %v3201, %v3292
        %3294 = vmatmul.bf16.gmra.mxu0 %v3174
        %v3295 = vpop.f32.mrf.mxu0
        %v3296 = vadd.f32 %v3201, %v3295
        %v3297 = vpop.f32.mrf.mxu0
        %v3298 = vadd.f32 %v3201, %v3297
        %3299 = vmatmul.bf16.gmra.mxu0 %v3175
        %v3300 = vpop.f32.mrf.mxu0
        %v3301 = vadd.f32 %v3201, %v3300
        %v3302 = vpop.f32.mrf.mxu0
        %v3303 = vadd.f32 %v3201, %v3302
        %3304 = vmatmul.bf16.gmra.mxu0 %v3176
        %v3305 = vpop.f32.mrf.mxu0
        %v3306 = vadd.f32 %v3201, %v3305
        %v3307 = vpop.f32.mrf.mxu0
        %v3308 = vadd.f32 %v3201, %v3307
        %3309 = vmatmul.bf16.gmra.mxu0 %v3177
        %v3310 = vpop.f32.mrf.mxu0
        %v3311 = vadd.f32 %v3201, %v3310
        %v3312 = vpop.f32.mrf.mxu0
        %v3313 = vadd.f32 %v3201, %v3312
        %3314 = vmatmul.bf16.gmra.mxu0 %v3178
        %v3315 = vpop.f32.mrf.mxu0
        %v3316 = vadd.f32 %v3201, %v3315
        %v3317 = vpop.f32.mrf.mxu0
        %v3318 = vadd.f32 %v3201, %v3317
        %3319 = vmatmul.bf16.gmra.mxu0 %v3179
        %v3320 = vpop.f32.mrf.mxu0
        %v3321 = vadd.f32 %v3201, %v3320
        %v3322 = vpop.f32.mrf.mxu0
        %v3323 = vadd.f32 %v3201, %v3322
        %3324 = vmatmul.bf16.gmra.mxu0 %v3180
        %v3325 = vpop.f32.mrf.mxu0
        %v3326 = vadd.f32 %v3201, %v3325
        %v3327 = vpop.f32.mrf.mxu0
        %v3328 = vadd.f32 %v3201, %v3327
        %3329 = vmatmul.bf16.gmra.mxu0 %v3181
        %v3330 = vpop.f32.mrf.mxu0
        %v3331 = vadd.f32 %v3201, %v3330
        %v3332 = vpop.f32.mrf.mxu0
        %v3333 = vadd.f32 %v3201, %v3332
        %3334 = vmatmul.bf16.gmra.mxu0 %v3182
        %v3335 = vpop.f32.mrf.mxu0
        %v3336 = vadd.f32 %v3201, %v3335
        %v3337 = vpop.f32.mrf.mxu0
        %v3338 = vadd.f32 %v3201, %v3337
        %3339 = vdwg.mxu0
        %v3340 = vmax.f32 %v3261, 0.0
        %v3341 = vmax.f32 %v3263, 0.0
        %v3342 = vmax.f32 %v3266, 0.0
        %v3343 = vmax.f32 %v3268, 0.0
        %v3344 = vmax.f32 %v3271, 0.0
        %v3345 = vmax.f32 %v3273, 0.0
        %v3346 = vmax.f32 %v3276, 0.0
        %v3347 = vmax.f32 %v3278, 0.0
        %v3348 = vmax.f32 %v3281, 0.0
        %v3349 = vmax.f32 %v3283, 0.0
        %v3350 = vmax.f32 %v3286, 0.0
        %v3351 = vmax.f32 %v3288, 0.0
        %v3352 = vmax.f32 %v3291, 0.0
        %v3353 = vmax.f32 %v3293, 0.0
        %v3354 = vmax.f32 %v3296, 0.0
        %v3355 = vmax.f32 %v3298, 0.0
        %v3356 = vmax.f32 %v3301, 0.0
        %v3357 = vmax.f32 %v3303, 0.0
        %v3358 = vmax.f32 %v3306, 0.0
        %v3359 = vmax.f32 %v3308, 0.0
        %v3360 = vmax.f32 %v3311, 0.0
        %v3361 = vmax.f32 %v3313, 0.0
        %v3362 = vmax.f32 %v3316, 0.0
        %v3363 = vmax.f32 %v3318, 0.0
        %v3364 = vmax.f32 %v3321, 0.0
        %v3365 = vmax.f32 %v3323, 0.0
        %v3366 = vmax.f32 %v3326, 0.0
        %v3367 = vmax.f32 %v3328, 0.0
        %v3368 = vmax.f32 %v3331, 0.0
        %v3369 = vmax.f32 %v3333, 0.0
        %v3370 = vmax.f32 %v3336, 0.0
        %v3371 = vmax.f32 %v3338, 0.0
        %v3372 = vadd.f32 %v2946, %v3340
        %v3373 = vadd.f32 %v2947, %v3341
        %v3374 = vadd.f32 %v2948, %v3342
        %v3375 = vadd.f32 %v2949, %v3343
        %v3376 = vadd.f32 %v2950, %v3344
        %v3377 = vadd.f32 %v2951, %v3345
        %v3378 = vadd.f32 %v2952, %v3346
        %v3379 = vadd.f32 %v2953, %v3347
        %v3380 = vadd.f32 %v2954, %v3348
        %v3381 = vadd.f32 %v2955, %v3349
        %v3382 = vadd.f32 %v2956, %v3350
        %v3383 = vadd.f32 %v2957, %v3351
        %v3384 = vadd.f32 %v2958, %v3352
        %v3385 = vadd.f32 %v2959, %v3353
        %v3386 = vadd.f32 %v2960, %v3354
        %v3387 = vadd.f32 %v2961, %v3355
        %v3388 = vadd.f32 %v2962, %v3356
        %v3389 = vadd.f32 %v2963, %v3357
        %v3390 = vadd.f32 %v2964, %v3358
        %v3391 = vadd.f32 %v2965, %v3359
        %v3392 = vadd.f32 %v2966, %v3360
        %v3393 = vadd.f32 %v2967, %v3361
        %v3394 = vadd.f32 %v2968, %v3362
        %v3395 = vadd.f32 %v2969, %v3363
        %v3396 = vadd.f32 %v2970, %v3364
        %v3397 = vadd.f32 %v2971, %v3365
        %v3398 = vadd.f32 %v2972, %v3366
        %v3399 = vadd.f32 %v2973, %v3367
        %v3400 = vadd.f32 %v2974, %v3368
        %v3401 = vadd.f32 %v2975, %v3369
        %v3402 = vadd.f32 %v2976, %v3370
        %v3403 = vadd.f32 %v2977, %v3371
        %s3404 = scalar_lea.vmem [#allocation3], 24
        %3405 = vst [vmem:[%s3404 + $0x1] sm:$0xff] %v3372
        %3406 = vst [vmem:[%s3404 + $0x9] sm:$0xff] %v3373
        %3407 = vst [vmem:[%s3404 + $0x19] sm:$0xff] %v3374
        %3408 = vst [vmem:[%s3404 + $0x21] sm:$0xff] %v3375
        %3409 = vst [vmem:[%s3404 + $0x31] sm:$0xff] %v3376
        %3410 = vst [vmem:[%s3404 + $0x39] sm:$0xff] %v3377
        %3411 = vst [vmem:[%s3404 + $0x49] sm:$0xff] %v3378
        %3412 = vst [vmem:[%s3404 + $0x51] sm:$0xff] %v3379
        %3413 = vst [vmem:[%s3404 + $0x61] sm:$0xff] %v3380
        %3414 = vst [vmem:[%s3404 + $0x69] sm:$0xff] %v3381
        %3415 = vst [vmem:[%s3404 + $0x79] sm:$0xff] %v3382
        %3416 = vst [vmem:[%s3404 + $0x81] sm:$0xff] %v3383
        %3417 = vst [vmem:[%s3404 + $0x91] sm:$0xff] %v3384
        %3418 = vst [vmem:[%s3404 + $0x99] sm:$0xff] %v3385
        %3419 = vst [vmem:[%s3404 + $0xa9] sm:$0xff] %v3386
        %3420 = vst [vmem:[%s3404 + $0xb1] sm:$0xff] %v3387
        %3421 = vst [vmem:[%s3404 + $0xc1] sm:$0xff] %v3388
        %3422 = vst [vmem:[%s3404 + $0xc9] sm:$0xff] %v3389
        %3423 = vst [vmem:[%s3404 + $0xd9] sm:$0xff] %v3390
        %3424 = vst [vmem:[%s3404 + $0xe1] sm:$0xff] %v3391
        %3425 = vst [vmem:[%s3404 + $0xf1] sm:$0xff] %v3392
        %3426 = vst [vmem:[%s3404 + $0xf9] sm:$0xff] %v3393
        %3427 = vst [vmem:[%s3404 + $0x109] sm:$0xff] %v3394
        %3428 = vst [vmem:[%s3404 + $0x111] sm:$0xff] %v3395
        %3429 = vst [vmem:[%s3404 + $0x121] sm:$0xff] %v3396
        %3430 = vst [vmem:[%s3404 + $0x129] sm:$0xff] %v3397
        %3431 = vst [vmem:[%s3404 + $0x139] sm:$0xff] %v3398
        %3432 = vst [vmem:[%s3404 + $0x141] sm:$0xff] %v3399
        %3433 = vst [vmem:[%s3404 + $0x151] sm:$0xff] %v3400
        %3434 = vst [vmem:[%s3404 + $0x159] sm:$0xff] %v3401
        %3435 = vst [vmem:[%s3404 + $0x169] sm:$0xff] %v3402
        %3436 = vst [vmem:[%s3404 + $0x171] sm:$0xff] %v3403
        %v3437 = vld [vmem:[#allocation3] sm:$0xff]
        %v3438 = vld [vmem:[#allocation3 + $0x8] sm:$0xff]
        %v3439 = vld [vmem:[#allocation3 + $0x18] sm:$0xff]
        %v3440 = vld [vmem:[#allocation3 + $0x20] sm:$0xff]
        %v3441 = vld [vmem:[#allocation3 + $0x30] sm:$0xff]
        %v3442 = vld [vmem:[#allocation3 + $0x38] sm:$0xff]
        %v3443 = vld [vmem:[#allocation3 + $0x48] sm:$0xff]
        %v3444 = vld [vmem:[#allocation3 + $0x50] sm:$0xff]
        %v3445 = vld [vmem:[#allocation3 + $0x60] sm:$0xff]
        %v3446 = vld [vmem:[#allocation3 + $0x68] sm:$0xff]
        %v3447 = vld [vmem:[#allocation3 + $0x78] sm:$0xff]
        %v3448 = vld [vmem:[#allocation3 + $0x80] sm:$0xff]
        %v3449 = vld [vmem:[#allocation3 + $0x90] sm:$0xff]
        %v3450 = vld [vmem:[#allocation3 + $0x98] sm:$0xff]
        %v3451 = vld [vmem:[#allocation3 + $0xa8] sm:$0xff]
        %v3452 = vld [vmem:[#allocation3 + $0xb0] sm:$0xff]
        %v3453 = vld [vmem:[#allocation3 + $0xc0] sm:$0xff]
        %v3454 = vld [vmem:[#allocation3 + $0xc8] sm:$0xff]
        %v3455 = vld [vmem:[#allocation3 + $0xd8] sm:$0xff]
        %v3456 = vld [vmem:[#allocation3 + $0xe0] sm:$0xff]
        %v3457 = vld [vmem:[#allocation3 + $0xf0] sm:$0xff]
        %v3458 = vld [vmem:[#allocation3 + $0xf8] sm:$0xff]
        %v3459 = vld [vmem:[#allocation3 + $0x108] sm:$0xff]
        %v3460 = vld [vmem:[#allocation3 + $0x110] sm:$0xff]
        %v3461 = vld [vmem:[#allocation3 + $0x120] sm:$0xff]
        %v3462 = vld [vmem:[#allocation3 + $0x128] sm:$0xff]
        %v3463 = vld [vmem:[#allocation3 + $0x138] sm:$0xff]
        %v3464 = vld [vmem:[#allocation3 + $0x140] sm:$0xff]
        %v3465 = vld [vmem:[#allocation3 + $0x150] sm:$0xff]
        %v3466 = vld [vmem:[#allocation3 + $0x158] sm:$0xff]
        %v3467 = vld [vmem:[#allocation3 + $0x168] sm:$0xff]
        %v3468 = vld [vmem:[#allocation3 + $0x170] sm:$0xff]
        %v3469 = vld [vmem:[#allocation3 + $0x1] sm:$0xff]
        %v3470 = vld [vmem:[#allocation3 + $0x9] sm:$0xff]
        %v3471 = vld [vmem:[#allocation3 + $0x19] sm:$0xff]
        %v3472 = vld [vmem:[#allocation3 + $0x21] sm:$0xff]
        %v3473 = vld [vmem:[#allocation3 + $0x31] sm:$0xff]
        %v3474 = vld [vmem:[#allocation3 + $0x39] sm:$0xff]
        %v3475 = vld [vmem:[#allocation3 + $0x49] sm:$0xff]
        %v3476 = vld [vmem:[#allocation3 + $0x51] sm:$0xff]
        %v3477 = vld [vmem:[#allocation3 + $0x61] sm:$0xff]
        %v3478 = vld [vmem:[#allocation3 + $0x69] sm:$0xff]
        %v3479 = vld [vmem:[#allocation3 + $0x79] sm:$0xff]
        %v3480 = vld [vmem:[#allocation3 + $0x81] sm:$0xff]
        %v3481 = vld [vmem:[#allocation3 + $0x91] sm:$0xff]
        %v3482 = vld [vmem:[#allocation3 + $0x99] sm:$0xff]
        %v3483 = vld [vmem:[#allocation3 + $0xa9] sm:$0xff]
        %v3484 = vld [vmem:[#allocation3 + $0xb1] sm:$0xff]
        %v3485 = vld [vmem:[#allocation3 + $0xc1] sm:$0xff]
        %v3486 = vld [vmem:[#allocation3 + $0xc9] sm:$0xff]
        %v3487 = vld [vmem:[#allocation3 + $0xd9] sm:$0xff]
        %v3488 = vld [vmem:[#allocation3 + $0xe1] sm:$0xff]
        %v3489 = vld [vmem:[#allocation3 + $0xf1] sm:$0xff]
        %v3490 = vld [vmem:[#allocation3 + $0xf9] sm:$0xff]
        %v3491 = vld [vmem:[#allocation3 + $0x109] sm:$0xff]
        %v3492 = vld [vmem:[#allocation3 + $0x111] sm:$0xff]
        %v3493 = vld [vmem:[#allocation3 + $0x121] sm:$0xff]
        %v3494 = vld [vmem:[#allocation3 + $0x129] sm:$0xff]
        %v3495 = vld [vmem:[#allocation3 + $0x139] sm:$0xff]
        %v3496 = vld [vmem:[#allocation3 + $0x141] sm:$0xff]
        %v3497 = vld [vmem:[#allocation3 + $0x151] sm:$0xff]
        %v3498 = vld [vmem:[#allocation3 + $0x159] sm:$0xff]
        %v3499 = vld [vmem:[#allocation3 + $0x169] sm:$0xff]
        %v3500 = vld [vmem:[#allocation3 + $0x171] sm:$0xff]
        %v3501 = vmax.f32 %v3437, %v3469
        %v3502 = vmax.f32 %v3438, %v3470
        %v3503 = vmax.f32 %v3439, %v3471
        %v3504 = vmax.f32 %v3440, %v3472
        %v3505 = vmax.f32 %v3441, %v3473
        %v3506 = vmax.f32 %v3442, %v3474
        %v3507 = vmax.f32 %v3443, %v3475
        %v3508 = vmax.f32 %v3444, %v3476
        %v3509 = vmax.f32 %v3445, %v3477
        %v3510 = vmax.f32 %v3446, %v3478
        %v3511 = vmax.f32 %v3447, %v3479
        %v3512 = vmax.f32 %v3448, %v3480
        %v3513 = vmax.f32 %v3449, %v3481
        %v3514 = vmax.f32 %v3450, %v3482
        %v3515 = vmax.f32 %v3451, %v3483
        %v3516 = vmax.f32 %v3452, %v3484
        %v3517 = vmax.f32 %v3453, %v3485
        %v3518 = vmax.f32 %v3454, %v3486
        %v3519 = vmax.f32 %v3455, %v3487
        %v3520 = vmax.f32 %v3456, %v3488
        %v3521 = vmax.f32 %v3457, %v3489
        %v3522 = vmax.f32 %v3458, %v3490
        %v3523 = vmax.f32 %v3459, %v3491
        %v3524 = vmax.f32 %v3460, %v3492
        %v3525 = vmax.f32 %v3461, %v3493
        %v3526 = vmax.f32 %v3462, %v3494
        %v3527 = vmax.f32 %v3463, %v3495
        %v3528 = vmax.f32 %v3464, %v3496
        %v3529 = vmax.f32 %v3465, %v3497
        %v3530 = vmax.f32 %v3466, %v3498
        %v3531 = vmax.f32 %v3467, %v3499
        %v3532 = vmax.f32 %v3468, %v3500
        %v3533 = vld [vmem:[#allocation3 + $0x2] sm:$0xff]
        %v3534 = vld [vmem:[#allocation3 + $0xa] sm:$0xff]
        %v3535 = vld [vmem:[#allocation3 + $0x1a] sm:$0xff]
        %v3536 = vld [vmem:[#allocation3 + $0x22] sm:$0xff]
        %v3537 = vld [vmem:[#allocation3 + $0x32] sm:$0xff]
        %v3538 = vld [vmem:[#allocation3 + $0x3a] sm:$0xff]
        %v3539 = vld [vmem:[#allocation3 + $0x4a] sm:$0xff]
        %v3540 = vld [vmem:[#allocation3 + $0x52] sm:$0xff]
        %v3541 = vld [vmem:[#allocation3 + $0x62] sm:$0xff]
        %v3542 = vld [vmem:[#allocation3 + $0x6a] sm:$0xff]
        %v3543 = vld [vmem:[#allocation3 + $0x7a] sm:$0xff]
        %v3544 = vld [vmem:[#allocation3 + $0x82] sm:$0xff]
        %v3545 = vld [vmem:[#allocation3 + $0x92] sm:$0xff]
        %v3546 = vld [vmem:[#allocation3 + $0x9a] sm:$0xff]
        %v3547 = vld [vmem:[#allocation3 + $0xaa] sm:$0xff]
        %v3548 = vld [vmem:[#allocation3 + $0xb2] sm:$0xff]
        %v3549 = vld [vmem:[#allocation3 + $0xc2] sm:$0xff]
        %v3550 = vld [vmem:[#allocation3 + $0xca] sm:$0xff]
        %v3551 = vld [vmem:[#allocation3 + $0xda] sm:$0xff]
        %v3552 = vld [vmem:[#allocation3 + $0xe2] sm:$0xff]
        %v3553 = vld [vmem:[#allocation3 + $0xf2] sm:$0xff]
        %v3554 = vld [vmem:[#allocation3 + $0xfa] sm:$0xff]
        %v3555 = vld [vmem:[#allocation3 + $0x10a] sm:$0xff]
        %v3556 = vld [vmem:[#allocation3 + $0x112] sm:$0xff]
        %v3557 = vld [vmem:[#allocation3 + $0x122] sm:$0xff]
        %v3558 = vld [vmem:[#allocation3 + $0x12a] sm:$0xff]
        %v3559 = vld [vmem:[#allocation3 + $0x13a] sm:$0xff]
        %v3560 = vld [vmem:[#allocation3 + $0x142] sm:$0xff]
        %v3561 = vld [vmem:[#allocation3 + $0x152] sm:$0xff]
        %v3562 = vld [vmem:[#allocation3 + $0x15a] sm:$0xff]
        %v3563 = vld [vmem:[#allocation3 + $0x16a] sm:$0xff]
        %v3564 = vld [vmem:[#allocation3 + $0x172] sm:$0xff]
        %v3565 = vmax.f32 %v3501, %v3533
        %v3566 = vmax.f32 %v3502, %v3534
        %v3567 = vmax.f32 %v3503, %v3535
        %v3568 = vmax.f32 %v3504, %v3536
        %v3569 = vmax.f32 %v3505, %v3537
        %v3570 = vmax.f32 %v3506, %v3538
        %v3571 = vmax.f32 %v3507, %v3539
        %v3572 = vmax.f32 %v3508, %v3540
        %v3573 = vmax.f32 %v3509, %v3541
        %v3574 = vmax.f32 %v3510, %v3542
        %v3575 = vmax.f32 %v3511, %v3543
        %v3576 = vmax.f32 %v3512, %v3544
        %v3577 = vmax.f32 %v3513, %v3545
        %v3578 = vmax.f32 %v3514, %v3546
        %v3579 = vmax.f32 %v3515, %v3547
        %v3580 = vmax.f32 %v3516, %v3548
        %v3581 = vmax.f32 %v3517, %v3549
        %v3582 = vmax.f32 %v3518, %v3550
        %v3583 = vmax.f32 %v3519, %v3551
        %v3584 = vmax.f32 %v3520, %v3552
        %v3585 = vmax.f32 %v3521, %v3553
        %v3586 = vmax.f32 %v3522, %v3554
        %v3587 = vmax.f32 %v3523, %v3555
        %v3588 = vmax.f32 %v3524, %v3556
        %v3589 = vmax.f32 %v3525, %v3557
        %v3590 = vmax.f32 %v3526, %v3558
        %v3591 = vmax.f32 %v3527, %v3559
        %v3592 = vmax.f32 %v3528, %v3560
        %v3593 = vmax.f32 %v3529, %v3561
        %v3594 = vmax.f32 %v3530, %v3562
        %v3595 = vmax.f32 %v3531, %v3563
        %v3596 = vmax.f32 %v3532, %v3564
        %v3597 = vld [vmem:[%s3404] sm:$0xff]
        %v3598 = vld [vmem:[%s3404 + $0x8] sm:$0xff]
        %v3599 = vld [vmem:[%s3404 + $0x18] sm:$0xff]
        %v3600 = vld [vmem:[%s3404 + $0x20] sm:$0xff]
        %v3601 = vld [vmem:[%s3404 + $0x30] sm:$0xff]
        %v3602 = vld [vmem:[%s3404 + $0x38] sm:$0xff]
        %v3603 = vld [vmem:[%s3404 + $0x48] sm:$0xff]
        %v3604 = vld [vmem:[%s3404 + $0x50] sm:$0xff]
        %v3605 = vld [vmem:[%s3404 + $0x60] sm:$0xff]
        %v3606 = vld [vmem:[%s3404 + $0x68] sm:$0xff]
        %v3607 = vld [vmem:[%s3404 + $0x78] sm:$0xff]
        %v3608 = vld [vmem:[%s3404 + $0x80] sm:$0xff]
        %v3609 = vld [vmem:[%s3404 + $0x90] sm:$0xff]
        %v3610 = vld [vmem:[%s3404 + $0x98] sm:$0xff]
        %v3611 = vld [vmem:[%s3404 + $0xa8] sm:$0xff]
        %v3612 = vld [vmem:[%s3404 + $0xb0] sm:$0xff]
        %v3613 = vld [vmem:[%s3404 + $0xc0] sm:$0xff]
        %v3614 = vld [vmem:[%s3404 + $0xc8] sm:$0xff]
        %v3615 = vld [vmem:[%s3404 + $0xd8] sm:$0xff]
        %v3616 = vld [vmem:[%s3404 + $0xe0] sm:$0xff]
        %v3617 = vld [vmem:[%s3404 + $0xf0] sm:$0xff]
        %v3618 = vld [vmem:[%s3404 + $0xf8] sm:$0xff]
        %v3619 = vld [vmem:[%s3404 + $0x108] sm:$0xff]
        %v3620 = vld [vmem:[%s3404 + $0x110] sm:$0xff]
        %v3621 = vld [vmem:[%s3404 + $0x120] sm:$0xff]
        %v3622 = vld [vmem:[%s3404 + $0x128] sm:$0xff]
        %v3623 = vld [vmem:[%s3404 + $0x138] sm:$0xff]
        %v3624 = vld [vmem:[%s3404 + $0x140] sm:$0xff]
        %v3625 = vld [vmem:[%s3404 + $0x150] sm:$0xff]
        %v3626 = vld [vmem:[%s3404 + $0x158] sm:$0xff]
        %v3627 = vld [vmem:[%s3404 + $0x168] sm:$0xff]
        %v3628 = vld [vmem:[%s3404 + $0x170] sm:$0xff]
        %v3629 = vmax.f32 %v3565, %v3597
        %v3630 = vmax.f32 %v3566, %v3598
        %v3631 = vmax.f32 %v3567, %v3599
        %v3632 = vmax.f32 %v3568, %v3600
        %v3633 = vmax.f32 %v3569, %v3601
        %v3634 = vmax.f32 %v3570, %v3602
        %v3635 = vmax.f32 %v3571, %v3603
        %v3636 = vmax.f32 %v3572, %v3604
        %v3637 = vmax.f32 %v3573, %v3605
        %v3638 = vmax.f32 %v3574, %v3606
        %v3639 = vmax.f32 %v3575, %v3607
        %v3640 = vmax.f32 %v3576, %v3608
        %v3641 = vmax.f32 %v3577, %v3609
        %v3642 = vmax.f32 %v3578, %v3610
        %v3643 = vmax.f32 %v3579, %v3611
        %v3644 = vmax.f32 %v3580, %v3612
        %v3645 = vmax.f32 %v3581, %v3613
        %v3646 = vmax.f32 %v3582, %v3614
        %v3647 = vmax.f32 %v3583, %v3615
        %v3648 = vmax.f32 %v3584, %v3616
        %v3649 = vmax.f32 %v3585, %v3617
        %v3650 = vmax.f32 %v3586, %v3618
        %v3651 = vmax.f32 %v3587, %v3619
        %v3652 = vmax.f32 %v3588, %v3620
        %v3653 = vmax.f32 %v3589, %v3621
        %v3654 = vmax.f32 %v3590, %v3622
        %v3655 = vmax.f32 %v3591, %v3623
        %v3656 = vmax.f32 %v3592, %v3624
        %v3657 = vmax.f32 %v3593, %v3625
        %v3658 = vmax.f32 %v3594, %v3626
        %v3659 = vmax.f32 %v3595, %v3627
        %v3660 = vmax.f32 %v3596, %v3628
        %v3661 = vld [vmem:[%s3404 + $0x1] sm:$0xff]
        %v3662 = vld [vmem:[%s3404 + $0x9] sm:$0xff]
        %v3663 = vld [vmem:[%s3404 + $0x19] sm:$0xff]
        %v3664 = vld [vmem:[%s3404 + $0x21] sm:$0xff]
        %v3665 = vld [vmem:[%s3404 + $0x31] sm:$0xff]
        %v3666 = vld [vmem:[%s3404 + $0x39] sm:$0xff]
        %v3667 = vld [vmem:[%s3404 + $0x49] sm:$0xff]
        %v3668 = vld [vmem:[%s3404 + $0x51] sm:$0xff]
        %v3669 = vld [vmem:[%s3404 + $0x61] sm:$0xff]
        %v3670 = vld [vmem:[%s3404 + $0x69] sm:$0xff]
        %v3671 = vld [vmem:[%s3404 + $0x79] sm:$0xff]
        %v3672 = vld [vmem:[%s3404 + $0x81] sm:$0xff]
        %v3673 = vld [vmem:[%s3404 + $0x91] sm:$0xff]
        %v3674 = vld [vmem:[%s3404 + $0x99] sm:$0xff]
        %v3675 = vld [vmem:[%s3404 + $0xa9] sm:$0xff]
        %v3676 = vld [vmem:[%s3404 + $0xb1] sm:$0xff]
        %v3677 = vld [vmem:[%s3404 + $0xc1] sm:$0xff]
        %v3678 = vld [vmem:[%s3404 + $0xc9] sm:$0xff]
        %v3679 = vld [vmem:[%s3404 + $0xd9] sm:$0xff]
        %v3680 = vld [vmem:[%s3404 + $0xe1] sm:$0xff]
        %v3681 = vld [vmem:[%s3404 + $0xf1] sm:$0xff]
        %v3682 = vld [vmem:[%s3404 + $0xf9] sm:$0xff]
        %v3683 = vld [vmem:[%s3404 + $0x109] sm:$0xff]
        %v3684 = vld [vmem:[%s3404 + $0x111] sm:$0xff]
        %v3685 = vld [vmem:[%s3404 + $0x121] sm:$0xff]
        %v3686 = vld [vmem:[%s3404 + $0x129] sm:$0xff]
        %v3687 = vld [vmem:[%s3404 + $0x139] sm:$0xff]
        %v3688 = vld [vmem:[%s3404 + $0x141] sm:$0xff]
        %v3689 = vld [vmem:[%s3404 + $0x151] sm:$0xff]
        %v3690 = vld [vmem:[%s3404 + $0x159] sm:$0xff]
        %v3691 = vld [vmem:[%s3404 + $0x169] sm:$0xff]
        %v3692 = vld [vmem:[%s3404 + $0x171] sm:$0xff]
        %v3693 = vmax.f32 %v3629, %v3661
        %v3694 = vmax.f32 %v3630, %v3662
        %v3695 = vmax.f32 %v3631, %v3663
        %v3696 = vmax.f32 %v3632, %v3664
        %v3697 = vmax.f32 %v3633, %v3665
        %v3698 = vmax.f32 %v3634, %v3666
        %v3699 = vmax.f32 %v3635, %v3667
        %v3700 = vmax.f32 %v3636, %v3668
        %v3701 = vmax.f32 %v3637, %v3669
        %v3702 = vmax.f32 %v3638, %v3670
        %v3703 = vmax.f32 %v3639, %v3671
        %v3704 = vmax.f32 %v3640, %v3672
        %v3705 = vmax.f32 %v3641, %v3673
        %v3706 = vmax.f32 %v3642, %v3674
        %v3707 = vmax.f32 %v3643, %v3675
        %v3708 = vmax.f32 %v3644, %v3676
        %v3709 = vmax.f32 %v3645, %v3677
        %v3710 = vmax.f32 %v3646, %v3678
        %v3711 = vmax.f32 %v3647, %v3679
        %v3712 = vmax.f32 %v3648, %v3680
        %v3713 = vmax.f32 %v3649, %v3681
        %v3714 = vmax.f32 %v3650, %v3682
        %v3715 = vmax.f32 %v3651, %v3683
        %v3716 = vmax.f32 %v3652, %v3684
        %v3717 = vmax.f32 %v3653, %v3685
        %v3718 = vmax.f32 %v3654, %v3686
        %v3719 = vmax.f32 %v3655, %v3687
        %v3720 = vmax.f32 %v3656, %v3688
        %v3721 = vmax.f32 %v3657, %v3689
        %v3722 = vmax.f32 %v3658, %v3690
        %v3723 = vmax.f32 %v3659, %v3691
        %v3724 = vmax.f32 %v3660, %v3692
        %v3725 = vld [vmem:[%s3404 + $0x2] sm:$0xff]
        %v3726 = vld [vmem:[%s3404 + $0xa] sm:$0xff]
        %v3727 = vld [vmem:[%s3404 + $0x1a] sm:$0xff]
        %v3728 = vld [vmem:[%s3404 + $0x22] sm:$0xff]
        %v3729 = vld [vmem:[%s3404 + $0x32] sm:$0xff]
        %v3730 = vld [vmem:[%s3404 + $0x3a] sm:$0xff]
        %v3731 = vld [vmem:[%s3404 + $0x4a] sm:$0xff]
        %v3732 = vld [vmem:[%s3404 + $0x52] sm:$0xff]
        %v3733 = vld [vmem:[%s3404 + $0x62] sm:$0xff]
        %v3734 = vld [vmem:[%s3404 + $0x6a] sm:$0xff]
        %v3735 = vld [vmem:[%s3404 + $0x7a] sm:$0xff]
        %v3736 = vld [vmem:[%s3404 + $0x82] sm:$0xff]
        %v3737 = vld [vmem:[%s3404 + $0x92] sm:$0xff]
        %v3738 = vld [vmem:[%s3404 + $0x9a] sm:$0xff]
        %v3739 = vld [vmem:[%s3404 + $0xaa] sm:$0xff]
        %v3740 = vld [vmem:[%s3404 + $0xb2] sm:$0xff]
        %v3741 = vld [vmem:[%s3404 + $0xc2] sm:$0xff]
        %v3742 = vld [vmem:[%s3404 + $0xca] sm:$0xff]
        %v3743 = vld [vmem:[%s3404 + $0xda] sm:$0xff]
        %v3744 = vld [vmem:[%s3404 + $0xe2] sm:$0xff]
        %v3745 = vld [vmem:[%s3404 + $0xf2] sm:$0xff]
        %v3746 = vld [vmem:[%s3404 + $0xfa] sm:$0xff]
        %v3747 = vld [vmem:[%s3404 + $0x10a] sm:$0xff]
        %v3748 = vld [vmem:[%s3404 + $0x112] sm:$0xff]
        %v3749 = vld [vmem:[%s3404 + $0x122] sm:$0xff]
        %v3750 = vld [vmem:[%s3404 + $0x12a] sm:$0xff]
        %v3751 = vld [vmem:[%s3404 + $0x13a] sm:$0xff]
        %v3752 = vld [vmem:[%s3404 + $0x142] sm:$0xff]
        %v3753 = vld [vmem:[%s3404 + $0x152] sm:$0xff]
        %v3754 = vld [vmem:[%s3404 + $0x15a] sm:$0xff]
        %v3755 = vld [vmem:[%s3404 + $0x16a] sm:$0xff]
        %v3756 = vld [vmem:[%s3404 + $0x172] sm:$0xff]
        %v3757 = vmax.f32 %v3693, %v3725
        %v3758 = vmax.f32 %v3694, %v3726
        %v3759 = vmax.f32 %v3695, %v3727
        %v3760 = vmax.f32 %v3696, %v3728
        %v3761 = vmax.f32 %v3697, %v3729
        %v3762 = vmax.f32 %v3698, %v3730
        %v3763 = vmax.f32 %v3699, %v3731
        %v3764 = vmax.f32 %v3700, %v3732
        %v3765 = vmax.f32 %v3701, %v3733
        %v3766 = vmax.f32 %v3702, %v3734
        %v3767 = vmax.f32 %v3703, %v3735
        %v3768 = vmax.f32 %v3704, %v3736
        %v3769 = vmax.f32 %v3705, %v3737
        %v3770 = vmax.f32 %v3706, %v3738
        %v3771 = vmax.f32 %v3707, %v3739
        %v3772 = vmax.f32 %v3708, %v3740
        %v3773 = vmax.f32 %v3709, %v3741
        %v3774 = vmax.f32 %v3710, %v3742
        %v3775 = vmax.f32 %v3711, %v3743
        %v3776 = vmax.f32 %v3712, %v3744
        %v3777 = vmax.f32 %v3713, %v3745
        %v3778 = vmax.f32 %v3714, %v3746
        %v3779 = vmax.f32 %v3715, %v3747
        %v3780 = vmax.f32 %v3716, %v3748
        %v3781 = vmax.f32 %v3717, %v3749
        %v3782 = vmax.f32 %v3718, %v3750
        %v3783 = vmax.f32 %v3719, %v3751
        %v3784 = vmax.f32 %v3720, %v3752
        %v3785 = vmax.f32 %v3721, %v3753
        %v3786 = vmax.f32 %v3722, %v3754
        %v3787 = vmax.f32 %v3723, %v3755
        %v3788 = vmax.f32 %v3724, %v3756
        %s3789 = scalar_lea.vmem [#allocation3], 48
        %v3790 = vld [vmem:[%s3789] sm:$0xff]
        %v3791 = vld [vmem:[%s3789 + $0x8] sm:$0xff]
        %v3792 = vld [vmem:[%s3789 + $0x18] sm:$0xff]
        %v3793 = vld [vmem:[%s3789 + $0x20] sm:$0xff]
        %v3794 = vld [vmem:[%s3789 + $0x30] sm:$0xff]
        %v3795 = vld [vmem:[%s3789 + $0x38] sm:$0xff]
        %v3796 = vld [vmem:[%s3789 + $0x48] sm:$0xff]
        %v3797 = vld [vmem:[%s3789 + $0x50] sm:$0xff]
        %v3798 = vld [vmem:[%s3789 + $0x60] sm:$0xff]
        %v3799 = vld [vmem:[%s3789 + $0x68] sm:$0xff]
        %v3800 = vld [vmem:[%s3789 + $0x78] sm:$0xff]
        %v3801 = vld [vmem:[%s3789 + $0x80] sm:$0xff]
        %v3802 = vld [vmem:[%s3789 + $0x90] sm:$0xff]
        %v3803 = vld [vmem:[%s3789 + $0x98] sm:$0xff]
        %v3804 = vld [vmem:[%s3789 + $0xa8] sm:$0xff]
        %v3805 = vld [vmem:[%s3789 + $0xb0] sm:$0xff]
        %v3806 = vld [vmem:[%s3789 + $0xc0] sm:$0xff]
        %v3807 = vld [vmem:[%s3789 + $0xc8] sm:$0xff]
        %v3808 = vld [vmem:[%s3789 + $0xd8] sm:$0xff]
        %v3809 = vld [vmem:[%s3789 + $0xe0] sm:$0xff]
        %v3810 = vld [vmem:[%s3789 + $0xf0] sm:$0xff]
        %v3811 = vld [vmem:[%s3789 + $0xf8] sm:$0xff]
        %v3812 = vld [vmem:[%s3789 + $0x108] sm:$0xff]
        %v3813 = vld [vmem:[%s3789 + $0x110] sm:$0xff]
        %v3814 = vld [vmem:[%s3789 + $0x120] sm:$0xff]
        %v3815 = vld [vmem:[%s3789 + $0x128] sm:$0xff]
        %v3816 = vld [vmem:[%s3789 + $0x138] sm:$0xff]
        %v3817 = vld [vmem:[%s3789 + $0x140] sm:$0xff]
        %v3818 = vld [vmem:[%s3789 + $0x150] sm:$0xff]
        %v3819 = vld [vmem:[%s3789 + $0x158] sm:$0xff]
        %v3820 = vld [vmem:[%s3789 + $0x168] sm:$0xff]
        %v3821 = vld [vmem:[%s3789 + $0x170] sm:$0xff]
        %v3822 = vmax.f32 %v3757, %v3790
        %v3823 = vmax.f32 %v3758, %v3791
        %v3824 = vmax.f32 %v3759, %v3792
        %v3825 = vmax.f32 %v3760, %v3793
        %v3826 = vmax.f32 %v3761, %v3794
        %v3827 = vmax.f32 %v3762, %v3795
        %v3828 = vmax.f32 %v3763, %v3796
        %v3829 = vmax.f32 %v3764, %v3797
        %v3830 = vmax.f32 %v3765, %v3798
        %v3831 = vmax.f32 %v3766, %v3799
        %v3832 = vmax.f32 %v3767, %v3800
        %v3833 = vmax.f32 %v3768, %v3801
        %v3834 = vmax.f32 %v3769, %v3802
        %v3835 = vmax.f32 %v3770, %v3803
        %v3836 = vmax.f32 %v3771, %v3804
        %v3837 = vmax.f32 %v3772, %v3805
        %v3838 = vmax.f32 %v3773, %v3806
        %v3839 = vmax.f32 %v3774, %v3807
        %v3840 = vmax.f32 %v3775, %v3808
        %v3841 = vmax.f32 %v3776, %v3809
        %v3842 = vmax.f32 %v3777, %v3810
        %v3843 = vmax.f32 %v3778, %v3811
        %v3844 = vmax.f32 %v3779, %v3812
        %v3845 = vmax.f32 %v3780, %v3813
        %v3846 = vmax.f32 %v3781, %v3814
        %v3847 = vmax.f32 %v3782, %v3815
        %v3848 = vmax.f32 %v3783, %v3816
        %v3849 = vmax.f32 %v3784, %v3817
        %v3850 = vmax.f32 %v3785, %v3818
        %v3851 = vmax.f32 %v3786, %v3819
        %v3852 = vmax.f32 %v3787, %v3820
        %v3853 = vmax.f32 %v3788, %v3821
        %v3854 = vld [vmem:[%s3789 + $0x1] sm:$0xff]
        %v3855 = vld [vmem:[%s3789 + $0x9] sm:$0xff]
        %v3856 = vld [vmem:[%s3789 + $0x19] sm:$0xff]
        %v3857 = vld [vmem:[%s3789 + $0x21] sm:$0xff]
        %v3858 = vld [vmem:[%s3789 + $0x31] sm:$0xff]
        %v3859 = vld [vmem:[%s3789 + $0x39] sm:$0xff]
        %v3860 = vld [vmem:[%s3789 + $0x49] sm:$0xff]
        %v3861 = vld [vmem:[%s3789 + $0x51] sm:$0xff]
        %v3862 = vld [vmem:[%s3789 + $0x61] sm:$0xff]
        %v3863 = vld [vmem:[%s3789 + $0x69] sm:$0xff]
        %v3864 = vld [vmem:[%s3789 + $0x79] sm:$0xff]
        %v3865 = vld [vmem:[%s3789 + $0x81] sm:$0xff]
        %v3866 = vld [vmem:[%s3789 + $0x91] sm:$0xff]
        %v3867 = vld [vmem:[%s3789 + $0x99] sm:$0xff]
        %v3868 = vld [vmem:[%s3789 + $0xa9] sm:$0xff]
        %v3869 = vld [vmem:[%s3789 + $0xb1] sm:$0xff]
        %v3870 = vld [vmem:[%s3789 + $0xc1] sm:$0xff]
        %v3871 = vld [vmem:[%s3789 + $0xc9] sm:$0xff]
        %v3872 = vld [vmem:[%s3789 + $0xd9] sm:$0xff]
        %v3873 = vld [vmem:[%s3789 + $0xe1] sm:$0xff]
        %v3874 = vld [vmem:[%s3789 + $0xf1] sm:$0xff]
        %v3875 = vld [vmem:[%s3789 + $0xf9] sm:$0xff]
        %v3876 = vld [vmem:[%s3789 + $0x109] sm:$0xff]
        %v3877 = vld [vmem:[%s3789 + $0x111] sm:$0xff]
        %v3878 = vld [vmem:[%s3789 + $0x121] sm:$0xff]
        %v3879 = vld [vmem:[%s3789 + $0x129] sm:$0xff]
        %v3880 = vld [vmem:[%s3789 + $0x139] sm:$0xff]
        %v3881 = vld [vmem:[%s3789 + $0x141] sm:$0xff]
        %v3882 = vld [vmem:[%s3789 + $0x151] sm:$0xff]
        %v3883 = vld [vmem:[%s3789 + $0x159] sm:$0xff]
        %v3884 = vld [vmem:[%s3789 + $0x169] sm:$0xff]
        %v3885 = vld [vmem:[%s3789 + $0x171] sm:$0xff]
        %v3886 = vmax.f32 %v3822, %v3854
        %v3887 = vmax.f32 %v3823, %v3855
        %v3888 = vmax.f32 %v3824, %v3856
        %v3889 = vmax.f32 %v3825, %v3857
        %v3890 = vmax.f32 %v3826, %v3858
        %v3891 = vmax.f32 %v3827, %v3859
        %v3892 = vmax.f32 %v3828, %v3860
        %v3893 = vmax.f32 %v3829, %v3861
        %v3894 = vmax.f32 %v3830, %v3862
        %v3895 = vmax.f32 %v3831, %v3863
        %v3896 = vmax.f32 %v3832, %v3864
        %v3897 = vmax.f32 %v3833, %v3865
        %v3898 = vmax.f32 %v3834, %v3866
        %v3899 = vmax.f32 %v3835, %v3867
        %v3900 = vmax.f32 %v3836, %v3868
        %v3901 = vmax.f32 %v3837, %v3869
        %v3902 = vmax.f32 %v3838, %v3870
        %v3903 = vmax.f32 %v3839, %v3871
        %v3904 = vmax.f32 %v3840, %v3872
        %v3905 = vmax.f32 %v3841, %v3873
        %v3906 = vmax.f32 %v3842, %v3874
        %v3907 = vmax.f32 %v3843, %v3875
        %v3908 = vmax.f32 %v3844, %v3876
        %v3909 = vmax.f32 %v3845, %v3877
        %v3910 = vmax.f32 %v3846, %v3878
        %v3911 = vmax.f32 %v3847, %v3879
        %v3912 = vmax.f32 %v3848, %v3880
        %v3913 = vmax.f32 %v3849, %v3881
        %v3914 = vmax.f32 %v3850, %v3882
        %v3915 = vmax.f32 %v3851, %v3883
        %v3916 = vmax.f32 %v3852, %v3884
        %v3917 = vmax.f32 %v3853, %v3885
        %v3918 = vld [vmem:[%s3789 + $0x2] sm:$0xff]
        %v3919 = vld [vmem:[%s3789 + $0xa] sm:$0xff]
        %v3920 = vld [vmem:[%s3789 + $0x1a] sm:$0xff]
        %v3921 = vld [vmem:[%s3789 + $0x22] sm:$0xff]
        %v3922 = vld [vmem:[%s3789 + $0x32] sm:$0xff]
        %v3923 = vld [vmem:[%s3789 + $0x3a] sm:$0xff]
        %v3924 = vld [vmem:[%s3789 + $0x4a] sm:$0xff]
        %v3925 = vld [vmem:[%s3789 + $0x52] sm:$0xff]
        %v3926 = vld [vmem:[%s3789 + $0x62] sm:$0xff]
        %v3927 = vld [vmem:[%s3789 + $0x6a] sm:$0xff]
        %v3928 = vld [vmem:[%s3789 + $0x7a] sm:$0xff]
        %v3929 = vld [vmem:[%s3789 + $0x82] sm:$0xff]
        %v3930 = vld [vmem:[%s3789 + $0x92] sm:$0xff]
        %v3931 = vld [vmem:[%s3789 + $0x9a] sm:$0xff]
        %v3932 = vld [vmem:[%s3789 + $0xaa] sm:$0xff]
        %v3933 = vld [vmem:[%s3789 + $0xb2] sm:$0xff]
        %v3934 = vld [vmem:[%s3789 + $0xc2] sm:$0xff]
        %v3935 = vld [vmem:[%s3789 + $0xca] sm:$0xff]
        %v3936 = vld [vmem:[%s3789 + $0xda] sm:$0xff]
        %v3937 = vld [vmem:[%s3789 + $0xe2] sm:$0xff]
        %v3938 = vld [vmem:[%s3789 + $0xf2] sm:$0xff]
        %v3939 = vld [vmem:[%s3789 + $0xfa] sm:$0xff]
        %v3940 = vld [vmem:[%s3789 + $0x10a] sm:$0xff]
        %v3941 = vld [vmem:[%s3789 + $0x112] sm:$0xff]
        %v3942 = vld [vmem:[%s3789 + $0x122] sm:$0xff]
        %v3943 = vld [vmem:[%s3789 + $0x12a] sm:$0xff]
        %v3944 = vld [vmem:[%s3789 + $0x13a] sm:$0xff]
        %v3945 = vld [vmem:[%s3789 + $0x142] sm:$0xff]
        %v3946 = vld [vmem:[%s3789 + $0x152] sm:$0xff]
        %v3947 = vld [vmem:[%s3789 + $0x15a] sm:$0xff]
        %v3948 = vld [vmem:[%s3789 + $0x16a] sm:$0xff]
        %v3949 = vld [vmem:[%s3789 + $0x172] sm:$0xff]
        %v3950 = vmax.f32 %v3886, %v3918
        %v3951 = vmax.f32 %v3887, %v3919
        %v3952 = vmax.f32 %v3888, %v3920
        %v3953 = vmax.f32 %v3889, %v3921
        %v3954 = vmax.f32 %v3890, %v3922
        %v3955 = vmax.f32 %v3891, %v3923
        %v3956 = vmax.f32 %v3892, %v3924
        %v3957 = vmax.f32 %v3893, %v3925
        %v3958 = vmax.f32 %v3894, %v3926
        %v3959 = vmax.f32 %v3895, %v3927
        %v3960 = vmax.f32 %v3896, %v3928
        %v3961 = vmax.f32 %v3897, %v3929
        %v3962 = vmax.f32 %v3898, %v3930
        %v3963 = vmax.f32 %v3899, %v3931
        %v3964 = vmax.f32 %v3900, %v3932
        %v3965 = vmax.f32 %v3901, %v3933
        %v3966 = vmax.f32 %v3902, %v3934
        %v3967 = vmax.f32 %v3903, %v3935
        %v3968 = vmax.f32 %v3904, %v3936
        %v3969 = vmax.f32 %v3905, %v3937
        %v3970 = vmax.f32 %v3906, %v3938
        %v3971 = vmax.f32 %v3907, %v3939
        %v3972 = vmax.f32 %v3908, %v3940
        %v3973 = vmax.f32 %v3909, %v3941
        %v3974 = vmax.f32 %v3910, %v3942
        %v3975 = vmax.f32 %v3911, %v3943
        %v3976 = vmax.f32 %v3912, %v3944
        %v3977 = vmax.f32 %v3913, %v3945
        %v3978 = vmax.f32 %v3914, %v3946
        %v3979 = vmax.f32 %v3915, %v3947
        %v3980 = vmax.f32 %v3916, %v3948
        %v3981 = vmax.f32 %v3917, %v3949
        %v3982 = vld [vmem:[#allocation13] sm:$0xf]
        %v3983 = vld [vmem:[#allocation13 + $0x4] sm:$0xf]
        %v3984 = vld [vmem:[#allocation13 + $0x8] sm:$0xf]
        %v3985 = vld [vmem:[#allocation13 + $0xc] sm:$0xf]
        %v3986 = vld [vmem:[#allocation13 + $0x10] sm:$0xf]
        %v3987 = vld [vmem:[#allocation13 + $0x14] sm:$0xf]
        %v3988 = vld [vmem:[#allocation13 + $0x18] sm:$0xf]
        %v3989 = vld [vmem:[#allocation13 + $0x1c] sm:$0xf]
        %v3990 = vld [vmem:[#allocation13 + $0x20] sm:$0xf]
        %v3991 = vld [vmem:[#allocation13 + $0x24] sm:$0xf]
        %v3992 = vld [vmem:[#allocation13 + $0x28] sm:$0xf]
        %v3993 = vld [vmem:[#allocation13 + $0x2c] sm:$0xf]
        %v3994 = vld [vmem:[#allocation13 + $0x30] sm:$0xf]
        %v3995 = vld [vmem:[#allocation13 + $0x34] sm:$0xf]
        %v3996 = vld [vmem:[#allocation13 + $0x38] sm:$0xf]
        %v3997 = vld [vmem:[#allocation13 + $0x3c] sm:$0xf]
        %v3998 = vld [vmem:[%s10] sm:$0x1]
        %v4000 = vperm.slane %v3998, 0
        %v4018 = vunpack.c.l.b16 %v3982
        %v4019 = vunpack.c.l.b16 %v3983
        %v4020 = vunpack.c.l.b16 %v3984
        %v4021 = vunpack.c.l.b16 %v3985
        %v4022 = vunpack.c.l.b16 %v3986
        %v4023 = vunpack.c.l.b16 %v3987
        %v4024 = vunpack.c.l.b16 %v3988
        %v4025 = vunpack.c.l.b16 %v3989
        %v4026 = vunpack.c.l.b16 %v3990
        %v4027 = vunpack.c.l.b16 %v3991
        %v4028 = vunpack.c.l.b16 %v3992
        %v4029 = vunpack.c.l.b16 %v3993
        %v4030 = vunpack.c.l.b16 %v3994
        %v4031 = vunpack.c.l.b16 %v3995
        %v4032 = vunpack.c.l.b16 %v3996
        %v4033 = vunpack.c.l.b16 %v3997
        %v4034 = vpack.c.b16 %v4019, %v4018
        %v4035 = vpack.c.b16 %v4021, %v4020
        %v4036 = vpack.c.b16 %v4023, %v4022
        %v4037 = vpack.c.b16 %v4025, %v4024
        %v4038 = vpack.c.b16 %v4027, %v4026
        %v4039 = vpack.c.b16 %v4029, %v4028
        %v4040 = vpack.c.b16 %v4031, %v4030
        %v4041 = vpack.c.b16 %v4033, %v4032
        %4050 = vmatpush.bf16.msra.mxu0 %v4041
        %4051 = vmatpush.bf16.msra.mxu0 %v4040
        %4052 = vmatpush.bf16.msra.mxu0 %v4039
        %4053 = vmatpush.bf16.msra.mxu0 %v4038
        %4054 = vmatpush.bf16.msra.mxu0 %v4037
        %4055 = vmatpush.bf16.msra.mxu0 %v4036
        %4056 = vmatpush.bf16.msra.mxu0 %v4035
        %4057 = vmatpush.bf16.msra.mxu0 %v4034
        %4058 = vmatmul.bf16.gmra.mxu0 %v630
        %v4059 = vpop.f32.mrf.mxu0
        %v4060 = vadd.f32 %v4000, %v4059
        %v4061 = vpop.f32.mrf.mxu0
        %v4062 = vadd.f32 %v4000, %v4061
        %4063 = vmatmul.bf16.gmra.mxu0 %v631
        %v4064 = vpop.f32.mrf.mxu0
        %v4065 = vadd.f32 %v4000, %v4064
        %v4066 = vpop.f32.mrf.mxu0
        %v4067 = vadd.f32 %v4000, %v4066
        %4068 = vmatmul.bf16.gmra.mxu0 %v632
        %v4069 = vpop.f32.mrf.mxu0
        %v4070 = vadd.f32 %v4000, %v4069
        %v4071 = vpop.f32.mrf.mxu0
        %v4072 = vadd.f32 %v4000, %v4071
        %4073 = vmatmul.bf16.gmra.mxu0 %v633
        %v4074 = vpop.f32.mrf.mxu0
        %v4075 = vadd.f32 %v4000, %v4074
        %v4076 = vpop.f32.mrf.mxu0
        %v4077 = vadd.f32 %v4000, %v4076
        %4078 = vmatmul.bf16.gmra.mxu0 %v634
        %v4079 = vpop.f32.mrf.mxu0
        %v4080 = vadd.f32 %v4000, %v4079
        %v4081 = vpop.f32.mrf.mxu0
        %v4082 = vadd.f32 %v4000, %v4081
        %4083 = vmatmul.bf16.gmra.mxu0 %v635
        %v4084 = vpop.f32.mrf.mxu0
        %v4085 = vadd.f32 %v4000, %v4084
        %v4086 = vpop.f32.mrf.mxu0
        %v4087 = vadd.f32 %v4000, %v4086
        %4088 = vmatmul.bf16.gmra.mxu0 %v636
        %v4089 = vpop.f32.mrf.mxu0
        %v4090 = vadd.f32 %v4000, %v4089
        %v4091 = vpop.f32.mrf.mxu0
        %v4092 = vadd.f32 %v4000, %v4091
        %4093 = vmatmul.bf16.gmra.mxu0 %v637
        %v4094 = vpop.f32.mrf.mxu0
        %v4095 = vadd.f32 %v4000, %v4094
        %v4096 = vpop.f32.mrf.mxu0
        %v4097 = vadd.f32 %v4000, %v4096
        %4098 = vmatmul.bf16.gmra.mxu0 %v638
        %v4099 = vpop.f32.mrf.mxu0
        %v4100 = vadd.f32 %v4000, %v4099
        %v4101 = vpop.f32.mrf.mxu0
        %v4102 = vadd.f32 %v4000, %v4101
        %4103 = vmatmul.bf16.gmra.mxu0 %v639
        %v4104 = vpop.f32.mrf.mxu0
        %v4105 = vadd.f32 %v4000, %v4104
        %v4106 = vpop.f32.mrf.mxu0
        %v4107 = vadd.f32 %v4000, %v4106
        %4108 = vmatmul.bf16.gmra.mxu0 %v640
        %v4109 = vpop.f32.mrf.mxu0
        %v4110 = vadd.f32 %v4000, %v4109
        %v4111 = vpop.f32.mrf.mxu0
        %v4112 = vadd.f32 %v4000, %v4111
        %4113 = vmatmul.bf16.gmra.mxu0 %v641
        %v4114 = vpop.f32.mrf.mxu0
        %v4115 = vadd.f32 %v4000, %v4114
        %v4116 = vpop.f32.mrf.mxu0
        %v4117 = vadd.f32 %v4000, %v4116
        %4118 = vmatmul.bf16.gmra.mxu0 %v642
        %v4119 = vpop.f32.mrf.mxu0
        %v4120 = vadd.f32 %v4000, %v4119
        %v4121 = vpop.f32.mrf.mxu0
        %v4122 = vadd.f32 %v4000, %v4121
        %4123 = vmatmul.bf16.gmra.mxu0 %v643
        %v4124 = vpop.f32.mrf.mxu0
        %v4125 = vadd.f32 %v4000, %v4124
        %v4126 = vpop.f32.mrf.mxu0
        %v4127 = vadd.f32 %v4000, %v4126
        %4128 = vmatmul.bf16.gmra.mxu0 %v644
        %v4129 = vpop.f32.mrf.mxu0
        %v4130 = vadd.f32 %v4000, %v4129
        %v4131 = vpop.f32.mrf.mxu0
        %v4132 = vadd.f32 %v4000, %v4131
        %4133 = vmatmul.bf16.gmra.mxu0 %v645
        %v4134 = vpop.f32.mrf.mxu0
        %v4135 = vadd.f32 %v4000, %v4134
        %v4136 = vpop.f32.mrf.mxu0
        %v4137 = vadd.f32 %v4000, %v4136
        %4138 = vdwg.mxu0
        %v4139 = vmax.f32 %v4060, 0.0
        %v4140 = vmax.f32 %v4062, 0.0
        %v4141 = vmax.f32 %v4065, 0.0
        %v4142 = vmax.f32 %v4067, 0.0
        %v4143 = vmax.f32 %v4070, 0.0
        %v4144 = vmax.f32 %v4072, 0.0
        %v4145 = vmax.f32 %v4075, 0.0
        %v4146 = vmax.f32 %v4077, 0.0
        %v4147 = vmax.f32 %v4080, 0.0
        %v4148 = vmax.f32 %v4082, 0.0
        %v4149 = vmax.f32 %v4085, 0.0
        %v4150 = vmax.f32 %v4087, 0.0
        %v4151 = vmax.f32 %v4090, 0.0
        %v4152 = vmax.f32 %v4092, 0.0
        %v4153 = vmax.f32 %v4095, 0.0
        %v4154 = vmax.f32 %v4097, 0.0
        %v4155 = vmax.f32 %v4100, 0.0
        %v4156 = vmax.f32 %v4102, 0.0
        %v4157 = vmax.f32 %v4105, 0.0
        %v4158 = vmax.f32 %v4107, 0.0
        %v4159 = vmax.f32 %v4110, 0.0
        %v4160 = vmax.f32 %v4112, 0.0
        %v4161 = vmax.f32 %v4115, 0.0
        %v4162 = vmax.f32 %v4117, 0.0
        %v4163 = vmax.f32 %v4120, 0.0
        %v4164 = vmax.f32 %v4122, 0.0
        %v4165 = vmax.f32 %v4125, 0.0
        %v4166 = vmax.f32 %v4127, 0.0
        %v4167 = vmax.f32 %v4130, 0.0
        %v4168 = vmax.f32 %v4132, 0.0
        %v4169 = vmax.f32 %v4135, 0.0
        %v4170 = vmax.f32 %v4137, 0.0
        %v4171 = vadd.f32 %v3950, %v4139
        %v4172 = vadd.f32 %v3951, %v4140
        %v4173 = vadd.f32 %v3952, %v4141
        %v4174 = vadd.f32 %v3953, %v4142
        %v4175 = vadd.f32 %v3954, %v4143
        %v4176 = vadd.f32 %v3955, %v4144
        %v4177 = vadd.f32 %v3956, %v4145
        %v4178 = vadd.f32 %v3957, %v4146
        %v4179 = vadd.f32 %v3958, %v4147
        %v4180 = vadd.f32 %v3959, %v4148
        %v4181 = vadd.f32 %v3960, %v4149
        %v4182 = vadd.f32 %v3961, %v4150
        %v4183 = vadd.f32 %v3962, %v4151
        %v4184 = vadd.f32 %v3963, %v4152
        %v4185 = vadd.f32 %v3964, %v4153
        %v4186 = vadd.f32 %v3965, %v4154
        %v4187 = vadd.f32 %v3966, %v4155
        %v4188 = vadd.f32 %v3967, %v4156
        %v4189 = vadd.f32 %v3968, %v4157
        %v4190 = vadd.f32 %v3969, %v4158
        %v4191 = vadd.f32 %v3970, %v4159
        %v4192 = vadd.f32 %v3971, %v4160
        %v4193 = vadd.f32 %v3972, %v4161
        %v4194 = vadd.f32 %v3973, %v4162
        %v4195 = vadd.f32 %v3974, %v4163
        %v4196 = vadd.f32 %v3975, %v4164
        %v4197 = vadd.f32 %v3976, %v4165
        %v4198 = vadd.f32 %v3977, %v4166
        %v4199 = vadd.f32 %v3978, %v4167
        %v4200 = vadd.f32 %v3979, %v4168
        %v4201 = vadd.f32 %v3980, %v4169
        %v4202 = vadd.f32 %v3981, %v4170
        %4203 = vst [vmem:[%s489] sm:$0xff] %v4171
        %4204 = vst [vmem:[%s489 + $0x8] sm:$0xff] %v4172
        %4205 = vst [vmem:[%s489 + $0x10] sm:$0xff] %v4173
        %4206 = vst [vmem:[%s489 + $0x18] sm:$0xff] %v4174
        %4207 = vst [vmem:[%s489 + $0x20] sm:$0xff] %v4175
        %4208 = vst [vmem:[%s489 + $0x28] sm:$0xff] %v4176
        %4209 = vst [vmem:[%s489 + $0x30] sm:$0xff] %v4177
        %4210 = vst [vmem:[%s489 + $0x38] sm:$0xff] %v4178
        %4211 = vst [vmem:[%s489 + $0x40] sm:$0xff] %v4179
        %4212 = vst [vmem:[%s489 + $0x48] sm:$0xff] %v4180
        %4213 = vst [vmem:[%s489 + $0x50] sm:$0xff] %v4181
        %4214 = vst [vmem:[%s489 + $0x58] sm:$0xff] %v4182
        %4215 = vst [vmem:[%s489 + $0x60] sm:$0xff] %v4183
        %4216 = vst [vmem:[%s489 + $0x68] sm:$0xff] %v4184
        %4217 = vst [vmem:[%s489 + $0x70] sm:$0xff] %v4185
        %4218 = vst [vmem:[%s489 + $0x78] sm:$0xff] %v4186
        %4219 = vst [vmem:[%s489 + $0x80] sm:$0xff] %v4187
        %4220 = vst [vmem:[%s489 + $0x88] sm:$0xff] %v4188
        %4221 = vst [vmem:[%s489 + $0x90] sm:$0xff] %v4189
        %4222 = vst [vmem:[%s489 + $0x98] sm:$0xff] %v4190
        %4223 = vst [vmem:[%s489 + $0xa0] sm:$0xff] %v4191
        %4224 = vst [vmem:[%s489 + $0xa8] sm:$0xff] %v4192
        %4225 = vst [vmem:[%s489 + $0xb0] sm:$0xff] %v4193
        %4226 = vst [vmem:[%s489 + $0xb8] sm:$0xff] %v4194
        %4227 = vst [vmem:[%s489 + $0xc0] sm:$0xff] %v4195
        %4228 = vst [vmem:[%s489 + $0xc8] sm:$0xff] %v4196
        %4229 = vst [vmem:[%s489 + $0xd0] sm:$0xff] %v4197
        %4230 = vst [vmem:[%s489 + $0xd8] sm:$0xff] %v4198
        %4231 = vst [vmem:[%s489 + $0xe0] sm:$0xff] %v4199
        %4232 = vst [vmem:[%s489 + $0xe8] sm:$0xff] %v4200
        %4233 = vst [vmem:[%s489 + $0xf0] sm:$0xff] %v4201
        %4234 = vst [vmem:[%s489 + $0xf8] sm:$0xff] %v4202
        %s4235 = sand.u32 %s275, 1
        %s4236 = scalar_lea.sflag [#allocation6], %s4235
        %s4237 = sand.u32 %s275, 1
        %s4238 = smul.addr %s4237, 256
        %s4239 = scalar_lea.vmem [#allocation15], %s4238
        // Predicated region
        $region89: #{tpu_custom_call.1} parent=63 // pred_check
          %p4240 = pneg %p285
        $region90: #{tpu_custom_call.1} parent=63 // pred_check_branch
          %4242 = sbr.rel (%p4240) target = $region92
        $region91: #{tpu_custom_call.1} parent=63 // pred_region
          %4244 = vsyncadd %s4236, 0
          %s4245 = smul.addr %s31, 32
          %s4246 = smul.addr %s4245, 8
          %s4247 = scalar_lea.hbm %s11, %s4246
          %s4248 = sshll.u32 %s4239, 4
          %s4249 = int_to_ptr.vmem [resolvable:$true] %s4248
          %s4250 = sshll.u32 %s4247, 4
          %s4251 = int_to_ptr.hbm [resolvable:$true] %s4250
          %4256 = dma.vmem_to_hbm [thread:$0]  %s4249, 4096, %s4251, %s4236, 128, 128, 8
        $region92: #{tpu_custom_call.1} parent=63 // pred_fallthru
          _
      $region64: #{tpu_custom_call.1} parent=5 // pred_fallthru
        _
      %p4257 = scmp.le.s32.totalorder 2, %s26
      // Predicated region
      $region93: #{tpu_custom_call.1} parent=5 // pred_check
        %p4258 = pneg %p4257
      $region94: #{tpu_custom_call.1} parent=5 // pred_check_branch
        %4260 = sbr.rel (%p4258) target = $region96
      $region95: #{tpu_custom_call.1} parent=5 // pred_region
        %s4261 = ssub.s32 %s26, 2
        // Predicated region
        $region97: #{tpu_custom_call.1} parent=95 // pred_check
          %p4262 = pneg %p291
        $region98: #{tpu_custom_call.1} parent=95 // pred_check_branch
          %4264 = sbr.rel (%p4262) target = $region100
        $region99: #{tpu_custom_call.1} parent=95 // pred_region
          %s4265 = sand.u32 %s276, 1
          %s4266 = scalar_lea.sflag [#allocation6], %s4265
          %s4267 = sand.u32 %s276, 1
          %s4268 = smul.addr %s4267, 256
          %s4269 = scalar_lea.vmem [#allocation15], %s4268
          %4271 = dma.done %s4266, 4096
        $region100: #{tpu_custom_call.1} parent=95 // pred_fallthru
          _
      $region96: #{tpu_custom_call.1} parent=5 // pred_fallthru
        _
    $region6: #{tpu_custom_call.1} parent=1 // loop_footer
      %s30 = sadd.s32 1, %s26
    $region7: #{tpu_custom_call.1} parent=1 // loop_footer_branch
      %25 = sbr.rel target = $region3
    $region8: #{tpu_custom_call.1} parent=1 // loop_exit
      _
    %4272 = vsyncpa [#allocation5], 1
    %s4273 = scalar_lea.sflag [#allocation5], 1
    %4274 = vsyncpa %s4273, 1
    %4275 = vsyncpa [#allocation8], 1
    %4276 = vsyncpa [#allocation11], 1
    %4277 = vsyncpa [#allocation14], 1
    %4278 = vsyncpa [#allocation6], 1
    %s4279 = scalar_lea.sflag [#allocation6], 1
    %4280 = vsyncpa %s4279, 1

</llo_original>
